<compile_context>
chip_gen: v7x
topology: tpu7x:2x2x1
jax: 0.10.0
libtpu: 0.0.40
codegen_flags: <defaults>
</compile_context>

<pallas_src>
import functools

import numpy as np

import jax
import jax.numpy as jnp
from jax.experimental import pallas as pl
from jax.experimental.pallas import tpu as pltpu

_CONV_CFG = [
    # (Cin, Cout, kh, kw, stride, pad)
    (1,   8, 5, 5, 2, 2),
    (8,  16, 3, 3, 2, 1),
    (16, 32, 3, 3, 2, 1),
    (32, 64, 3, 3, 2, 1),
]
_BN_EPS = 1e-5
_TB_MAX = 8          # max samples lane-packed per grid step
_K1_PAD = 32         # first-conv im2col contraction (25) padded for aligned lane segments


def _round_up(v, m):
    return (v + m - 1) // m * m


@functools.lru_cache(maxsize=None)
def _tap_selection_mats(hin, win, kh, kw, stride, pad):
    """Static 0/1 gather matrices, one per kernel tap; each tap's output-row block
    is padded to a multiple of 8 sublanes.  Row p of tap (di,dj) selects the input
    spatial position feeding that tap at output position p; all-zero rows encode
    the conv's spatial zero padding (and the sublane padding)."""
    hout = (hin + 2 * pad - kh) // stride + 1
    wout = (win + 2 * pad - kw) // stride + 1
    p_out = hout * wout
    p_pad = _round_up(p_out, 8)
    g = np.zeros((kh * kw, p_pad, hin * win), np.float32)
    for di in range(kh):
        for dj in range(kw):
            tap = di * kw + dj
            for ho in range(hout):
                r = ho * stride + di - pad
                if not 0 <= r < hin:
                    continue
                for wo in range(wout):
                    c = wo * stride + dj - pad
                    if 0 <= c < win:
                        g[tap, ho * wout + wo, r * win + c] = 1.0
    return g, hout, wout, p_pad


def _im2col_nhwc(x, kh, kw, stride, pad):
    """Plain-JAX im2col for the FIRST conv only. Returns ([N, Ho*Wo, kh*kw*C], Ho, Wo)."""
    n, h, w, c = x.shape
    xp = jnp.pad(x, ((0, 0), (pad, pad), (pad, pad), (0, 0)))
    ho = (h + 2 * pad - kh) // stride + 1
    wo = (w + 2 * pad - kw) // stride + 1
    cols = []
    for i in range(kh):
        for j in range(kw):
            cols.append(jax.lax.slice(
                xp, (0, i, j, 0),
                (n, i + (ho - 1) * stride + 1, j + (wo - 1) * stride + 1, c),
                (1, stride, stride, 1)))
    patches = jnp.stack(cols, axis=3)              # [N, Ho, Wo, kh*kw, C]
    return patches.reshape(n, ho * wo, kh * kw * c), ho, wo


def _const_spec(arr):
    """Full-array block with a constant index map (stays resident across grid steps)."""
    zeros = (0,) * arr.ndim
    return pl.BlockSpec(arr.shape, lambda i, z=zeros: z)


def audio_classifier_forward(x_nchw, params):
    x = jnp.transpose(x_nchw, (0, 2, 3, 1)).astype(jnp.float32)        # NCHW -> NHWC
    n = x.shape[0]

    # Group size: TB lane-packed samples per grid step; keep >= 2 grid steps so both
    # v7x TensorCores get work (dimension_semantics=("parallel",)).
    tb = max(1, min(_TB_MAX, (n + 1) // 2))
    g_steps = -(-n // tb)
    n_pad = g_steps * tb

    # ---- block-1 operands: im2col in plain JAX, samples lane-packed per group ----
    # TODO(synk): first-layer patch extraction stays outside the kernel (Cin=1 keeps it small).
    cin1, cout1, kh1, kw1, s1, pd1 = _CONV_CFG[0]
    patches, ho, wo = _im2col_nhwc(x, kh1, kw1, s1, pd1)               # [n, P1, 25]
    p1 = ho * wo
    k1 = kh1 * kw1 * cin1
    patches = jnp.pad(patches, ((0, n_pad - n), (0, 0), (0, _K1_PAD - k1)))
    patches = patches.reshape(g_steps, tb, p1, _K1_PAD).transpose(0, 2, 1, 3)
    patches = patches.reshape(g_steps, p1, tb * _K1_PAD).astype(jnp.bfloat16)

    eye_tb = jnp.eye(tb, dtype=jnp.float32)

    blk1 = params["conv"][0]
    w1mat = jnp.transpose(blk1["w"], (2, 3, 1, 0)).reshape(k1, cout1)
    w1mat = jnp.pad(w1mat, ((0, _K1_PAD - k1), (0, 0)))
    w1_bd = jnp.kron(eye_tb, w1mat).astype(jnp.bfloat16)               # [tb*32, tb*8]

    # ---- blocks 2-4: stacked gather mats + block-diagonal (sample-replicated) tap weights ----
    g_ops, w_ops, blk_cfg = [], [], []
    hin, win = ho, wo
    rows_prev = p1
    for blk, (cin, cout, kh, kw, s, pd) in zip(params["conv"][1:], _CONV_CFG[1:]):
        g_np, hout, wout, p_pad = _tap_selection_mats(hin, win, kh, kw, s, pd)
        p_in = hin * win
        if rows_prev > p_in:       # zero columns ignore the previous block's sublane-padding rows
            g_np = np.pad(g_np, ((0, 0), (0, 0), (0, rows_prev - p_in)))
        g_ops.append(jnp.asarray(g_np.reshape(kh * kw * p_pad, rows_prev), jnp.bfloat16))
        w_taps = jnp.transpose(blk["w"], (2, 3, 1, 0)).reshape(kh * kw, cin, cout)
        w_ops.append(jax.vmap(lambda wt: jnp.kron(eye_tb, wt))(w_taps).astype(jnp.bfloat16))
        blk_cfg.append(dict(n_tap=kh * kw, p_pad=p_pad, p_out=hout * wout,
                            w_in=tb * cin, w_out=tb * cout))
        hin, win = hout, wout
        rows_prev = p_pad

    # ---- fold BN (eval) and pack all small per-lane constants into ONE f32 buffer ----
    def fold_bn(blk):
        scale = blk["gamma"] / jnp.sqrt(blk["run_var"] + _BN_EPS)
        shift = blk["beta"] - blk["run_mean"] * scale
        return blk["b"], scale, shift

    seg_off, off = {}, 0
    aux_rows = [[], [], []]                                            # bias / scale / shift
    for bi in (3, 2, 1, 0):                   # widest segment first -> 128-aligned offsets at tb=8
        b, sc, sh = fold_bn(params["conv"][bi])
        seg_off[bi] = off
        aux_rows[0].append(jnp.tile(b, tb))
        aux_rows[1].append(jnp.tile(sc, tb))
        aux_rows[2].append(jnp.tile(sh, tb))
        off += tb * _CONV_CFG[bi][1]
    total_w = off

    fc = params["fc"]
    hid, n_cls = fc["w1"].shape[1], fc["w2"].shape[1]
    fb1_off, fb2_off = 0, tb * hid
    fb_row = jnp.concatenate([jnp.tile(fc["b1"], tb), jnp.tile(fc["b2"], tb)])
    fb_row = jnp.pad(fb_row, (0, total_w - fb_row.shape[0]))
    consts = jnp.stack([jnp.concatenate(aux_rows[0]), jnp.concatenate(aux_rows[1]),
                        jnp.concatenate(aux_rows[2]), fb_row]).astype(jnp.float32)

    fw1_bd = jnp.kron(eye_tb, fc["w1"]).astype(jnp.bfloat16)           # [tb*64, tb*hid]
    fw2_bd = jnp.kron(eye_tb, fc["w2"]).astype(jnp.bfloat16)           # [tb*hid, tb*n_cls]

    # ---- fused kernel (closure over static, shape-derived config) ----
    off1 = seg_off[0]
    blk_offs = [seg_off[1], seg_off[2], seg_off[3]]
    w_out1 = tb * cout1
    pool_cnt = blk_cfg[-1]["p_out"]            # real spatial positions pooled by AdaptiveAvgPool2d(1)

    def kernel(p_ref, w1_ref, g2_ref, w2_ref, g3_ref, w3_ref, g4_ref, w4_ref,
               fw1_ref, fw2_ref, c_ref, out_ref, t2_ref, t3_ref, t4_ref):

        def epilogue(acc, o, w):
            # Conv bias + ReLU + folded eval-mode BatchNorm, all in f32 on the VPU.
            return (jnp.maximum(acc + c_ref[0:1, o:o + w], 0.0)
                    * c_ref[1:2, o:o + w] + c_ref[2:3, o:o + w])

        # Block 1: ONE wide MXU matmul for all tb lane-packed samples.
        y32 = epilogue(jnp.dot(p_ref[0], w1_ref[...],
                               preferred_element_type=jnp.float32), off1, w_out1)

        # Blocks 2-4: stacked-G gather matmul staged through a VMEM scratch (bounds vreg
        # live ranges), then 9 tap matmuls on 8-sublane-aligned slices of that scratch
        # against block-diagonal tap weights.  Activations never leave VMEM/vregs.
        grefs = (g2_ref, g3_ref, g4_ref)
        wrefs = (w2_ref, w3_ref, w4_ref)
        trefs = (t2_ref, t3_ref, t4_ref)
        for bi, cfg in enumerate(blk_cfg):
            g_ref, w_ref, t_ref = grefs[bi], wrefs[bi], trefs[bi]
            n_tap, p_pad, w_out = cfg["n_tap"], cfg["p_pad"], cfg["w_out"]
            t_ref[...] = jnp.dot(g_ref[...], y32.astype(jnp.bfloat16),
                                 preferred_element_type=jnp.float32).astype(jnp.bfloat16)
            acc = jnp.zeros((p_pad, w_out), jnp.float32)
            for tap in range(n_tap):                    # static unroll (9 taps)
                acc = acc + jnp.dot(t_ref[tap * p_pad:(tap + 1) * p_pad, :], w_ref[tap],
                                    preferred_element_type=jnp.float32)
            y32 = epilogue(acc, blk_offs[bi], w_out)

        # Head: AdaptiveAvgPool2d(1) + Linear(64,32) + ReLU + Linear(32,10),
        # lane-packed via block-diagonal FC weights; one lane-dense store per group.
        pooled = (jnp.sum(y32[:pool_cnt, :], axis=0, keepdims=True)
                  * (1.0 / pool_cnt)).astype(jnp.bfloat16)             # [1, tb*64]
        h = jnp.dot(pooled, fw1_ref[...], preferred_element_type=jnp.float32)
        h = jnp.maximum(h + c_ref[3:4, fb1_off:fb1_off + tb * hid], 0.0)
        logits = jnp.dot(h.astype(jnp.bfloat16), fw2_ref[...],
                         preferred_element_type=jnp.float32)
        out_ref[0] = logits + c_ref[3:4, fb2_off:fb2_off + tb * n_cls]

    resident = [w1_bd, g_ops[0], w_ops[0], g_ops[1], w_ops[1], g_ops[2], w_ops[2],
                fw1_bd, fw2_bd, consts]
    in_specs = [pl.BlockSpec((1, p1, tb * _K1_PAD), lambda i: (i, 0, 0))]  # streamed per-group tile
    in_specs += [_const_spec(a) for a in resident]                         # resident operands
    scratch_shapes = [pltpu.VMEM((cfg["n_tap"] * cfg["p_pad"], cfg["w_in"]), jnp.bfloat16)
                      for cfg in blk_cfg]

    # Advisory cost estimate.
    flops = 2 * p1 * (tb * _K1_PAD) * w_out1
    for gm, wm in zip(g_ops, w_ops):
        flops += 2 * gm.shape[0] * gm.shape[1] * wm.shape[1]           # stacked gather matmul
        flops += 2 * gm.shape[0] * wm.shape[1] * wm.shape[2]           # 9 tap matmuls
    flops += 2 * fw1_bd.shape[0] * fw1_bd.shape[1] + 2 * fw2_bd.shape[0] * fw2_bd.shape[1]
    flops *= g_steps
    bytes_accessed = (int(patches.size) * 2
                      + sum(int(a.size) * a.dtype.itemsize for a in resident)
                      + g_steps * tb * n_cls * 4)

    out = pl.pallas_call(
        kernel,
        out_shape=jax.ShapeDtypeStruct((g_steps, 1, tb * n_cls), jnp.float32),
        grid=(g_steps,),
        in_specs=in_specs,
        out_specs=pl.BlockSpec((1, 1, tb * n_cls), lambda i: (i, 0, 0)),
        scratch_shapes=scratch_shapes,
        compiler_params=pltpu.CompilerParams(
            dimension_semantics=("parallel",),       # megacore: shard groups across TCs (v7x)
            vmem_limit_bytes=32 * 1024 * 1024,       # fits v7x's smaller scoped VMEM; v5e/v6e trivially
        ),
        cost_estimate=pl.CostEstimate(flops=int(flops), transcendentals=0,
                                      bytes_accessed=int(bytes_accessed)),
    )(patches, *resident)
    return out.reshape(n_pad, n_cls)[:n]


# --------------------------- reference & parameters ---------------------------- #

def reference_forward(x_nchw, params):
    """Pure-JAX (non-Pallas) reference with identical eval-mode semantics (f32)."""
    hp = jax.lax.Precision.HIGHEST
    x = jnp.transpose(x_nchw, (0, 2, 3, 1)).astype(jnp.float32)
    for blk, (_, _, _, _, s, pd) in zip(params["conv"], _CONV_CFG):
        w_hwio = jnp.transpose(blk["w"], (2, 3, 1, 0))
        y = jax.lax.conv_general_dilated(
            x, w_hwio, window_strides=(s, s), padding=[(pd, pd), (pd, pd)],
            dimension_numbers=("NHWC", "HWIO", "NHWC"), precision=hp)
        y = jnp.maximum(y + blk["b"], 0.0)
        scale = blk["gamma"] / jnp.sqrt(blk["run_var"] + _BN_EPS)
        shift = blk["beta"] - blk["run_mean"] * scale
        x = y * scale + shift                       # Dropout: identity in eval mode
    fc = params["fc"]
    pooled = jnp.mean(x, axis=(1, 2))
    h = jnp.maximum(jnp.dot(pooled, fc["w1"], precision=hp) + fc["b1"], 0.0)
    return jnp.dot(h, fc["w2"], precision=hp) + fc["b2"]


def init_params(key):
    params = {"conv": [], "fc": {}}
    for (cin, cout, kh, kw, _, _) in _CONV_CFG:
        key, kw_, kb_, kg_, kbt_, km_, kv_ = jax.random.split(key, 7)
        params["conv"].append(dict(
            w=0.1 * jax.random.normal(kw_, (cout, cin, kh, kw), jnp.float32),
            b=0.1 * jax.random.normal(kb_, (cout,), jnp.float32),
            gamma=1.0 + 0.1 * jax.random.normal(kg_, (cout,), jnp.float32),
            beta=0.1 * jax.random.normal(kbt_, (cout,), jnp.float32),
            run_mean=0.1 * jax.random.normal(km_, (cout,), jnp.float32),
            run_var=1.0 + 0.1 * jax.random.uniform(kv_, (cout,), jnp.float32),
        ))
    key, k1, k2, k3, k4 = jax.random.split(key, 5)
    params["fc"] = dict(
        w1=0.1 * jax.random.normal(k1, (64, 32), jnp.float32),   # [in, out]
        b1=0.1 * jax.random.normal(k2, (32,), jnp.float32),
        w2=0.1 * jax.random.normal(k3, (32, 10), jnp.float32),
        b2=0.1 * jax.random.normal(k4, (10,), jnp.float32),
    )
    return params


if __name__ == "__main__":
    key = jax.random.PRNGKey(0)
    key, kx = jax.random.split(key)
    # batch=5 exercises lane-packing (TB=3), 2 grid steps, and batch padding.
    x = jax.random.normal(kx, (5, 1, 32, 32), jnp.float32)
    params = init_params(key)

    logits = jax.jit(audio_classifier_forward)(x, params)
    jax.block_until_ready(logits)
    assert logits.shape == (5, 10) and logits.dtype == jnp.float32

    ref = jax.jit(reference_forward)(x, params)
    jax.block_until_ready(ref)
    err = float(jnp.max(jnp.abs(logits - ref)))
    # bf16 matmul operands (f32 accumulation, f32 epilogue) vs f32 reference: allow bf16 slack;
    # structural bugs would produce O(0.1+) errors and still be caught.
    assert err < 5e-2, f"Pallas kernel mismatch vs reference (max abs err {err})"

    print("KERNEL_OK")
</pallas_src>

<mosaic_0001>
module attributes {stable_mosaic.version = 11 : i64} {
  func.func @kernel(%arg0: i32, %arg1: memref<1x256x96xbf16, #tpu.memory_space<vmem>>, %arg2: memref<96x24xbf16, #tpu.memory_space<vmem>>, %arg3: memref<576x256xbf16, #tpu.memory_space<vmem>>, %arg4: memref<9x24x48xbf16, #tpu.memory_space<vmem>>, %arg5: memref<144x64xbf16, #tpu.memory_space<vmem>>, %arg6: memref<9x48x96xbf16, #tpu.memory_space<vmem>>, %arg7: memref<72x16xbf16, #tpu.memory_space<vmem>>, %arg8: memref<9x96x192xbf16, #tpu.memory_space<vmem>>, %arg9: memref<192x96xbf16, #tpu.memory_space<vmem>>, %arg10: memref<96x30xbf16, #tpu.memory_space<vmem>>, %arg11: memref<4x360xf32, #tpu.memory_space<vmem>>, %arg12: memref<1x1x30xf32, #tpu.memory_space<vmem>>, %arg13: memref<576x24xbf16, #tpu.memory_space<vmem>>, %arg14: memref<144x48xbf16, #tpu.memory_space<vmem>>, %arg15: memref<72x96xbf16, #tpu.memory_space<vmem>>) attributes {dimension_semantics = [#tpu.dimension_semantics<parallel>], iteration_bounds = array<i64: 2>, scalar_prefetch = 0 : i64, scratch_operands = 3 : i64, tpu.core_type = #tpu.core_type<tc>, window_params = [{transform_indices = @transform_0, window_bounds = array<i64: 1, 256, 96>}, {pipeline_mode = #tpu.pipeline_mode<synchronous>, transform_indices = @transform_1, window_bounds = array<i64: 96, 24>}, {pipeline_mode = #tpu.pipeline_mode<synchronous>, transform_indices = @transform_2, window_bounds = array<i64: 576, 256>}, {pipeline_mode = #tpu.pipeline_mode<synchronous>, transform_indices = @transform_3, window_bounds = array<i64: 9, 24, 48>}, {pipeline_mode = #tpu.pipeline_mode<synchronous>, transform_indices = @transform_4, window_bounds = array<i64: 144, 64>}, {pipeline_mode = #tpu.pipeline_mode<synchronous>, transform_indices = @transform_5, window_bounds = array<i64: 9, 48, 96>}, {pipeline_mode = #tpu.pipeline_mode<synchronous>, transform_indices = @transform_6, window_bounds = array<i64: 72, 16>}, {pipeline_mode = #tpu.pipeline_mode<synchronous>, transform_indices = @transform_7, window_bounds = array<i64: 9, 96, 192>}, {pipeline_mode = #tpu.pipeline_mode<synchronous>, transform_indices = @transform_8, window_bounds = array<i64: 192, 96>}, {pipeline_mode = #tpu.pipeline_mode<synchronous>, transform_indices = @transform_9, window_bounds = array<i64: 96, 30>}, {pipeline_mode = #tpu.pipeline_mode<synchronous>, transform_indices = @transform_10, window_bounds = array<i64: 4, 360>}, {transform_indices = @transform_11, window_bounds = array<i64: 1, 1, 30>}]} {
    %c0 = arith.constant 0 : index
    %c0_0 = arith.constant 0 : index
    %c0_1 = arith.constant 0 : index
    %0 = vector.load %arg1[%c0, %c0_0, %c0_1] : memref<1x256x96xbf16, #tpu.memory_space<vmem>>, vector<1x256x96xbf16>
    %1 = vector.shape_cast %0 : vector<1x256x96xbf16> to vector<256x96xbf16>
    %c0_2 = arith.constant 0 : index
    %c0_3 = arith.constant 0 : index
    %2 = vector.load %arg2[%c0_2, %c0_3] : memref<96x24xbf16, #tpu.memory_space<vmem>>, vector<96x24xbf16>
    %cst = arith.constant dense<0.000000e+00> : vector<256x24xf32>
    %3 = tpu.matmul %1, %2, %cst {dimension_numbers = #tpu.dot_dimension_numbers<[1], [0], [0], [1], [0, 0, 1, 1], [], []>} : vector<256x96xbf16>, vector<96x24xbf16>, vector<256x24xf32> -> vector<256x24xf32>
    %c0_4 = arith.constant 0 : index
    %c336 = arith.constant 336 : index
    %4 = vector.load %arg11[%c0_4, %c336] : memref<4x360xf32, #tpu.memory_space<vmem>>, vector<1x24xf32>
    %5 = vector.broadcast %4 : vector<1x24xf32> to vector<256x24xf32>
    %6 = arith.addf %3, %5 : vector<256x24xf32>
    %cst_5 = arith.constant 0.000000e+00 : f32
    %7 = vector.broadcast %cst_5 : f32 to vector<256x24xf32>
    %8 = arith.maximumf %6, %7 : vector<256x24xf32>
    %c1 = arith.constant 1 : index
    %c336_6 = arith.constant 336 : index
    %9 = vector.load %arg11[%c1, %c336_6] : memref<4x360xf32, #tpu.memory_space<vmem>>, vector<1x24xf32>
    %10 = vector.broadcast %9 : vector<1x24xf32> to vector<256x24xf32>
    %11 = arith.mulf %8, %10 : vector<256x24xf32>
    %c2 = arith.constant 2 : index
    %c336_7 = arith.constant 336 : index
    %12 = vector.load %arg11[%c2, %c336_7] : memref<4x360xf32, #tpu.memory_space<vmem>>, vector<1x24xf32>
    %13 = vector.broadcast %12 : vector<1x24xf32> to vector<256x24xf32>
    %14 = arith.addf %11, %13 : vector<256x24xf32>
    %c0_8 = arith.constant 0 : index
    %c0_9 = arith.constant 0 : index
    %15 = vector.load %arg3[%c0_8, %c0_9] : memref<576x256xbf16, #tpu.memory_space<vmem>>, vector<576x256xbf16>
    %16 = arith.truncf %14 : vector<256x24xf32> to vector<256x24xbf16>
    %cst_10 = arith.constant dense<0.000000e+00> : vector<576x24xf32>
    %17 = tpu.matmul %15, %16, %cst_10 {dimension_numbers = #tpu.dot_dimension_numbers<[1], [0], [0], [1], [0, 0, 1, 1], [], []>} : vector<576x256xbf16>, vector<256x24xbf16>, vector<576x24xf32> -> vector<576x24xf32>
    %18 = arith.truncf %17 : vector<576x24xf32> to vector<576x24xbf16>
    %c0_11 = arith.constant 0 : index
    %c0_12 = arith.constant 0 : index
    %19 = vector.load %arg13[%c0_11, %c0_12] : memref<576x24xbf16, #tpu.memory_space<vmem>>, vector<576x24xbf16>
    tpu.vector_store %arg13[%c0_11, %c0_12], %18 {strides = array<i32>} : memref<576x24xbf16, #tpu.memory_space<vmem>>, vector<576x24xbf16>,
    %cst_13 = arith.constant 0.000000e+00 : f32
    %20 = vector.broadcast %cst_13 : f32 to vector<64x48xf32>
    %c0_14 = arith.constant 0 : index
    %c0_15 = arith.constant 0 : index
    %21 = vector.load %arg13[%c0_14, %c0_15] : memref<576x24xbf16, #tpu.memory_space<vmem>>, vector<64x24xbf16>
    %c0_16 = arith.constant 0 : index
    %c0_17 = arith.constant 0 : index
    %c0_18 = arith.constant 0 : index
    %22 = vector.load %arg4[%c0_16, %c0_17, %c0_18] : memref<9x24x48xbf16, #tpu.memory_space<vmem>>, vector<1x24x48xbf16>
    %23 = vector.shape_cast %22 : vector<1x24x48xbf16> to vector<24x48xbf16>
    %cst_19 = arith.constant dense<0.000000e+00> : vector<64x48xf32>
    %24 = tpu.matmul %21, %23, %cst_19 {dimension_numbers = #tpu.dot_dimension_numbers<[1], [0], [0], [1], [0, 0, 1, 1], [], []>} : vector<64x24xbf16>, vector<24x48xbf16>, vector<64x48xf32> -> vector<64x48xf32>
    %25 = arith.addf %20, %24 : vector<64x48xf32>
    %c64 = arith.constant 64 : index
    %c0_20 = arith.constant 0 : index
    %26 = vector.load %arg13[%c64, %c0_20] : memref<576x24xbf16, #tpu.memory_space<vmem>>, vector<64x24xbf16>
    %c1_21 = arith.constant 1 : index
    %c0_22 = arith.constant 0 : index
    %c0_23 = arith.constant 0 : index
    %27 = vector.load %arg4[%c1_21, %c0_22, %c0_23] : memref<9x24x48xbf16, #tpu.memory_space<vmem>>, vector<1x24x48xbf16>
    %28 = vector.shape_cast %27 : vector<1x24x48xbf16> to vector<24x48xbf16>
    %cst_24 = arith.constant dense<0.000000e+00> : vector<64x48xf32>
    %29 = tpu.matmul %26, %28, %cst_24 {dimension_numbers = #tpu.dot_dimension_numbers<[1], [0], [0], [1], [0, 0, 1, 1], [], []>} : vector<64x24xbf16>, vector<24x48xbf16>, vector<64x48xf32> -> vector<64x48xf32>
    %30 = arith.addf %25, %29 : vector<64x48xf32>
    %c128 = arith.constant 128 : index
    %c0_25 = arith.constant 0 : index
    %31 = vector.load %arg13[%c128, %c0_25] : memref<576x24xbf16, #tpu.memory_space<vmem>>, vector<64x24xbf16>
    %c2_26 = arith.constant 2 : index
    %c0_27 = arith.constant 0 : index
    %c0_28 = arith.constant 0 : index
    %32 = vector.load %arg4[%c2_26, %c0_27, %c0_28] : memref<9x24x48xbf16, #tpu.memory_space<vmem>>, vector<1x24x48xbf16>
    %33 = vector.shape_cast %32 : vector<1x24x48xbf16> to vector<24x48xbf16>
    %cst_29 = arith.constant dense<0.000000e+00> : vector<64x48xf32>
    %34 = tpu.matmul %31, %33, %cst_29 {dimension_numbers = #tpu.dot_dimension_numbers<[1], [0], [0], [1], [0, 0, 1, 1], [], []>} : vector<64x24xbf16>, vector<24x48xbf16>, vector<64x48xf32> -> vector<64x48xf32>
    %35 = arith.addf %30, %34 : vector<64x48xf32>
    %c192 = arith.constant 192 : index
    %c0_30 = arith.constant 0 : index
    %36 = vector.load %arg13[%c192, %c0_30] : memref<576x24xbf16, #tpu.memory_space<vmem>>, vector<64x24xbf16>
    %c3 = arith.constant 3 : index
    %c0_31 = arith.constant 0 : index
    %c0_32 = arith.constant 0 : index
    %37 = vector.load %arg4[%c3, %c0_31, %c0_32] : memref<9x24x48xbf16, #tpu.memory_space<vmem>>, vector<1x24x48xbf16>
    %38 = vector.shape_cast %37 : vector<1x24x48xbf16> to vector<24x48xbf16>
    %cst_33 = arith.constant dense<0.000000e+00> : vector<64x48xf32>
    %39 = tpu.matmul %36, %38, %cst_33 {dimension_numbers = #tpu.dot_dimension_numbers<[1], [0], [0], [1], [0, 0, 1, 1], [], []>} : vector<64x24xbf16>, vector<24x48xbf16>, vector<64x48xf32> -> vector<64x48xf32>
    %40 = arith.addf %35, %39 : vector<64x48xf32>
    %c256 = arith.constant 256 : index
    %c0_34 = arith.constant 0 : index
    %41 = vector.load %arg13[%c256, %c0_34] : memref<576x24xbf16, #tpu.memory_space<vmem>>, vector<64x24xbf16>
    %c4 = arith.constant 4 : index
    %c0_35 = arith.constant 0 : index
    %c0_36 = arith.constant 0 : index
    %42 = vector.load %arg4[%c4, %c0_35, %c0_36] : memref<9x24x48xbf16, #tpu.memory_space<vmem>>, vector<1x24x48xbf16>
    %43 = vector.shape_cast %42 : vector<1x24x48xbf16> to vector<24x48xbf16>
    %cst_37 = arith.constant dense<0.000000e+00> : vector<64x48xf32>
    %44 = tpu.matmul %41, %43, %cst_37 {dimension_numbers = #tpu.dot_dimension_numbers<[1], [0], [0], [1], [0, 0, 1, 1], [], []>} : vector<64x24xbf16>, vector<24x48xbf16>, vector<64x48xf32> -> vector<64x48xf32>
    %45 = arith.addf %40, %44 : vector<64x48xf32>
    %c320 = arith.constant 320 : index
    %c0_38 = arith.constant 0 : index
    %46 = vector.load %arg13[%c320, %c0_38] : memref<576x24xbf16, #tpu.memory_space<vmem>>, vector<64x24xbf16>
    %c5 = arith.constant 5 : index
    %c0_39 = arith.constant 0 : index
    %c0_40 = arith.constant 0 : index
    %47 = vector.load %arg4[%c5, %c0_39, %c0_40] : memref<9x24x48xbf16, #tpu.memory_space<vmem>>, vector<1x24x48xbf16>
    %48 = vector.shape_cast %47 : vector<1x24x48xbf16> to vector<24x48xbf16>
    %cst_41 = arith.constant dense<0.000000e+00> : vector<64x48xf32>
    %49 = tpu.matmul %46, %48, %cst_41 {dimension_numbers = #tpu.dot_dimension_numbers<[1], [0], [0], [1], [0, 0, 1, 1], [], []>} : vector<64x24xbf16>, vector<24x48xbf16>, vector<64x48xf32> -> vector<64x48xf32>
    %50 = arith.addf %45, %49 : vector<64x48xf32>
    %c384 = arith.constant 384 : index
    %c0_42 = arith.constant 0 : index
    %51 = vector.load %arg13[%c384, %c0_42] : memref<576x24xbf16, #tpu.memory_space<vmem>>, vector<64x24xbf16>
    %c6 = arith.constant 6 : index
    %c0_43 = arith.constant 0 : index
    %c0_44 = arith.constant 0 : index
    %52 = vector.load %arg4[%c6, %c0_43, %c0_44] : memref<9x24x48xbf16, #tpu.memory_space<vmem>>, vector<1x24x48xbf16>
    %53 = vector.shape_cast %52 : vector<1x24x48xbf16> to vector<24x48xbf16>
    %cst_45 = arith.constant dense<0.000000e+00> : vector<64x48xf32>
    %54 = tpu.matmul %51, %53, %cst_45 {dimension_numbers = #tpu.dot_dimension_numbers<[1], [0], [0], [1], [0, 0, 1, 1], [], []>} : vector<64x24xbf16>, vector<24x48xbf16>, vector<64x48xf32> -> vector<64x48xf32>
    %55 = arith.addf %50, %54 : vector<64x48xf32>
    %c448 = arith.constant 448 : index
    %c0_46 = arith.constant 0 : index
    %56 = vector.load %arg13[%c448, %c0_46] : memref<576x24xbf16, #tpu.memory_space<vmem>>, vector<64x24xbf16>
    %c7 = arith.constant 7 : index
    %c0_47 = arith.constant 0 : index
    %c0_48 = arith.constant 0 : index
    %57 = vector.load %arg4[%c7, %c0_47, %c0_48] : memref<9x24x48xbf16, #tpu.memory_space<vmem>>, vector<1x24x48xbf16>
    %58 = vector.shape_cast %57 : vector<1x24x48xbf16> to vector<24x48xbf16>
    %cst_49 = arith.constant dense<0.000000e+00> : vector<64x48xf32>
    %59 = tpu.matmul %56, %58, %cst_49 {dimension_numbers = #tpu.dot_dimension_numbers<[1], [0], [0], [1], [0, 0, 1, 1], [], []>} : vector<64x24xbf16>, vector<24x48xbf16>, vector<64x48xf32> -> vector<64x48xf32>
    %60 = arith.addf %55, %59 : vector<64x48xf32>
    %c512 = arith.constant 512 : index
    %c0_50 = arith.constant 0 : index
    %61 = vector.load %arg13[%c512, %c0_50] : memref<576x24xbf16, #tpu.memory_space<vmem>>, vector<64x24xbf16>
    %c8 = arith.constant 8 : index
    %c0_51 = arith.constant 0 : index
    %c0_52 = arith.constant 0 : index
    %62 = vector.load %arg4[%c8, %c0_51, %c0_52] : memref<9x24x48xbf16, #tpu.memory_space<vmem>>, vector<1x24x48xbf16>
    %63 = vector.shape_cast %62 : vector<1x24x48xbf16> to vector<24x48xbf16>
    %cst_53 = arith.constant dense<0.000000e+00> : vector<64x48xf32>
    %64 = tpu.matmul %61, %63, %cst_53 {dimension_numbers = #tpu.dot_dimension_numbers<[1], [0], [0], [1], [0, 0, 1, 1], [], []>} : vector<64x24xbf16>, vector<24x48xbf16>, vector<64x48xf32> -> vector<64x48xf32>
    %65 = arith.addf %60, %64 : vector<64x48xf32>
    %c0_54 = arith.constant 0 : index
    %c288 = arith.constant 288 : index
    %66 = vector.load %arg11[%c0_54, %c288] : memref<4x360xf32, #tpu.memory_space<vmem>>, vector<1x48xf32>
    %67 = vector.broadcast %66 : vector<1x48xf32> to vector<64x48xf32>
    %68 = arith.addf %65, %67 : vector<64x48xf32>
    %cst_55 = arith.constant 0.000000e+00 : f32
    %69 = vector.broadcast %cst_55 : f32 to vector<64x48xf32>
    %70 = arith.maximumf %68, %69 : vector<64x48xf32>
    %c1_56 = arith.constant 1 : index
    %c288_57 = arith.constant 288 : index
    %71 = vector.load %arg11[%c1_56, %c288_57] : memref<4x360xf32, #tpu.memory_space<vmem>>, vector<1x48xf32>
    %72 = vector.broadcast %71 : vector<1x48xf32> to vector<64x48xf32>
    %73 = arith.mulf %70, %72 : vector<64x48xf32>
    %c2_58 = arith.constant 2 : index
    %c288_59 = arith.constant 288 : index
    %74 = vector.load %arg11[%c2_58, %c288_59] : memref<4x360xf32, #tpu.memory_space<vmem>>, vector<1x48xf32>
    %75 = vector.broadcast %74 : vector<1x48xf32> to vector<64x48xf32>
    %76 = arith.addf %73, %75 : vector<64x48xf32>
    %c0_60 = arith.constant 0 : index
    %c0_61 = arith.constant 0 : index
    %77 = vector.load %arg5[%c0_60, %c0_61] : memref<144x64xbf16, #tpu.memory_space<vmem>>, vector<144x64xbf16>
    %78 = arith.truncf %76 : vector<64x48xf32> to vector<64x48xbf16>
    %cst_62 = arith.constant dense<0.000000e+00> : vector<144x48xf32>
    %79 = tpu.matmul %77, %78, %cst_62 {dimension_numbers = #tpu.dot_dimension_numbers<[1], [0], [0], [1], [0, 0, 1, 1], [], []>} : vector<144x64xbf16>, vector<64x48xbf16>, vector<144x48xf32> -> vector<144x48xf32>
    %80 = arith.truncf %79 : vector<144x48xf32> to vector<144x48xbf16>
    %c0_63 = arith.constant 0 : index
    %c0_64 = arith.constant 0 : index
    %81 = vector.load %arg14[%c0_63, %c0_64] : memref<144x48xbf16, #tpu.memory_space<vmem>>, vector<144x48xbf16>
    tpu.vector_store %arg14[%c0_63, %c0_64], %80 {strides = array<i32>} : memref<144x48xbf16, #tpu.memory_space<vmem>>, vector<144x48xbf16>,
    %cst_65 = arith.constant 0.000000e+00 : f32
    %82 = vector.broadcast %cst_65 : f32 to vector<16x96xf32>
    %c0_66 = arith.constant 0 : index
    %c0_67 = arith.constant 0 : index
    %83 = vector.load %arg14[%c0_66, %c0_67] : memref<144x48xbf16, #tpu.memory_space<vmem>>, vector<16x48xbf16>
    %c0_68 = arith.constant 0 : index
    %c0_69 = arith.constant 0 : index
    %c0_70 = arith.constant 0 : index
    %84 = vector.load %arg6[%c0_68, %c0_69, %c0_70] : memref<9x48x96xbf16, #tpu.memory_space<vmem>>, vector<1x48x96xbf16>
    %85 = vector.shape_cast %84 : vector<1x48x96xbf16> to vector<48x96xbf16>
    %cst_71 = arith.constant dense<0.000000e+00> : vector<16x96xf32>
    %86 = tpu.matmul %83, %85, %cst_71 {dimension_numbers = #tpu.dot_dimension_numbers<[1], [0], [0], [1], [0, 0, 1, 1], [], []>} : vector<16x48xbf16>, vector<48x96xbf16>, vector<16x96xf32> -> vector<16x96xf32>
    %87 = arith.addf %82, %86 : vector<16x96xf32>
    %c16 = arith.constant 16 : index
    %c0_72 = arith.constant 0 : index
    %88 = vector.load %arg14[%c16, %c0_72] : memref<144x48xbf16, #tpu.memory_space<vmem>>, vector<16x48xbf16>
    %c1_73 = arith.constant 1 : index
    %c0_74 = arith.constant 0 : index
    %c0_75 = arith.constant 0 : index
    %89 = vector.load %arg6[%c1_73, %c0_74, %c0_75] : memref<9x48x96xbf16, #tpu.memory_space<vmem>>, vector<1x48x96xbf16>
    %90 = vector.shape_cast %89 : vector<1x48x96xbf16> to vector<48x96xbf16>
    %cst_76 = arith.constant dense<0.000000e+00> : vector<16x96xf32>
    %91 = tpu.matmul %88, %90, %cst_76 {dimension_numbers = #tpu.dot_dimension_numbers<[1], [0], [0], [1], [0, 0, 1, 1], [], []>} : vector<16x48xbf16>, vector<48x96xbf16>, vector<16x96xf32> -> vector<16x96xf32>
    %92 = arith.addf %87, %91 : vector<16x96xf32>
    %c32 = arith.constant 32 : index
    %c0_77 = arith.constant 0 : index
    %93 = vector.load %arg14[%c32, %c0_77] : memref<144x48xbf16, #tpu.memory_space<vmem>>, vector<16x48xbf16>
    %c2_78 = arith.constant 2 : index
    %c0_79 = arith.constant 0 : index
    %c0_80 = arith.constant 0 : index
    %94 = vector.load %arg6[%c2_78, %c0_79, %c0_80] : memref<9x48x96xbf16, #tpu.memory_space<vmem>>, vector<1x48x96xbf16>
    %95 = vector.shape_cast %94 : vector<1x48x96xbf16> to vector<48x96xbf16>
    %cst_81 = arith.constant dense<0.000000e+00> : vector<16x96xf32>
    %96 = tpu.matmul %93, %95, %cst_81 {dimension_numbers = #tpu.dot_dimension_numbers<[1], [0], [0], [1], [0, 0, 1, 1], [], []>} : vector<16x48xbf16>, vector<48x96xbf16>, vector<16x96xf32> -> vector<16x96xf32>
    %97 = arith.addf %92, %96 : vector<16x96xf32>
    %c48 = arith.constant 48 : index
    %c0_82 = arith.constant 0 : index
    %98 = vector.load %arg14[%c48, %c0_82] : memref<144x48xbf16, #tpu.memory_space<vmem>>, vector<16x48xbf16>
    %c3_83 = arith.constant 3 : index
    %c0_84 = arith.constant 0 : index
    %c0_85 = arith.constant 0 : index
    %99 = vector.load %arg6[%c3_83, %c0_84, %c0_85] : memref<9x48x96xbf16, #tpu.memory_space<vmem>>, vector<1x48x96xbf16>
    %100 = vector.shape_cast %99 : vector<1x48x96xbf16> to vector<48x96xbf16>
    %cst_86 = arith.constant dense<0.000000e+00> : vector<16x96xf32>
    %101 = tpu.matmul %98, %100, %cst_86 {dimension_numbers = #tpu.dot_dimension_numbers<[1], [0], [0], [1], [0, 0, 1, 1], [], []>} : vector<16x48xbf16>, vector<48x96xbf16>, vector<16x96xf32> -> vector<16x96xf32>
    %102 = arith.addf %97, %101 : vector<16x96xf32>
    %c64_87 = arith.constant 64 : index
    %c0_88 = arith.constant 0 : index
    %103 = vector.load %arg14[%c64_87, %c0_88] : memref<144x48xbf16, #tpu.memory_space<vmem>>, vector<16x48xbf16>
    %c4_89 = arith.constant 4 : index
    %c0_90 = arith.constant 0 : index
    %c0_91 = arith.constant 0 : index
    %104 = vector.load %arg6[%c4_89, %c0_90, %c0_91] : memref<9x48x96xbf16, #tpu.memory_space<vmem>>, vector<1x48x96xbf16>
    %105 = vector.shape_cast %104 : vector<1x48x96xbf16> to vector<48x96xbf16>
    %cst_92 = arith.constant dense<0.000000e+00> : vector<16x96xf32>
    %106 = tpu.matmul %103, %105, %cst_92 {dimension_numbers = #tpu.dot_dimension_numbers<[1], [0], [0], [1], [0, 0, 1, 1], [], []>} : vector<16x48xbf16>, vector<48x96xbf16>, vector<16x96xf32> -> vector<16x96xf32>
    %107 = arith.addf %102, %106 : vector<16x96xf32>
    %c80 = arith.constant 80 : index
    %c0_93 = arith.constant 0 : index
    %108 = vector.load %arg14[%c80, %c0_93] : memref<144x48xbf16, #tpu.memory_space<vmem>>, vector<16x48xbf16>
    %c5_94 = arith.constant 5 : index
    %c0_95 = arith.constant 0 : index
    %c0_96 = arith.constant 0 : index
    %109 = vector.load %arg6[%c5_94, %c0_95, %c0_96] : memref<9x48x96xbf16, #tpu.memory_space<vmem>>, vector<1x48x96xbf16>
    %110 = vector.shape_cast %109 : vector<1x48x96xbf16> to vector<48x96xbf16>
    %cst_97 = arith.constant dense<0.000000e+00> : vector<16x96xf32>
    %111 = tpu.matmul %108, %110, %cst_97 {dimension_numbers = #tpu.dot_dimension_numbers<[1], [0], [0], [1], [0, 0, 1, 1], [], []>} : vector<16x48xbf16>, vector<48x96xbf16>, vector<16x96xf32> -> vector<16x96xf32>
    %112 = arith.addf %107, %111 : vector<16x96xf32>
    %c96 = arith.constant 96 : index
    %c0_98 = arith.constant 0 : index
    %113 = vector.load %arg14[%c96, %c0_98] : memref<144x48xbf16, #tpu.memory_space<vmem>>, vector<16x48xbf16>
    %c6_99 = arith.constant 6 : index
    %c0_100 = arith.constant 0 : index
    %c0_101 = arith.constant 0 : index
    %114 = vector.load %arg6[%c6_99, %c0_100, %c0_101] : memref<9x48x96xbf16, #tpu.memory_space<vmem>>, vector<1x48x96xbf16>
    %115 = vector.shape_cast %114 : vector<1x48x96xbf16> to vector<48x96xbf16>
    %cst_102 = arith.constant dense<0.000000e+00> : vector<16x96xf32>
    %116 = tpu.matmul %113, %115, %cst_102 {dimension_numbers = #tpu.dot_dimension_numbers<[1], [0], [0], [1], [0, 0, 1, 1], [], []>} : vector<16x48xbf16>, vector<48x96xbf16>, vector<16x96xf32> -> vector<16x96xf32>
    %117 = arith.addf %112, %116 : vector<16x96xf32>
    %c112 = arith.constant 112 : index
    %c0_103 = arith.constant 0 : index
    %118 = vector.load %arg14[%c112, %c0_103] : memref<144x48xbf16, #tpu.memory_space<vmem>>, vector<16x48xbf16>
    %c7_104 = arith.constant 7 : index
    %c0_105 = arith.constant 0 : index
    %c0_106 = arith.constant 0 : index
    %119 = vector.load %arg6[%c7_104, %c0_105, %c0_106] : memref<9x48x96xbf16, #tpu.memory_space<vmem>>, vector<1x48x96xbf16>
    %120 = vector.shape_cast %119 : vector<1x48x96xbf16> to vector<48x96xbf16>
    %cst_107 = arith.constant dense<0.000000e+00> : vector<16x96xf32>
    %121 = tpu.matmul %118, %120, %cst_107 {dimension_numbers = #tpu.dot_dimension_numbers<[1], [0], [0], [1], [0, 0, 1, 1], [], []>} : vector<16x48xbf16>, vector<48x96xbf16>, vector<16x96xf32> -> vector<16x96xf32>
    %122 = arith.addf %117, %121 : vector<16x96xf32>
    %c128_108 = arith.constant 128 : index
    %c0_109 = arith.constant 0 : index
    %123 = vector.load %arg14[%c128_108, %c0_109] : memref<144x48xbf16, #tpu.memory_space<vmem>>, vector<16x48xbf16>
    %c8_110 = arith.constant 8 : index
    %c0_111 = arith.constant 0 : index
    %c0_112 = arith.constant 0 : index
    %124 = vector.load %arg6[%c8_110, %c0_111, %c0_112] : memref<9x48x96xbf16, #tpu.memory_space<vmem>>, vector<1x48x96xbf16>
    %125 = vector.shape_cast %124 : vector<1x48x96xbf16> to vector<48x96xbf16>
    %cst_113 = arith.constant dense<0.000000e+00> : vector<16x96xf32>
    %126 = tpu.matmul %123, %125, %cst_113 {dimension_numbers = #tpu.dot_dimension_numbers<[1], [0], [0], [1], [0, 0, 1, 1], [], []>} : vector<16x48xbf16>, vector<48x96xbf16>, vector<16x96xf32> -> vector<16x96xf32>
    %127 = arith.addf %122, %126 : vector<16x96xf32>
    %c0_114 = arith.constant 0 : index
    %c192_115 = arith.constant 192 : index
    %128 = vector.load %arg11[%c0_114, %c192_115] : memref<4x360xf32, #tpu.memory_space<vmem>>, vector<1x96xf32>
    %129 = vector.broadcast %128 : vector<1x96xf32> to vector<16x96xf32>
    %130 = arith.addf %127, %129 : vector<16x96xf32>
    %cst_116 = arith.constant 0.000000e+00 : f32
    %131 = vector.broadcast %cst_116 : f32 to vector<16x96xf32>
    %132 = arith.maximumf %130, %131 : vector<16x96xf32>
    %c1_117 = arith.constant 1 : index
    %c192_118 = arith.constant 192 : index
    %133 = vector.load %arg11[%c1_117, %c192_118] : memref<4x360xf32, #tpu.memory_space<vmem>>, vector<1x96xf32>
    %134 = vector.broadcast %133 : vector<1x96xf32> to vector<16x96xf32>
    %135 = arith.mulf %132, %134 : vector<16x96xf32>
    %c2_119 = arith.constant 2 : index
    %c192_120 = arith.constant 192 : index
    %136 = vector.load %arg11[%c2_119, %c192_120] : memref<4x360xf32, #tpu.memory_space<vmem>>, vector<1x96xf32>
    %137 = vector.broadcast %136 : vector<1x96xf32> to vector<16x96xf32>
    %138 = arith.addf %135, %137 : vector<16x96xf32>
    %c0_121 = arith.constant 0 : index
    %c0_122 = arith.constant 0 : index
    %139 = vector.load %arg7[%c0_121, %c0_122] : memref<72x16xbf16, #tpu.memory_space<vmem>>, vector<72x16xbf16>
    %140 = arith.truncf %138 : vector<16x96xf32> to vector<16x96xbf16>
    %cst_123 = arith.constant dense<0.000000e+00> : vector<72x96xf32>
    %141 = tpu.matmul %139, %140, %cst_123 {dimension_numbers = #tpu.dot_dimension_numbers<[1], [0], [0], [1], [0, 0, 1, 1], [], []>} : vector<72x16xbf16>, vector<16x96xbf16>, vector<72x96xf32> -> vector<72x96xf32>
    %142 = arith.truncf %141 : vector<72x96xf32> to vector<72x96xbf16>
    %c0_124 = arith.constant 0 : index
    %c0_125 = arith.constant 0 : index
    %143 = vector.load %arg15[%c0_124, %c0_125] : memref<72x96xbf16, #tpu.memory_space<vmem>>, vector<72x96xbf16>
    tpu.vector_store %arg15[%c0_124, %c0_125], %142 {strides = array<i32>} : memref<72x96xbf16, #tpu.memory_space<vmem>>, vector<72x96xbf16>,
    %cst_126 = arith.constant 0.000000e+00 : f32
    %144 = vector.broadcast %cst_126 : f32 to vector<8x192xf32>
    %c0_127 = arith.constant 0 : index
    %c0_128 = arith.constant 0 : index
    %145 = vector.load %arg15[%c0_127, %c0_128] : memref<72x96xbf16, #tpu.memory_space<vmem>>, vector<8x96xbf16>
    %c0_129 = arith.constant 0 : index
    %c0_130 = arith.constant 0 : index
    %c0_131 = arith.constant 0 : index
    %146 = vector.load %arg8[%c0_129, %c0_130, %c0_131] : memref<9x96x192xbf16, #tpu.memory_space<vmem>>, vector<1x96x192xbf16>
    %147 = vector.shape_cast %146 : vector<1x96x192xbf16> to vector<96x192xbf16>
    %cst_132 = arith.constant dense<0.000000e+00> : vector<8x192xf32>
    %148 = tpu.matmul %145, %147, %cst_132 {dimension_numbers = #tpu.dot_dimension_numbers<[1], [0], [0], [1], [0, 0, 1, 1], [], []>} : vector<8x96xbf16>, vector<96x192xbf16>, vector<8x192xf32> -> vector<8x192xf32>
    %149 = arith.addf %144, %148 : vector<8x192xf32>
    %c8_133 = arith.constant 8 : index
    %c0_134 = arith.constant 0 : index
    %150 = vector.load %arg15[%c8_133, %c0_134] : memref<72x96xbf16, #tpu.memory_space<vmem>>, vector<8x96xbf16>
    %c1_135 = arith.constant 1 : index
    %c0_136 = arith.constant 0 : index
    %c0_137 = arith.constant 0 : index
    %151 = vector.load %arg8[%c1_135, %c0_136, %c0_137] : memref<9x96x192xbf16, #tpu.memory_space<vmem>>, vector<1x96x192xbf16>
    %152 = vector.shape_cast %151 : vector<1x96x192xbf16> to vector<96x192xbf16>
    %cst_138 = arith.constant dense<0.000000e+00> : vector<8x192xf32>
    %153 = tpu.matmul %150, %152, %cst_138 {dimension_numbers = #tpu.dot_dimension_numbers<[1], [0], [0], [1], [0, 0, 1, 1], [], []>} : vector<8x96xbf16>, vector<96x192xbf16>, vector<8x192xf32> -> vector<8x192xf32>
    %154 = arith.addf %149, %153 : vector<8x192xf32>
    %c16_139 = arith.constant 16 : index
    %c0_140 = arith.constant 0 : index
    %155 = vector.load %arg15[%c16_139, %c0_140] : memref<72x96xbf16, #tpu.memory_space<vmem>>, vector<8x96xbf16>
    %c2_141 = arith.constant 2 : index
    %c0_142 = arith.constant 0 : index
    %c0_143 = arith.constant 0 : index
    %156 = vector.load %arg8[%c2_141, %c0_142, %c0_143] : memref<9x96x192xbf16, #tpu.memory_space<vmem>>, vector<1x96x192xbf16>
    %157 = vector.shape_cast %156 : vector<1x96x192xbf16> to vector<96x192xbf16>
    %cst_144 = arith.constant dense<0.000000e+00> : vector<8x192xf32>
    %158 = tpu.matmul %155, %157, %cst_144 {dimension_numbers = #tpu.dot_dimension_numbers<[1], [0], [0], [1], [0, 0, 1, 1], [], []>} : vector<8x96xbf16>, vector<96x192xbf16>, vector<8x192xf32> -> vector<8x192xf32>
    %159 = arith.addf %154, %158 : vector<8x192xf32>
    %c24 = arith.constant 24 : index
    %c0_145 = arith.constant 0 : index
    %160 = vector.load %arg15[%c24, %c0_145] : memref<72x96xbf16, #tpu.memory_space<vmem>>, vector<8x96xbf16>
    %c3_146 = arith.constant 3 : index
    %c0_147 = arith.constant 0 : index
    %c0_148 = arith.constant 0 : index
    %161 = vector.load %arg8[%c3_146, %c0_147, %c0_148] : memref<9x96x192xbf16, #tpu.memory_space<vmem>>, vector<1x96x192xbf16>
    %162 = vector.shape_cast %161 : vector<1x96x192xbf16> to vector<96x192xbf16>
    %cst_149 = arith.constant dense<0.000000e+00> : vector<8x192xf32>
    %163 = tpu.matmul %160, %162, %cst_149 {dimension_numbers = #tpu.dot_dimension_numbers<[1], [0], [0], [1], [0, 0, 1, 1], [], []>} : vector<8x96xbf16>, vector<96x192xbf16>, vector<8x192xf32> -> vector<8x192xf32>
    %164 = arith.addf %159, %163 : vector<8x192xf32>
    %c32_150 = arith.constant 32 : index
    %c0_151 = arith.constant 0 : index
    %165 = vector.load %arg15[%c32_150, %c0_151] : memref<72x96xbf16, #tpu.memory_space<vmem>>, vector<8x96xbf16>
    %c4_152 = arith.constant 4 : index
    %c0_153 = arith.constant 0 : index
    %c0_154 = arith.constant 0 : index
    %166 = vector.load %arg8[%c4_152, %c0_153, %c0_154] : memref<9x96x192xbf16, #tpu.memory_space<vmem>>, vector<1x96x192xbf16>
    %167 = vector.shape_cast %166 : vector<1x96x192xbf16> to vector<96x192xbf16>
    %cst_155 = arith.constant dense<0.000000e+00> : vector<8x192xf32>
    %168 = tpu.matmul %165, %167, %cst_155 {dimension_numbers = #tpu.dot_dimension_numbers<[1], [0], [0], [1], [0, 0, 1, 1], [], []>} : vector<8x96xbf16>, vector<96x192xbf16>, vector<8x192xf32> -> vector<8x192xf32>
    %169 = arith.addf %164, %168 : vector<8x192xf32>
    %c40 = arith.constant 40 : index
    %c0_156 = arith.constant 0 : index
    %170 = vector.load %arg15[%c40, %c0_156] : memref<72x96xbf16, #tpu.memory_space<vmem>>, vector<8x96xbf16>
    %c5_157 = arith.constant 5 : index
    %c0_158 = arith.constant 0 : index
    %c0_159 = arith.constant 0 : index
    %171 = vector.load %arg8[%c5_157, %c0_158, %c0_159] : memref<9x96x192xbf16, #tpu.memory_space<vmem>>, vector<1x96x192xbf16>
    %172 = vector.shape_cast %171 : vector<1x96x192xbf16> to vector<96x192xbf16>
    %cst_160 = arith.constant dense<0.000000e+00> : vector<8x192xf32>
    %173 = tpu.matmul %170, %172, %cst_160 {dimension_numbers = #tpu.dot_dimension_numbers<[1], [0], [0], [1], [0, 0, 1, 1], [], []>} : vector<8x96xbf16>, vector<96x192xbf16>, vector<8x192xf32> -> vector<8x192xf32>
    %174 = arith.addf %169, %173 : vector<8x192xf32>
    %c48_161 = arith.constant 48 : index
    %c0_162 = arith.constant 0 : index
    %175 = vector.load %arg15[%c48_161, %c0_162] : memref<72x96xbf16, #tpu.memory_space<vmem>>, vector<8x96xbf16>
    %c6_163 = arith.constant 6 : index
    %c0_164 = arith.constant 0 : index
    %c0_165 = arith.constant 0 : index
    %176 = vector.load %arg8[%c6_163, %c0_164, %c0_165] : memref<9x96x192xbf16, #tpu.memory_space<vmem>>, vector<1x96x192xbf16>
    %177 = vector.shape_cast %176 : vector<1x96x192xbf16> to vector<96x192xbf16>
    %cst_166 = arith.constant dense<0.000000e+00> : vector<8x192xf32>
    %178 = tpu.matmul %175, %177, %cst_166 {dimension_numbers = #tpu.dot_dimension_numbers<[1], [0], [0], [1], [0, 0, 1, 1], [], []>} : vector<8x96xbf16>, vector<96x192xbf16>, vector<8x192xf32> -> vector<8x192xf32>
    %179 = arith.addf %174, %178 : vector<8x192xf32>
    %c56 = arith.constant 56 : index
    %c0_167 = arith.constant 0 : index
    %180 = vector.load %arg15[%c56, %c0_167] : memref<72x96xbf16, #tpu.memory_space<vmem>>, vector<8x96xbf16>
    %c7_168 = arith.constant 7 : index
    %c0_169 = arith.constant 0 : index
    %c0_170 = arith.constant 0 : index
    %181 = vector.load %arg8[%c7_168, %c0_169, %c0_170] : memref<9x96x192xbf16, #tpu.memory_space<vmem>>, vector<1x96x192xbf16>
    %182 = vector.shape_cast %181 : vector<1x96x192xbf16> to vector<96x192xbf16>
    %cst_171 = arith.constant dense<0.000000e+00> : vector<8x192xf32>
    %183 = tpu.matmul %180, %182, %cst_171 {dimension_numbers = #tpu.dot_dimension_numbers<[1], [0], [0], [1], [0, 0, 1, 1], [], []>} : vector<8x96xbf16>, vector<96x192xbf16>, vector<8x192xf32> -> vector<8x192xf32>
    %184 = arith.addf %179, %183 : vector<8x192xf32>
    %c64_172 = arith.constant 64 : index
    %c0_173 = arith.constant 0 : index
    %185 = vector.load %arg15[%c64_172, %c0_173] : memref<72x96xbf16, #tpu.memory_space<vmem>>, vector<8x96xbf16>
    %c8_174 = arith.constant 8 : index
    %c0_175 = arith.constant 0 : index
    %c0_176 = arith.constant 0 : index
    %186 = vector.load %arg8[%c8_174, %c0_175, %c0_176] : memref<9x96x192xbf16, #tpu.memory_space<vmem>>, vector<1x96x192xbf16>
    %187 = vector.shape_cast %186 : vector<1x96x192xbf16> to vector<96x192xbf16>
    %cst_177 = arith.constant dense<0.000000e+00> : vector<8x192xf32>
    %188 = tpu.matmul %185, %187, %cst_177 {dimension_numbers = #tpu.dot_dimension_numbers<[1], [0], [0], [1], [0, 0, 1, 1], [], []>} : vector<8x96xbf16>, vector<96x192xbf16>, vector<8x192xf32> -> vector<8x192xf32>
    %189 = arith.addf %184, %188 : vector<8x192xf32>
    %c0_178 = arith.constant 0 : index
    %c0_179 = arith.constant 0 : index
    %190 = vector.load %arg11[%c0_178, %c0_179] : memref<4x360xf32, #tpu.memory_space<vmem>>, vector<1x192xf32>
    %191 = vector.broadcast %190 : vector<1x192xf32> to vector<8x192xf32>
    %192 = arith.addf %189, %191 : vector<8x192xf32>
    %cst_180 = arith.constant 0.000000e+00 : f32
    %193 = vector.broadcast %cst_180 : f32 to vector<8x192xf32>
    %194 = arith.maximumf %192, %193 : vector<8x192xf32>
    %c1_181 = arith.constant 1 : index
    %c0_182 = arith.constant 0 : index
    %195 = vector.load %arg11[%c1_181, %c0_182] : memref<4x360xf32, #tpu.memory_space<vmem>>, vector<1x192xf32>
    %196 = vector.broadcast %195 : vector<1x192xf32> to vector<8x192xf32>
    %197 = arith.mulf %194, %196 : vector<8x192xf32>
    %c2_183 = arith.constant 2 : index
    %c0_184 = arith.constant 0 : index
    %198 = vector.load %arg11[%c2_183, %c0_184] : memref<4x360xf32, #tpu.memory_space<vmem>>, vector<1x192xf32>
    %199 = vector.broadcast %198 : vector<1x192xf32> to vector<8x192xf32>
    %200 = arith.addf %197, %199 : vector<8x192xf32>
    %201 = vector.extract_strided_slice %200 {offsets = [0, 0], sizes = [4, 192], strides = [1, 1]} : vector<8x192xf32> to vector<4x192xf32>
    %cst_185 = arith.constant dense<0.000000e+00> : vector<192xf32>
    %202 = vector.multi_reduction <add>, %201, %cst_185 [0] : vector<4x192xf32> to vector<192xf32>
    %203 = vector.shape_cast %202 : vector<192xf32> to vector<1x192xf32>
    %cst_186 = arith.constant 2.500000e-01 : f32
    %204 = vector.broadcast %cst_186 : f32 to vector<1x192xf32>
    %205 = arith.mulf %203, %204 : vector<1x192xf32>
    %206 = arith.truncf %205 : vector<1x192xf32> to vector<1x192xbf16>
    %c0_187 = arith.constant 0 : index
    %c0_188 = arith.constant 0 : index
    %207 = vector.load %arg9[%c0_187, %c0_188] : memref<192x96xbf16, #tpu.memory_space<vmem>>, vector<192x96xbf16>
    %cst_189 = arith.constant dense<0.000000e+00> : vector<1x96xf32>
    %208 = tpu.matmul %206, %207, %cst_189 {dimension_numbers = #tpu.dot_dimension_numbers<[1], [0], [0], [1], [0, 0, 1, 1], [], []>} : vector<1x192xbf16>, vector<192x96xbf16>, vector<1x96xf32> -> vector<1x96xf32>
    %c3_190 = arith.constant 3 : index
    %c0_191 = arith.constant 0 : index
    %209 = vector.load %arg11[%c3_190, %c0_191] : memref<4x360xf32, #tpu.memory_space<vmem>>, vector<1x96xf32>
    %210 = arith.addf %208, %209 : vector<1x96xf32>
    %cst_192 = arith.constant 0.000000e+00 : f32
    %211 = vector.broadcast %cst_192 : f32 to vector<1x96xf32>
    %212 = arith.maximumf %210, %211 : vector<1x96xf32>
    %213 = arith.truncf %212 : vector<1x96xf32> to vector<1x96xbf16>
    %c0_193 = arith.constant 0 : index
    %c0_194 = arith.constant 0 : index
    %214 = vector.load %arg10[%c0_193, %c0_194] : memref<96x30xbf16, #tpu.memory_space<vmem>>, vector<96x30xbf16>
    %cst_195 = arith.constant dense<0.000000e+00> : vector<1x30xf32>
    %215 = tpu.matmul %213, %214, %cst_195 {dimension_numbers = #tpu.dot_dimension_numbers<[1], [0], [0], [1], [0, 0, 1, 1], [], []>} : vector<1x96xbf16>, vector<96x30xbf16>, vector<1x30xf32> -> vector<1x30xf32>
    %c3_196 = arith.constant 3 : index
    %c96_197 = arith.constant 96 : index
    %216 = vector.load %arg11[%c3_196, %c96_197] : memref<4x360xf32, #tpu.memory_space<vmem>>, vector<1x30xf32>
    %217 = arith.addf %215, %216 : vector<1x30xf32>
    %c0_198 = arith.constant 0 : index
    %c0_199 = arith.constant 0 : index
    %c0_200 = arith.constant 0 : index
    %218 = vector.load %arg12[%c0_198, %c0_199, %c0_200] : memref<1x1x30xf32, #tpu.memory_space<vmem>>, vector<1x1x30xf32>
    %219 = vector.shape_cast %218 : vector<1x1x30xf32> to vector<1x30xf32>
    %220 = vector.shape_cast %217 : vector<1x30xf32> to vector<1x1x30xf32>
    tpu.vector_store %arg12[%c0_198, %c0_199, %c0_200], %220 {strides = array<i32>} : memref<1x1x30xf32, #tpu.memory_space<vmem>>, vector<1x1x30xf32>,
    return
  }
  func.func @transform_0(%arg0: i32) -> (i32, i32, i32) {
    %c0_i32 = arith.constant 0 : i32
    %c0_i32_0 = arith.constant 0 : i32
    %c0_i32_1 = arith.constant 0 : i32
    return %arg0, %c0_i32, %c0_i32_0 : i32, i32, i32
  }
  func.func @transform_1(%arg0: i32) -> (i32, i32) {
    %c0_i32 = arith.constant 0 : i32
    %c0_i32_0 = arith.constant 0 : i32
    %c0_i32_1 = arith.constant 0 : i32
    return %c0_i32, %c0_i32_0 : i32, i32
  }
  func.func @transform_2(%arg0: i32) -> (i32, i32) {
    %c0_i32 = arith.constant 0 : i32
    %c0_i32_0 = arith.constant 0 : i32
    %c0_i32_1 = arith.constant 0 : i32
    return %c0_i32, %c0_i32_0 : i32, i32
  }
  func.func @transform_3(%arg0: i32) -> (i32, i32, i32) {
    %c0_i32 = arith.constant 0 : i32
    %c0_i32_0 = arith.constant 0 : i32
    %c0_i32_1 = arith.constant 0 : i32
    %c0_i32_2 = arith.constant 0 : i32
    return %c0_i32, %c0_i32_0, %c0_i32_1 : i32, i32, i32
  }
  func.func @transform_4(%arg0: i32) -> (i32, i32) {
    %c0_i32 = arith.constant 0 : i32
    %c0_i32_0 = arith.constant 0 : i32
    %c0_i32_1 = arith.constant 0 : i32
    return %c0_i32, %c0_i32_0 : i32, i32
  }
  func.func @transform_5(%arg0: i32) -> (i32, i32, i32) {
    %c0_i32 = arith.constant 0 : i32
    %c0_i32_0 = arith.constant 0 : i32
    %c0_i32_1 = arith.constant 0 : i32
    %c0_i32_2 = arith.constant 0 : i32
    return %c0_i32, %c0_i32_0, %c0_i32_1 : i32, i32, i32
  }
  func.func @transform_6(%arg0: i32) -> (i32, i32) {
    %c0_i32 = arith.constant 0 : i32
    %c0_i32_0 = arith.constant 0 : i32
    %c0_i32_1 = arith.constant 0 : i32
    return %c0_i32, %c0_i32_0 : i32, i32
  }
  func.func @transform_7(%arg0: i32) -> (i32, i32, i32) {
    %c0_i32 = arith.constant 0 : i32
    %c0_i32_0 = arith.constant 0 : i32
    %c0_i32_1 = arith.constant 0 : i32
    %c0_i32_2 = arith.constant 0 : i32
    return %c0_i32, %c0_i32_0, %c0_i32_1 : i32, i32, i32
  }
  func.func @transform_8(%arg0: i32) -> (i32, i32) {
    %c0_i32 = arith.constant 0 : i32
    %c0_i32_0 = arith.constant 0 : i32
    %c0_i32_1 = arith.constant 0 : i32
    return %c0_i32, %c0_i32_0 : i32, i32
  }
  func.func @transform_9(%arg0: i32) -> (i32, i32) {
    %c0_i32 = arith.constant 0 : i32
    %c0_i32_0 = arith.constant 0 : i32
    %c0_i32_1 = arith.constant 0 : i32
    return %c0_i32, %c0_i32_0 : i32, i32
  }
  func.func @transform_10(%arg0: i32) -> (i32, i32) {
    %c0_i32 = arith.constant 0 : i32
    %c0_i32_0 = arith.constant 0 : i32
    %c0_i32_1 = arith.constant 0 : i32
    return %c0_i32, %c0_i32_0 : i32, i32
  }
  func.func @transform_11(%arg0: i32) -> (i32, i32, i32) {
    %c0_i32 = arith.constant 0 : i32
    %c0_i32_0 = arith.constant 0 : i32
    %c0_i32_1 = arith.constant 0 : i32
    return %arg0, %c0_i32, %c0_i32_0 : i32, i32, i32
  }
}

</mosaic_0001>

<llo_original>
// kernel: tile.78
$region0: #{tile.78}
  #allocation0 [shape = 's32[1]{0}', space=sflag, size = 0x4, scoped, tag = 'scoped memory for tile.78']
  %s0 = inlined_call_operand.vmem [shape: f32[64], index: 0, kind: input, shape index: {}]
  %s1 = inlined_call_operand.vmem [shape: f32[3,64], index: 1, kind: output, shape index: {}]
  // Predicated region
  $region2: #{tile.78} parent=0 // pred_check
    _
  $region3: #{tile.78} parent=0 // pred_check_branch
    %3 = sbr.rel (0) target = $region5
  $region4: #{tile.78} parent=0 // pred_region
    _
  $region5: #{tile.78} parent=0 // pred_fallthru
    _
  %v4 = vld [vmem:[%s0] ss:$0 sm:$0xff]
  %5 = vst [vmem:[%s1] sm:$0xf] %v4

// kernel: tile.79
$region0: #{tile.79}
  %s0 = inlined_call_operand.vmem [shape: f32[3,64], index: 0, kind: input, shape index: {}]
  %s1 = inlined_call_operand.vmem [shape: f32[192], index: 1, kind: output, shape index: {}]
  $region1: #{tile.79} parent=0
    #allocation0 [shape = 'u8[4096]{0}', space=vmem, size = 0x1000, scoped, tag = 'scoped mem for output reshape']
    #allocation1 [shape = 'u8[4096]{0}', space=vmem, size = 0x1000, scoped, tag = 'scoped mem for input reshape']
    %s3 = sshllo.u32 0, 4
    %v4 = vld [vmem:[%s0] sm:%s3]
    %5 = vst [vmem:[#allocation1] sm:%s3] %v4
    %s6 = smov 3
    %v7 = vld [vmem:[#allocation1] ss:$2 sm:%s6]
    %vm8 = vcmask 523264
    %9 = vst.msk [vmem:[#allocation0] sm:$0x3] %vm8, %v7
    %s10 = scalar_lea.vmem [#allocation1], 1
    %v11 = vld [vmem:[%s10] sm:$0x1]
    %12 = vrot.lane.b32.xlu0 %v11, 64
    %v13 = vpop.permute.xlu0 %12
    %vm14 = vcmask 1048064
    %15 = vst.msk [vmem:[#allocation0] sm:$0x1] %vm14, %v13
    %s17 = sshllo.u32 0, 2
    %v19 = vld [vmem:[#allocation0] sm:%s17]
    %s20 = sshllo.u32 0, 2
    %21 = vst [vmem:[%s1] sm:%s20] %v19

// kernel: tile.108
$region0: #{tile.108}
  #allocation0 [shape = 's32[1]{0}', space=sflag, size = 0x4, scoped, tag = 'scoped memory for tile.108']
  %s0 = inlined_call_operand.vmem [shape: f32[16], index: 0, kind: input, shape index: {}]
  %s1 = inlined_call_operand.vmem [shape: f32[3,16], index: 1, kind: output, shape index: {}]
  // Predicated region
  $region2: #{tile.108} parent=0 // pred_check
    _
  $region3: #{tile.108} parent=0 // pred_check_branch
    %3 = sbr.rel (0) target = $region5
  $region4: #{tile.108} parent=0 // pred_region
    _
  $region5: #{tile.108} parent=0 // pred_fallthru
    _
  %v4 = vld [vmem:[%s0] ss:$0 sm:$0xff]
  %5 = vst [vmem:[%s1] sm:$0xf] %v4

// kernel: tile.109
$region0: #{tile.109}
  %s0 = inlined_call_operand.vmem [shape: f32[3,16], index: 0, kind: input, shape index: {}]
  %s1 = inlined_call_operand.vmem [shape: f32[48], index: 1, kind: output, shape index: {}]
  $region1: #{tile.109} parent=0
    #allocation0 [shape = 'u8[4096]{0}', space=vmem, size = 0x1000, scoped, tag = 'scoped mem for output reshape']
    #allocation1 [shape = 'u8[4096]{0}', space=vmem, size = 0x1000, scoped, tag = 'scoped mem for input reshape']
    %s3 = sshllo.u32 0, 4
    %v4 = vld [vmem:[%s0] sm:%s3]
    %5 = vst [vmem:[#allocation1] sm:%s3] %v4
    %v6 = vld [vmem:[#allocation1] sm:$0x1]
    %vm7 = vcmask 130048
    %8 = vst.msk [vmem:[#allocation0] sm:$0x1] %vm7, %v6
    %s9 = scalar_lea.vmem [#allocation1], 2
    %v10 = vld [vmem:[%s9] sm:$0x1]
    %11 = vrot.lane.b32.xlu0 %v10, 32
    %v12 = vpop.permute.xlu0 %11
    %vm13 = vcmask 392448
    %14 = vst.msk [vmem:[#allocation0] sm:$0x1] %vm13, %v12
    %s15 = scalar_lea.vmem [#allocation1], 1
    %v16 = vld [vmem:[%s15] sm:$0x1]
    %17 = vrot.lane.b32.xlu0 %v16, 16
    %v18 = vpop.permute.xlu0 %17
    %vm19 = vcmask 261248
    %20 = vst.msk [vmem:[#allocation0] sm:$0x1] %vm19, %v18
    %s22 = sshllo.u32 0, 1
    %v24 = vld [vmem:[#allocation0] sm:%s22]
    %s25 = sshllo.u32 0, 1
    %26 = vst [vmem:[%s1] sm:%s25] %v24

// kernel: tile.124
$region0: #{tile.124}
  %s0 = inlined_call_operand.vmem [shape: f32[3,8], index: 0, kind: input, shape index: {}]
  %s1 = inlined_call_operand.vmem [shape: f32[24], index: 1, kind: output, shape index: {}]
  $region1: #{tile.124} parent=0
    #allocation0 [shape = 'u8[4096]{0}', space=vmem, size = 0x1000, scoped, tag = 'scoped mem for output reshape']
    #allocation1 [shape = 'u8[4096]{0}', space=vmem, size = 0x1000, scoped, tag = 'scoped mem for input reshape']
    %s3 = sshllo.u32 0, 4
    %v4 = vld [vmem:[%s0] sm:%s3]
    %5 = vst [vmem:[#allocation1] sm:%s3] %v4
    %v6 = vld [vmem:[#allocation1] sm:$0x1]
    %vm7 = vcmask 64512
    %8 = vst.msk [vmem:[#allocation0] sm:$0x1] %vm7, %v6
    %s9 = scalar_lea.vmem [#allocation1], 2
    %v10 = vld [vmem:[%s9] sm:$0x1]
    %11 = vrot.lane.b32.xlu0 %v10, 16
    %v12 = vpop.permute.xlu0 %11
    %vm13 = vcmask 195712
    %14 = vst.msk [vmem:[#allocation0] sm:$0x1] %vm13, %v12
    %s15 = scalar_lea.vmem [#allocation1], 1
    %v16 = vld [vmem:[%s15] sm:$0x1]
    %17 = vrot.lane.b32.xlu0 %v16, 8
    %v18 = vpop.permute.xlu0 %17
    %vm19 = vcmask 130112
    %20 = vst.msk [vmem:[#allocation0] sm:$0x1] %vm19, %v18
    %s22 = sshllo.u32 0, 1
    %v24 = vld [vmem:[#allocation0] sm:%s22]
    %s25 = sshllo.u32 0, 1
    %26 = vst [vmem:[%s1] sm:%s25] %v24

// kernel: tile.123
$region0: #{tile.123}
  #allocation0 [shape = 's32[1]{0}', space=sflag, size = 0x4, scoped, tag = 'scoped memory for tile.123']
  %s0 = inlined_call_operand.vmem [shape: f32[8], index: 0, kind: input, shape index: {}]
  %s1 = inlined_call_operand.vmem [shape: f32[3,8], index: 1, kind: output, shape index: {}]
  // Predicated region
  $region2: #{tile.123} parent=0 // pred_check
    _
  $region3: #{tile.123} parent=0 // pred_check_branch
    %3 = sbr.rel (0) target = $region5
  $region4: #{tile.123} parent=0 // pred_region
    _
  $region5: #{tile.123} parent=0 // pred_fallthru
    _
  %v4 = vld [vmem:[%s0] ss:$0 sm:$0xff]
  %5 = vst [vmem:[%s1] sm:$0xf] %v4

// kernel: tile.94
$region0: #{tile.94}
  %s0 = inlined_call_operand.vmem [shape: f32[3,32], index: 0, kind: input, shape index: {}]
  %s1 = inlined_call_operand.vmem [shape: f32[96], index: 1, kind: output, shape index: {}]
  $region1: #{tile.94} parent=0
    #allocation0 [shape = 'u8[4096]{0}', space=vmem, size = 0x1000, scoped, tag = 'scoped mem for output reshape']
    #allocation1 [shape = 'u8[4096]{0}', space=vmem, size = 0x1000, scoped, tag = 'scoped mem for input reshape']
    %s3 = sshllo.u32 0, 4
    %v4 = vld [vmem:[%s0] sm:%s3]
    %5 = vst [vmem:[#allocation1] sm:%s3] %v4
    %v6 = vld [vmem:[#allocation1] sm:$0x1]
    %vm7 = vcmask 261120
    %8 = vst.msk [vmem:[#allocation0] sm:$0x1] %vm7, %v6
    %s9 = scalar_lea.vmem [#allocation1], 2
    %v10 = vld [vmem:[%s9] sm:$0x1]
    %11 = vrot.lane.b32.xlu0 %v10, 64
    %v12 = vpop.permute.xlu0 %11
    %vm13 = vcmask 785920
    %14 = vst.msk [vmem:[#allocation0] sm:$0x1] %vm13, %v12
    %s15 = scalar_lea.vmem [#allocation1], 1
    %v16 = vld [vmem:[%s15] sm:$0x1]
    %17 = vrot.lane.b32.xlu0 %v16, 32
    %v18 = vpop.permute.xlu0 %17
    %vm19 = vcmask 523520
    %20 = vst.msk [vmem:[#allocation0] sm:$0x1] %vm19, %v18
    %s22 = sshllo.u32 0, 1
    %v24 = vld [vmem:[#allocation0] sm:%s22]
    %s25 = sshllo.u32 0, 1
    %26 = vst [vmem:[%s1] sm:%s25] %v24

// kernel: tile.93
$region0: #{tile.93}
  #allocation0 [shape = 's32[1]{0}', space=sflag, size = 0x4, scoped, tag = 'scoped memory for tile.93']
  %s0 = inlined_call_operand.vmem [shape: f32[32], index: 0, kind: input, shape index: {}]
  %s1 = inlined_call_operand.vmem [shape: f32[3,32], index: 1, kind: output, shape index: {}]
  // Predicated region
  $region2: #{tile.93} parent=0 // pred_check
    _
  $region3: #{tile.93} parent=0 // pred_check_branch
    %3 = sbr.rel (0) target = $region5
  $region4: #{tile.93} parent=0 // pred_region
    _
  $region5: #{tile.93} parent=0 // pred_fallthru
    _
  %v4 = vld [vmem:[%s0] ss:$0 sm:$0xff]
  %5 = vst [vmem:[%s1] sm:$0xf] %v4

// kernel: tile.138
$region0: #{tile.138}
  #allocation0 [shape = 's32[1]{0}', space=sflag, size = 0x4, scoped, tag = 'scoped memory for tile.138']
  %s0 = inlined_call_operand.vmem [shape: f32[10], index: 0, kind: input, shape index: {}]
  %s1 = inlined_call_operand.vmem [shape: f32[3,10], index: 1, kind: output, shape index: {}]
  // Predicated region
  $region2: #{tile.138} parent=0 // pred_check
    _
  $region3: #{tile.138} parent=0 // pred_check_branch
    %3 = sbr.rel (0) target = $region5
  $region4: #{tile.138} parent=0 // pred_region
    _
  $region5: #{tile.138} parent=0 // pred_fallthru
    _
  %v4 = vld [vmem:[%s0] ss:$0 sm:$0xff]
  %5 = vst [vmem:[%s1] sm:$0xf] %v4

// kernel: tile.139
$region0: #{tile.139}
  %s0 = inlined_call_operand.vmem [shape: f32[3,10], index: 0, kind: input, shape index: {}]
  %s1 = inlined_call_operand.vmem [shape: f32[30], index: 1, kind: output, shape index: {}]
  $region1: #{tile.139} parent=0
    #allocation0 [shape = 'u8[4096]{0}', space=vmem, size = 0x1000, scoped, tag = 'scoped mem for output reshape']
    #allocation1 [shape = 'u8[4096]{0}', space=vmem, size = 0x1000, scoped, tag = 'scoped mem for input reshape']
    %s3 = sshllo.u32 0, 4
    %v4 = vld [vmem:[%s0] sm:%s3]
    %5 = vst [vmem:[#allocation1] sm:%s3] %v4
    %v6 = vld [vmem:[#allocation1] sm:$0x1]
    %vm7 = vcmask 80896
    %8 = vst.msk [vmem:[#allocation0] sm:$0x1] %vm7, %v6
    %s9 = scalar_lea.vmem [#allocation1], 2
    %v10 = vld [vmem:[%s9] sm:$0x1]
    %11 = vrot.lane.b32.xlu0 %v10, 20
    %v12 = vpop.permute.xlu0 %11
    %vm13 = vcmask 244896
    %14 = vst.msk [vmem:[#allocation0] sm:$0x1] %vm13, %v12
    %s15 = scalar_lea.vmem [#allocation1], 1
    %v16 = vld [vmem:[%s15] sm:$0x1]
    %17 = vrot.lane.b32.xlu0 %v16, 10
    %v18 = vpop.permute.xlu0 %17
    %vm19 = vcmask 162896
    %20 = vst.msk [vmem:[#allocation0] sm:$0x1] %vm19, %v18
    %s22 = sshllo.u32 0, 1
    %v24 = vld [vmem:[#allocation0] sm:%s22]
    %s25 = sshllo.u32 0, 1
    %26 = vst [vmem:[%s1] sm:%s25] %v24

// kernel: audio_classifier_forward.1
$region0: #{audio_classifier_forward.1}
  #allocation0 [shape = 'u32[]', space=smem, size = 0x4, offset = 0x4, fixed_abs, tag = 'smem constant byte address 0x4 - core index']
  #allocation1 [shape = 'u32[144,128]{1,0:T(1,128)}', space=vmem, size = 0x12000, scoped, tag = 'internal scratch']
  #allocation2 [shape = 'bf16[576,24]{1,0:T(16,128)(2,1)}', space=vmem, size = 0x24000, scoped, tag = 'scratch operand']
  #allocation3 [shape = 'bf16[144,48]{1,0:T(16,128)(2,1)}', space=vmem, size = 0x9000, scoped, tag = 'scratch operand']
  #allocation4 [shape = 'bf16[72,96]{1,0:T(8,128)(2,1)}', space=vmem, size = 0x4800, scoped, tag = 'scratch operand']
  %s0 = inlined_call_operand.vmem [shape: bf16[2,256,96], index: 0, kind: input, shape index: {}]
  %s1 = inlined_call_operand.vmem [shape: bf16[96,24], index: 1, kind: input, shape index: {}]
  %s2 = inlined_call_operand.vmem [shape: bf16[576,256], index: 2, kind: input, shape index: {}]
  %s3 = inlined_call_operand.vmem [shape: bf16[9,24,48], index: 3, kind: input, shape index: {}]
  %s4 = inlined_call_operand.vmem [shape: bf16[144,64], index: 4, kind: input, shape index: {}]
  %s5 = inlined_call_operand.vmem [shape: bf16[9,48,96], index: 5, kind: input, shape index: {}]
  %s6 = inlined_call_operand.vmem [shape: bf16[72,16], index: 6, kind: input, shape index: {}]
  %s7 = inlined_call_operand.vmem [shape: bf16[9,96,192], index: 7, kind: input, shape index: {}]
  %s8 = inlined_call_operand.vmem [shape: bf16[192,96], index: 8, kind: input, shape index: {}]
  %s9 = inlined_call_operand.vmem [shape: bf16[96,30], index: 9, kind: input, shape index: {}]
  %s10 = inlined_call_operand.vmem [shape: f32[4,360], index: 10, kind: input, shape index: {}]
  %s11 = inlined_call_operand.vmem [shape: f32[2,1,30], index: 11, kind: output, shape index: {}]
  %s12 = sld [smem:[#allocation0]]
  $region77: #{audio_classifier_forward.1} parent=0
    _
  %s14 = ssub.s32 1, %s12
  %s15 = scalar_select 0, %s14, %s12
  loop: start=0, step=1, limit=4
  $region2: #{audio_classifier_forward.1} parent=0 // loop_pre_header
    _
  $region3: #{audio_classifier_forward.1} parent=0 // loop_header
    %s17 = sphi 0, %s21
    %p18 = scmp.ge.s32.totalorder %s17, 4
    %s27 = sphi 0, %s29
    %s30 = sphi 0, %s27
    %s31 = sphi 0, %s30
    %s47 = sphi 0, %s31
    %s51 = sphi 0, %s51
    %s53 = sphi 0, %s51
    %s54 = sphi 0, %s53
    %s68 = sphi 0, %s54
    %s72 = sphi 0, %s72
    %s74 = sphi 0, %s72
    %s75 = sphi 0, %s74
    %s89 = sphi 0, %s75
    %s93 = sphi 0, %s93
    %s95 = sphi 0, %s93
    %s96 = sphi 0, %s95
    %s110 = sphi 0, %s96
    %s114 = sphi 0, %s114
    %s116 = sphi 0, %s114
    %s117 = sphi 0, %s116
    %s131 = sphi 0, %s117
    %s135 = sphi 0, %s135
    %s137 = sphi 0, %s135
    %s138 = sphi 0, %s137
    %s152 = sphi 0, %s138
    %s156 = sphi 0, %s156
    %s158 = sphi 0, %s156
    %s159 = sphi 0, %s158
    %s173 = sphi 0, %s159
    %s177 = sphi 0, %s177
    %s179 = sphi 0, %s177
    %s180 = sphi 0, %s179
    %s194 = sphi 0, %s180
    %s198 = sphi 0, %s198
    %s200 = sphi 0, %s198
    %s201 = sphi 0, %s200
    %s215 = sphi 0, %s201
    %s219 = sphi 0, %s219
    %s221 = sphi 0, %s219
    %s222 = sphi 0, %s221
    %s236 = sphi 0, %s222
    %s240 = sphi 0, %s240
    %s242 = sphi 0, %s240
    %s243 = sphi 0, %s242
    %s257 = sphi 0, %s243
    %s263 = sphi 0, %s265
    %s266 = sphi 0, %s263
    %s267 = sphi 0, %s266
    %s283 = sphi 0, %s267
  $region4: #{audio_classifier_forward.1} parent=0 // loop_header_branch
    %20 = sbr.rel (%p18) target = $region8
  $region5: #{audio_classifier_forward.1} parent=0 // loop_body
    %s22 = ssub.s32 %s17, 1
    %s23 = ssub.s32 %s17, 2
    %s24 = sadd.s32 %s17, 1
    %s25 = ssub.s32 %s17, %s24
    %p26 = scmp.eq.s32.totalorder %s25, 0
    %s28 = sadd.s32 %s27, 1
    %s29 = scalar_select %p26, %s27, %s28
    %p32 = pneg %p26
    %p33 = scmp.eq.s32.totalorder %s17, 1
    %p34 = por %p32, %p33
    %p35 = scmp.ne.s32.totalorder %s27, %s30
    %p36 = scmp.eq.s32.totalorder %s17, 0
    %p37 = por %p35, %p36
    %p38 = scmp.ne.s32.totalorder %s27, %s30
    %p39 = scmp.eq.s32.totalorder %s22, 1
    %p40 = por %p38, %p39
    %p41 = scmp.ne.s32.totalorder %s30, %s31
    %p42 = scmp.eq.s32.totalorder %s22, 0
    %p43 = por %p41, %p42
    %p44 = scmp.ne.s32.totalorder %s30, %s31
    %p45 = scmp.eq.s32.totalorder %s23, 1
    %p46 = por %p44, %p45
    %p48 = scmp.ne.s32.totalorder %s31, %s47
    %p49 = scmp.eq.s32.totalorder %s23, 0
    %p50 = por %p48, %p49
    %s52 = sadd.s32 %s51, 1
    %p55 = scmp.eq.s32.totalorder %s17, 1
    %p56 = scmp.ne.s32.totalorder %s51, %s53
    %p57 = scmp.eq.s32.totalorder %s17, 0
    %p58 = por %p56, %p57
    %p59 = scmp.ne.s32.totalorder %s51, %s53
    %p60 = scmp.eq.s32.totalorder %s22, 1
    %p61 = por %p59, %p60
    %p62 = scmp.ne.s32.totalorder %s53, %s54
    %p63 = scmp.eq.s32.totalorder %s22, 0
    %p64 = por %p62, %p63
    %p65 = scmp.ne.s32.totalorder %s53, %s54
    %p66 = scmp.eq.s32.totalorder %s23, 1
    %p67 = por %p65, %p66
    %p69 = scmp.ne.s32.totalorder %s54, %s68
    %p70 = scmp.eq.s32.totalorder %s23, 0
    %p71 = por %p69, %p70
    %s73 = sadd.s32 %s72, 1
    %p76 = scmp.eq.s32.totalorder %s17, 1
    %p77 = scmp.ne.s32.totalorder %s72, %s74
    %p78 = scmp.eq.s32.totalorder %s17, 0
    %p79 = por %p77, %p78
    %p80 = scmp.ne.s32.totalorder %s72, %s74
    %p81 = scmp.eq.s32.totalorder %s22, 1
    %p82 = por %p80, %p81
    %p83 = scmp.ne.s32.totalorder %s74, %s75
    %p84 = scmp.eq.s32.totalorder %s22, 0
    %p85 = por %p83, %p84
    %p86 = scmp.ne.s32.totalorder %s74, %s75
    %p87 = scmp.eq.s32.totalorder %s23, 1
    %p88 = por %p86, %p87
    %p90 = scmp.ne.s32.totalorder %s75, %s89
    %p91 = scmp.eq.s32.totalorder %s23, 0
    %p92 = por %p90, %p91
    %s94 = sadd.s32 %s93, 1
    %p97 = scmp.eq.s32.totalorder %s17, 1
    %p98 = scmp.ne.s32.totalorder %s93, %s95
    %p99 = scmp.eq.s32.totalorder %s17, 0
    %p100 = por %p98, %p99
    %p101 = scmp.ne.s32.totalorder %s93, %s95
    %p102 = scmp.eq.s32.totalorder %s22, 1
    %p103 = por %p101, %p102
    %p104 = scmp.ne.s32.totalorder %s95, %s96
    %p105 = scmp.eq.s32.totalorder %s22, 0
    %p106 = por %p104, %p105
    %p107 = scmp.ne.s32.totalorder %s95, %s96
    %p108 = scmp.eq.s32.totalorder %s23, 1
    %p109 = por %p107, %p108
    %p111 = scmp.ne.s32.totalorder %s96, %s110
    %p112 = scmp.eq.s32.totalorder %s23, 0
    %p113 = por %p111, %p112
    %s115 = sadd.s32 %s114, 1
    %p118 = scmp.eq.s32.totalorder %s17, 1
    %p119 = scmp.ne.s32.totalorder %s114, %s116
    %p120 = scmp.eq.s32.totalorder %s17, 0
    %p121 = por %p119, %p120
    %p122 = scmp.ne.s32.totalorder %s114, %s116
    %p123 = scmp.eq.s32.totalorder %s22, 1
    %p124 = por %p122, %p123
    %p125 = scmp.ne.s32.totalorder %s116, %s117
    %p126 = scmp.eq.s32.totalorder %s22, 0
    %p127 = por %p125, %p126
    %p128 = scmp.ne.s32.totalorder %s116, %s117
    %p129 = scmp.eq.s32.totalorder %s23, 1
    %p130 = por %p128, %p129
    %p132 = scmp.ne.s32.totalorder %s117, %s131
    %p133 = scmp.eq.s32.totalorder %s23, 0
    %p134 = por %p132, %p133
    %s136 = sadd.s32 %s135, 1
    %p139 = scmp.eq.s32.totalorder %s17, 1
    %p140 = scmp.ne.s32.totalorder %s135, %s137
    %p141 = scmp.eq.s32.totalorder %s17, 0
    %p142 = por %p140, %p141
    %p143 = scmp.ne.s32.totalorder %s135, %s137
    %p144 = scmp.eq.s32.totalorder %s22, 1
    %p145 = por %p143, %p144
    %p146 = scmp.ne.s32.totalorder %s137, %s138
    %p147 = scmp.eq.s32.totalorder %s22, 0
    %p148 = por %p146, %p147
    %p149 = scmp.ne.s32.totalorder %s137, %s138
    %p150 = scmp.eq.s32.totalorder %s23, 1
    %p151 = por %p149, %p150
    %p153 = scmp.ne.s32.totalorder %s138, %s152
    %p154 = scmp.eq.s32.totalorder %s23, 0
    %p155 = por %p153, %p154
    %s157 = sadd.s32 %s156, 1
    %p160 = scmp.eq.s32.totalorder %s17, 1
    %p161 = scmp.ne.s32.totalorder %s156, %s158
    %p162 = scmp.eq.s32.totalorder %s17, 0
    %p163 = por %p161, %p162
    %p164 = scmp.ne.s32.totalorder %s156, %s158
    %p165 = scmp.eq.s32.totalorder %s22, 1
    %p166 = por %p164, %p165
    %p167 = scmp.ne.s32.totalorder %s158, %s159
    %p168 = scmp.eq.s32.totalorder %s22, 0
    %p169 = por %p167, %p168
    %p170 = scmp.ne.s32.totalorder %s158, %s159
    %p171 = scmp.eq.s32.totalorder %s23, 1
    %p172 = por %p170, %p171
    %p174 = scmp.ne.s32.totalorder %s159, %s173
    %p175 = scmp.eq.s32.totalorder %s23, 0
    %p176 = por %p174, %p175
    %s178 = sadd.s32 %s177, 1
    %p181 = scmp.eq.s32.totalorder %s17, 1
    %p182 = scmp.ne.s32.totalorder %s177, %s179
    %p183 = scmp.eq.s32.totalorder %s17, 0
    %p184 = por %p182, %p183
    %p185 = scmp.ne.s32.totalorder %s177, %s179
    %p186 = scmp.eq.s32.totalorder %s22, 1
    %p187 = por %p185, %p186
    %p188 = scmp.ne.s32.totalorder %s179, %s180
    %p189 = scmp.eq.s32.totalorder %s22, 0
    %p190 = por %p188, %p189
    %p191 = scmp.ne.s32.totalorder %s179, %s180
    %p192 = scmp.eq.s32.totalorder %s23, 1
    %p193 = por %p191, %p192
    %p195 = scmp.ne.s32.totalorder %s180, %s194
    %p196 = scmp.eq.s32.totalorder %s23, 0
    %p197 = por %p195, %p196
    %s199 = sadd.s32 %s198, 1
    %p202 = scmp.eq.s32.totalorder %s17, 1
    %p203 = scmp.ne.s32.totalorder %s198, %s200
    %p204 = scmp.eq.s32.totalorder %s17, 0
    %p205 = por %p203, %p204
    %p206 = scmp.ne.s32.totalorder %s198, %s200
    %p207 = scmp.eq.s32.totalorder %s22, 1
    %p208 = por %p206, %p207
    %p209 = scmp.ne.s32.totalorder %s200, %s201
    %p210 = scmp.eq.s32.totalorder %s22, 0
    %p211 = por %p209, %p210
    %p212 = scmp.ne.s32.totalorder %s200, %s201
    %p213 = scmp.eq.s32.totalorder %s23, 1
    %p214 = por %p212, %p213
    %p216 = scmp.ne.s32.totalorder %s201, %s215
    %p217 = scmp.eq.s32.totalorder %s23, 0
    %p218 = por %p216, %p217
    %s220 = sadd.s32 %s219, 1
    %p223 = scmp.eq.s32.totalorder %s17, 1
    %p224 = scmp.ne.s32.totalorder %s219, %s221
    %p225 = scmp.eq.s32.totalorder %s17, 0
    %p226 = por %p224, %p225
    %p227 = scmp.ne.s32.totalorder %s219, %s221
    %p228 = scmp.eq.s32.totalorder %s22, 1
    %p229 = por %p227, %p228
    %p230 = scmp.ne.s32.totalorder %s221, %s222
    %p231 = scmp.eq.s32.totalorder %s22, 0
    %p232 = por %p230, %p231
    %p233 = scmp.ne.s32.totalorder %s221, %s222
    %p234 = scmp.eq.s32.totalorder %s23, 1
    %p235 = por %p233, %p234
    %p237 = scmp.ne.s32.totalorder %s222, %s236
    %p238 = scmp.eq.s32.totalorder %s23, 0
    %p239 = por %p237, %p238
    %s241 = sadd.s32 %s240, 1
    %p244 = scmp.eq.s32.totalorder %s17, 1
    %p245 = scmp.ne.s32.totalorder %s240, %s242
    %p246 = scmp.eq.s32.totalorder %s17, 0
    %p247 = por %p245, %p246
    %p248 = scmp.ne.s32.totalorder %s240, %s242
    %p249 = scmp.eq.s32.totalorder %s22, 1
    %p250 = por %p248, %p249
    %p251 = scmp.ne.s32.totalorder %s242, %s243
    %p252 = scmp.eq.s32.totalorder %s22, 0
    %p253 = por %p251, %p252
    %p254 = scmp.ne.s32.totalorder %s242, %s243
    %p255 = scmp.eq.s32.totalorder %s23, 1
    %p256 = por %p254, %p255
    %p258 = scmp.ne.s32.totalorder %s243, %s257
    %p259 = scmp.eq.s32.totalorder %s23, 0
    %p260 = por %p258, %p259
    %s261 = ssub.s32 %s17, %s24
    %p262 = scmp.eq.s32.totalorder %s261, 0
    %s264 = sadd.s32 %s263, 1
    %s265 = scalar_select %p262, %s263, %s264
    %p268 = pneg %p262
    %p269 = scmp.eq.s32.totalorder %s17, 1
    %p270 = por %p268, %p269
    %p271 = scmp.ne.s32.totalorder %s263, %s266
    %p272 = scmp.eq.s32.totalorder %s17, 0
    %p273 = por %p271, %p272
    %p274 = scmp.ne.s32.totalorder %s263, %s266
    %p275 = scmp.eq.s32.totalorder %s22, 1
    %p276 = por %p274, %p275
    %p277 = scmp.ne.s32.totalorder %s266, %s267
    %p278 = scmp.eq.s32.totalorder %s22, 0
    %p279 = por %p277, %p278
    %p280 = scmp.ne.s32.totalorder %s266, %s267
    %p281 = scmp.eq.s32.totalorder %s23, 1
    %p282 = por %p280, %p281
    %p284 = scmp.ne.s32.totalorder %s267, %s283
    %p285 = scmp.eq.s32.totalorder %s23, 0
    %p286 = por %p284, %p285
    %p287 = scmp.le.s32.totalorder 1, %s17
    %p288 = scmp.lt.s32.totalorder %s17, 3
    %p289 = pnand %p287, %p288
    %p290 = pneg %p289
    // Predicated region
    $region9: #{audio_classifier_forward.1} parent=5 // pred_check
      _
    $region10: #{audio_classifier_forward.1} parent=5 // pred_check_branch
      %292 = sbr.rel (%p289) target = $region12
    $region11: #{audio_classifier_forward.1} parent=5 // pred_region
      %s293 = ssub.s32 %s17, 1
      // Predicated region
      $region13: #{audio_classifier_forward.1} parent=11 // pred_check
        %p294 = pneg %p64
      $region14: #{audio_classifier_forward.1} parent=11 // pred_check_branch
        %296 = sbr.rel (%p294) target = $region16
      $region15: #{audio_classifier_forward.1} parent=11 // pred_region
        _
      $region16: #{audio_classifier_forward.1} parent=11 // pred_fallthru
        _
      // Predicated region
      $region17: #{audio_classifier_forward.1} parent=11 // pred_check
        %p297 = pneg %p85
      $region18: #{audio_classifier_forward.1} parent=11 // pred_check_branch
        %299 = sbr.rel (%p297) target = $region20
      $region19: #{audio_classifier_forward.1} parent=11 // pred_region
        _
      $region20: #{audio_classifier_forward.1} parent=11 // pred_fallthru
        _
      // Predicated region
      $region21: #{audio_classifier_forward.1} parent=11 // pred_check
        %p300 = pneg %p106
      $region22: #{audio_classifier_forward.1} parent=11 // pred_check_branch
        %302 = sbr.rel (%p300) target = $region24
      $region23: #{audio_classifier_forward.1} parent=11 // pred_region
        _
      $region24: #{audio_classifier_forward.1} parent=11 // pred_fallthru
        _
      // Predicated region
      $region25: #{audio_classifier_forward.1} parent=11 // pred_check
        %p303 = pneg %p127
      $region26: #{audio_classifier_forward.1} parent=11 // pred_check_branch
        %305 = sbr.rel (%p303) target = $region28
      $region27: #{audio_classifier_forward.1} parent=11 // pred_region
        _
      $region28: #{audio_classifier_forward.1} parent=11 // pred_fallthru
        _
      // Predicated region
      $region29: #{audio_classifier_forward.1} parent=11 // pred_check
        %p306 = pneg %p148
      $region30: #{audio_classifier_forward.1} parent=11 // pred_check_branch
        %308 = sbr.rel (%p306) target = $region32
      $region31: #{audio_classifier_forward.1} parent=11 // pred_region
        _
      $region32: #{audio_classifier_forward.1} parent=11 // pred_fallthru
        _
      // Predicated region
      $region33: #{audio_classifier_forward.1} parent=11 // pred_check
        %p309 = pneg %p169
      $region34: #{audio_classifier_forward.1} parent=11 // pred_check_branch
        %311 = sbr.rel (%p309) target = $region36
      $region35: #{audio_classifier_forward.1} parent=11 // pred_region
        _
      $region36: #{audio_classifier_forward.1} parent=11 // pred_fallthru
        _
      // Predicated region
      $region37: #{audio_classifier_forward.1} parent=11 // pred_check
        %p312 = pneg %p190
      $region38: #{audio_classifier_forward.1} parent=11 // pred_check_branch
        %314 = sbr.rel (%p312) target = $region40
      $region39: #{audio_classifier_forward.1} parent=11 // pred_region
        _
      $region40: #{audio_classifier_forward.1} parent=11 // pred_fallthru
        _
      // Predicated region
      $region41: #{audio_classifier_forward.1} parent=11 // pred_check
        %p315 = pneg %p211
      $region42: #{audio_classifier_forward.1} parent=11 // pred_check_branch
        %317 = sbr.rel (%p315) target = $region44
      $region43: #{audio_classifier_forward.1} parent=11 // pred_region
        _
      $region44: #{audio_classifier_forward.1} parent=11 // pred_fallthru
        _
      // Predicated region
      $region45: #{audio_classifier_forward.1} parent=11 // pred_check
        %p318 = pneg %p232
      $region46: #{audio_classifier_forward.1} parent=11 // pred_check_branch
        %320 = sbr.rel (%p318) target = $region48
      $region47: #{audio_classifier_forward.1} parent=11 // pred_region
        _
      $region48: #{audio_classifier_forward.1} parent=11 // pred_fallthru
        _
      // Predicated region
      $region49: #{audio_classifier_forward.1} parent=11 // pred_check
        %p321 = pneg %p253
      $region50: #{audio_classifier_forward.1} parent=11 // pred_check_branch
        %323 = sbr.rel (%p321) target = $region52
      $region51: #{audio_classifier_forward.1} parent=11 // pred_region
        _
      $region52: #{audio_classifier_forward.1} parent=11 // pred_fallthru
        _
    $region12: #{audio_classifier_forward.1} parent=5 // pred_fallthru
      _
    %p324 = scmp.lt.s32.totalorder %s17, 2
    // Predicated region
    $region53: #{audio_classifier_forward.1} parent=5 // pred_check
      %p325 = pneg %p324
    $region54: #{audio_classifier_forward.1} parent=5 // pred_check_branch
      %327 = sbr.rel (%p325) target = $region56
    $region55: #{audio_classifier_forward.1} parent=5 // pred_region
      // Predicated region
      $region57: #{audio_classifier_forward.1} parent=55 // pred_check
        %p328 = pneg %p37
      $region58: #{audio_classifier_forward.1} parent=55 // pred_check_branch
        %330 = sbr.rel (%p328) target = $region60
      $region59: #{audio_classifier_forward.1} parent=55 // pred_region
        %p331 = scmp.lt.s32.totalorder %s17, 1
        %s332 = scalar_select %p331, %s17, 1
        %s333 = smul.addr %s332, 32
        %s334 = smul.addr %s333, 4
        %s335 = scalar_lea.vmem %s0, %s334
      $region60: #{audio_classifier_forward.1} parent=55 // pred_fallthru
        _
    $region56: #{audio_classifier_forward.1} parent=5 // pred_fallthru
      _
    %p336 = scmp.le.s32.totalorder 1, %s17
    %p337 = scmp.lt.s32.totalorder %s17, 3
    %p338 = pnand %p336, %p337
    %p339 = pneg %p338
    // Predicated region
    $region61: #{audio_classifier_forward.1} parent=5 // pred_check
      _
    $region62: #{audio_classifier_forward.1} parent=5 // pred_check_branch
      %341 = sbr.rel (%p338) target = $region64
    $region63: #{audio_classifier_forward.1} parent=5 // pred_region
      %s342 = ssub.s32 %s17, 1
      %p343 = scmp.lt.s32.totalorder %s22, 1
      %s344 = scalar_select %p343, %s22, 1
      %s345 = smul.addr %s344, 32
      %s346 = smul.addr %s345, 4
      %s347 = scalar_lea.vmem %s0, %s346
      %p348 = pneg %p43
      %p349 = pneg %p40
      %p350 = pneg %p64
      %p351 = pneg %p61
      %p352 = pneg %p85
      %p353 = pneg %p82
      %p354 = pneg %p106
      %p355 = pneg %p103
      %p356 = pneg %p127
      %p357 = pneg %p124
      %p358 = pneg %p148
      %p359 = pneg %p145
      %p360 = pneg %p169
      %p361 = pneg %p166
      %p362 = pneg %p190
      %p363 = pneg %p187
      %p364 = pneg %p211
      %p365 = pneg %p208
      %p366 = pneg %p232
      %p367 = pneg %p229
      %p368 = pneg %p253
      %p369 = pneg %p250
      %p370 = pneg %p279
      %p371 = pneg %p276
      %p372 = scmp.lt.s32.totalorder %s22, 1
      %s373 = scalar_select %p372, %s22, 1
      %s374 = scalar_lea.vmem %s11, %s373
      %p375 = scmp.lt.s32.totalorder %s22, 1
      %s376 = scalar_select %p375, %s22, 1
      %s377 = smul.addr %s376, 32
      %s378 = smul.addr %s377, 4
      %s379 = scalar_lea.vmem %s0, %s378
      %p380 = scmp.lt.s32.totalorder %s22, 1
      %s381 = scalar_select %p380, %s22, 1
      %s382 = scalar_lea.vmem %s11, %s381
      %v384 = vld [vmem:[%s379] sm:$0xf]
      %v385 = vld [vmem:[%s379 + $0x4] sm:$0xf]
      %v386 = vld [vmem:[%s379 + $0x8] sm:$0xf]
      %v387 = vld [vmem:[%s379 + $0xc] sm:$0xf]
      %v388 = vld [vmem:[%s379 + $0x10] sm:$0xf]
      %v389 = vld [vmem:[%s379 + $0x14] sm:$0xf]
      %v390 = vld [vmem:[%s379 + $0x18] sm:$0xf]
      %v391 = vld [vmem:[%s379 + $0x1c] sm:$0xf]
      %v392 = vld [vmem:[%s379 + $0x20] sm:$0xf]
      %v393 = vld [vmem:[%s379 + $0x24] sm:$0xf]
      %v394 = vld [vmem:[%s379 + $0x28] sm:$0xf]
      %v395 = vld [vmem:[%s379 + $0x2c] sm:$0xf]
      %v396 = vld [vmem:[%s379 + $0x30] sm:$0xf]
      %v397 = vld [vmem:[%s379 + $0x34] sm:$0xf]
      %v398 = vld [vmem:[%s379 + $0x38] sm:$0xf]
      %v399 = vld [vmem:[%s379 + $0x3c] sm:$0xf]
      %v400 = vld [vmem:[%s379 + $0x40] sm:$0xf]
      %v401 = vld [vmem:[%s379 + $0x44] sm:$0xf]
      %v402 = vld [vmem:[%s379 + $0x48] sm:$0xf]
      %v403 = vld [vmem:[%s379 + $0x4c] sm:$0xf]
      %v404 = vld [vmem:[%s379 + $0x50] sm:$0xf]
      %v405 = vld [vmem:[%s379 + $0x54] sm:$0xf]
      %v406 = vld [vmem:[%s379 + $0x58] sm:$0xf]
      %v407 = vld [vmem:[%s379 + $0x5c] sm:$0xf]
      %v408 = vld [vmem:[%s379 + $0x60] sm:$0xf]
      %v409 = vld [vmem:[%s379 + $0x64] sm:$0xf]
      %v410 = vld [vmem:[%s379 + $0x68] sm:$0xf]
      %v411 = vld [vmem:[%s379 + $0x6c] sm:$0xf]
      %v412 = vld [vmem:[%s379 + $0x70] sm:$0xf]
      %v413 = vld [vmem:[%s379 + $0x74] sm:$0xf]
      %v414 = vld [vmem:[%s379 + $0x78] sm:$0xf]
      %v415 = vld [vmem:[%s379 + $0x7c] sm:$0xf]
      %v416 = vld [vmem:[%s1] sm:$0xf]
      %v417 = vld [vmem:[%s1 + $0x4] sm:$0xf]
      %v418 = vld [vmem:[%s1 + $0x8] sm:$0xf]
      %v419 = vld [vmem:[%s1 + $0xc] sm:$0xf]
      %v420 = vld [vmem:[%s1 + $0x10] sm:$0xf]
      %v421 = vld [vmem:[%s1 + $0x14] sm:$0xf]
      %v422 = vld [vmem:[%s1 + $0x18] sm:$0xf]
      %v423 = vld [vmem:[%s1 + $0x1c] sm:$0xf]
      %v424 = vld [vmem:[%s1 + $0x20] sm:$0xf]
      %v425 = vld [vmem:[%s1 + $0x24] sm:$0xf]
      %v426 = vld [vmem:[%s1 + $0x28] sm:$0xf]
      %v427 = vld [vmem:[%s1 + $0x2c] sm:$0xf]
      %v428 = vld [vmem:[%s10 + $0x8] sm:$0x1]
      %v429 = vlaneseq
      %v430 = vshrl.u32 %v429, 7
      %v431 = vsub.s32 0, %v430
      %v432 = vrot.slane %v428, %v431
      %v465 = vunpack.c.l.b16 %v384
      %v466 = vunpack.c.l.b16 %v385
      %v467 = vunpack.c.l.b16 %v386
      %v468 = vunpack.c.l.b16 %v387
      %v469 = vunpack.c.l.b16 %v388
      %v470 = vunpack.c.l.b16 %v389
      %v471 = vunpack.c.l.b16 %v390
      %v472 = vunpack.c.l.b16 %v391
      %v473 = vunpack.c.l.b16 %v392
      %v474 = vunpack.c.l.b16 %v393
      %v475 = vunpack.c.l.b16 %v394
      %v476 = vunpack.c.l.b16 %v395
      %v477 = vunpack.c.l.b16 %v396
      %v478 = vunpack.c.l.b16 %v397
      %v479 = vunpack.c.l.b16 %v398
      %v480 = vunpack.c.l.b16 %v399
      %v481 = vunpack.c.l.b16 %v400
      %v482 = vunpack.c.l.b16 %v401
      %v483 = vunpack.c.l.b16 %v402
      %v484 = vunpack.c.l.b16 %v403
      %v485 = vunpack.c.l.b16 %v404
      %v486 = vunpack.c.l.b16 %v405
      %v487 = vunpack.c.l.b16 %v406
      %v488 = vunpack.c.l.b16 %v407
      %v489 = vunpack.c.l.b16 %v408
      %v490 = vunpack.c.l.b16 %v409
      %v491 = vunpack.c.l.b16 %v410
      %v492 = vunpack.c.l.b16 %v411
      %v493 = vunpack.c.l.b16 %v412
      %v494 = vunpack.c.l.b16 %v413
      %v495 = vunpack.c.l.b16 %v414
      %v496 = vunpack.c.l.b16 %v415
      %v497 = vpack.c.b16 %v466, %v465
      %v498 = vpack.c.b16 %v468, %v467
      %v499 = vpack.c.b16 %v470, %v469
      %v500 = vpack.c.b16 %v472, %v471
      %v501 = vpack.c.b16 %v474, %v473
      %v502 = vpack.c.b16 %v476, %v475
      %v503 = vpack.c.b16 %v478, %v477
      %v504 = vpack.c.b16 %v480, %v479
      %v505 = vpack.c.b16 %v482, %v481
      %v506 = vpack.c.b16 %v484, %v483
      %v507 = vpack.c.b16 %v486, %v485
      %v508 = vpack.c.b16 %v488, %v487
      %v509 = vpack.c.b16 %v490, %v489
      %v510 = vpack.c.b16 %v492, %v491
      %v511 = vpack.c.b16 %v494, %v493
      %v512 = vpack.c.b16 %v496, %v495
      %v525 = vunpack.c.l.b16 %v416
      %v526 = vunpack.c.l.b16 %v417
      %v527 = vunpack.c.l.b16 %v418
      %v528 = vunpack.c.l.b16 %v419
      %v529 = vunpack.c.l.b16 %v420
      %v530 = vunpack.c.l.b16 %v421
      %v531 = vunpack.c.l.b16 %v422
      %v532 = vunpack.c.l.b16 %v423
      %v533 = vunpack.c.l.b16 %v424
      %v534 = vunpack.c.l.b16 %v425
      %v535 = vunpack.c.l.b16 %v426
      %v536 = vunpack.c.l.b16 %v427
      %v537 = vpack.c.b16 %v526, %v525
      %v538 = vpack.c.b16 %v528, %v527
      %v539 = vpack.c.b16 %v530, %v529
      %v540 = vpack.c.b16 %v532, %v531
      %v541 = vpack.c.b16 %v534, %v533
      %v542 = vpack.c.b16 %v536, %v535
      %550 = vrot.lane.b32.xlu0 %v432, 48
      %v551 = vpop.permute.xlu0 %550
      %vm553 = vcmask 785408
      %v555 = vsel %vm553, %v497, 0
      %v558 = vsel %vm553, %v498, 0
      %v561 = vsel %vm553, %v499, 0
      %v564 = vsel %vm553, %v500, 0
      %v567 = vsel %vm553, %v501, 0
      %v570 = vsel %vm553, %v502, 0
      %v573 = vsel %vm553, %v503, 0
      %v576 = vsel %vm553, %v504, 0
      %v579 = vsel %vm553, %v505, 0
      %v582 = vsel %vm553, %v506, 0
      %v585 = vsel %vm553, %v507, 0
      %v588 = vsel %vm553, %v508, 0
      %v591 = vsel %vm553, %v509, 0
      %v594 = vsel %vm553, %v510, 0
      %v597 = vsel %vm553, %v511, 0
      %v600 = vsel %vm553, %v512, 0
      %602 = vmatprep.subr.bf16.mxu0 0
      %603 = vmatpush1.bf16.msra.mxu0 %v537
      %604 = vmatprep.subr.bf16.mxu0 0
      %605 = vmatpush1.bf16.msra.mxu0 %v538
      %606 = vmatprep.subr.bf16.mxu0 0
      %607 = vmatpush1.bf16.msra.mxu0 %v539
      %608 = vmatprep.subr.bf16.mxu0 0
      %609 = vmatpush1.bf16.msra.mxu0 %v540
      %610 = vmatprep.subr.bf16.mxu0 0
      %611 = vmatpush1.bf16.msra.mxu0 %v541
      %612 = vmatprep.subr.bf16.mxu0 0
      %613 = vmatpush1.bf16.msra.mxu0 %v542
      %614 = vmatprep.subr.bf16.mxu0 0
      %615 = vmatpush1.bf16.msra.mxu0 0
      %616 = vmatprep.subr.bf16.mxu0 0
      %617 = vmatpush1.bf16.msra.mxu0 0
      %618 = vmatprep.subr.bf16.mxu0 0
      %619 = vmatpush1.bf16.msra.mxu0 0
      %620 = vmatprep.subr.bf16.mxu0 0
      %621 = vmatpush1.bf16.msra.mxu0 0
      %622 = vmatprep.subr.bf16.mxu0 0
      %623 = vmatpush1.bf16.msra.mxu0 0
      %624 = vmatprep.subr.bf16.mxu0 0
      %625 = vmatpush1.bf16.msra.mxu0 0
      %626 = vmatprep.subr.bf16.mxu0 0
      %627 = vmatpush1.bf16.msra.mxu0 0
      %628 = vmatprep.subr.bf16.mxu0 0
      %629 = vmatpush1.bf16.msra.mxu0 0
      %630 = vmatprep.subr.bf16.mxu0 0
      %631 = vmatpush1.bf16.msra.mxu0 0
      %632 = vmatprep.subr.bf16.mxu0 0
      %633 = vmatpush1.bf16.msra.mxu0 0
      %634 = vmatprep.mubr.bf16.mxu0 0
      %635 = vmatmul.mubr.bf16.gmra.mrb[0].mxu0 %v555
      %v636 = vpop.f32.mrb[0].mxu0
      %v637 = vadd.f32 %v551, %v636
      %v638 = vpop.f32.mrb[0].mxu0
      %v639 = vpop.f32.mrb[0].mxu0
      %v640 = vadd.f32 %v551, %v639
      %v641 = vpop.f32.mrb[0].mxu0
      %642 = vmatprep.mubr.bf16.mxu0 0
      %643 = vmatmul.mubr.bf16.gmra.mrb[0].mxu0 %v558
      %v644 = vpop.f32.mrb[0].mxu0
      %v645 = vadd.f32 %v551, %v644
      %v646 = vpop.f32.mrb[0].mxu0
      %v647 = vpop.f32.mrb[0].mxu0
      %v648 = vadd.f32 %v551, %v647
      %v649 = vpop.f32.mrb[0].mxu0
      %650 = vmatprep.mubr.bf16.mxu0 0
      %651 = vmatmul.mubr.bf16.gmra.mrb[0].mxu0 %v561
      %v652 = vpop.f32.mrb[0].mxu0
      %v653 = vadd.f32 %v551, %v652
      %v654 = vpop.f32.mrb[0].mxu0
      %v655 = vpop.f32.mrb[0].mxu0
      %v656 = vadd.f32 %v551, %v655
      %v657 = vpop.f32.mrb[0].mxu0
      %658 = vmatprep.mubr.bf16.mxu0 0
      %659 = vmatmul.mubr.bf16.gmra.mrb[0].mxu0 %v564
      %v660 = vpop.f32.mrb[0].mxu0
      %v661 = vadd.f32 %v551, %v660
      %v662 = vpop.f32.mrb[0].mxu0
      %v663 = vpop.f32.mrb[0].mxu0
      %v664 = vadd.f32 %v551, %v663
      %v665 = vpop.f32.mrb[0].mxu0
      %666 = vmatprep.mubr.bf16.mxu0 0
      %667 = vmatmul.mubr.bf16.gmra.mrb[0].mxu0 %v567
      %v668 = vpop.f32.mrb[0].mxu0
      %v669 = vadd.f32 %v551, %v668
      %v670 = vpop.f32.mrb[0].mxu0
      %v671 = vpop.f32.mrb[0].mxu0
      %v672 = vadd.f32 %v551, %v671
      %v673 = vpop.f32.mrb[0].mxu0
      %674 = vmatprep.mubr.bf16.mxu0 0
      %675 = vmatmul.mubr.bf16.gmra.mrb[0].mxu0 %v570
      %v676 = vpop.f32.mrb[0].mxu0
      %v677 = vadd.f32 %v551, %v676
      %v678 = vpop.f32.mrb[0].mxu0
      %v679 = vpop.f32.mrb[0].mxu0
      %v680 = vadd.f32 %v551, %v679
      %v681 = vpop.f32.mrb[0].mxu0
      %682 = vmatprep.mubr.bf16.mxu0 0
      %683 = vmatmul.mubr.bf16.gmra.mrb[0].mxu0 %v573
      %v684 = vpop.f32.mrb[0].mxu0
      %v685 = vadd.f32 %v551, %v684
      %v686 = vpop.f32.mrb[0].mxu0
      %v687 = vpop.f32.mrb[0].mxu0
      %v688 = vadd.f32 %v551, %v687
      %v689 = vpop.f32.mrb[0].mxu0
      %690 = vmatprep.mubr.bf16.mxu0 0
      %691 = vmatmul.mubr.bf16.gmra.mrb[0].mxu0 %v576
      %v692 = vpop.f32.mrb[0].mxu0
      %v693 = vadd.f32 %v551, %v692
      %v694 = vpop.f32.mrb[0].mxu0
      %v695 = vpop.f32.mrb[0].mxu0
      %v696 = vadd.f32 %v551, %v695
      %v697 = vpop.f32.mrb[0].mxu0
      %698 = vmatprep.mubr.bf16.mxu0 0
      %699 = vmatmul.mubr.bf16.gmra.mrb[0].mxu0 %v579
      %v700 = vpop.f32.mrb[0].mxu0
      %v701 = vadd.f32 %v551, %v700
      %v702 = vpop.f32.mrb[0].mxu0
      %v703 = vpop.f32.mrb[0].mxu0
      %v704 = vadd.f32 %v551, %v703
      %v705 = vpop.f32.mrb[0].mxu0
      %706 = vmatprep.mubr.bf16.mxu0 0
      %707 = vmatmul.mubr.bf16.gmra.mrb[0].mxu0 %v582
      %v708 = vpop.f32.mrb[0].mxu0
      %v709 = vadd.f32 %v551, %v708
      %v710 = vpop.f32.mrb[0].mxu0
      %v711 = vpop.f32.mrb[0].mxu0
      %v712 = vadd.f32 %v551, %v711
      %v713 = vpop.f32.mrb[0].mxu0
      %714 = vmatprep.mubr.bf16.mxu0 0
      %715 = vmatmul.mubr.bf16.gmra.mrb[0].mxu0 %v585
      %v716 = vpop.f32.mrb[0].mxu0
      %v717 = vadd.f32 %v551, %v716
      %v718 = vpop.f32.mrb[0].mxu0
      %v719 = vpop.f32.mrb[0].mxu0
      %v720 = vadd.f32 %v551, %v719
      %v721 = vpop.f32.mrb[0].mxu0
      %722 = vmatprep.mubr.bf16.mxu0 0
      %723 = vmatmul.mubr.bf16.gmra.mrb[0].mxu0 %v588
      %v724 = vpop.f32.mrb[0].mxu0
      %v725 = vadd.f32 %v551, %v724
      %v726 = vpop.f32.mrb[0].mxu0
      %v727 = vpop.f32.mrb[0].mxu0
      %v728 = vadd.f32 %v551, %v727
      %v729 = vpop.f32.mrb[0].mxu0
      %730 = vmatprep.mubr.bf16.mxu0 0
      %731 = vmatmul.mubr.bf16.gmra.mrb[0].mxu0 %v591
      %v732 = vpop.f32.mrb[0].mxu0
      %v733 = vadd.f32 %v551, %v732
      %v734 = vpop.f32.mrb[0].mxu0
      %v735 = vpop.f32.mrb[0].mxu0
      %v736 = vadd.f32 %v551, %v735
      %v737 = vpop.f32.mrb[0].mxu0
      %738 = vmatprep.mubr.bf16.mxu0 0
      %739 = vmatmul.mubr.bf16.gmra.mrb[0].mxu0 %v594
      %v740 = vpop.f32.mrb[0].mxu0
      %v741 = vadd.f32 %v551, %v740
      %v742 = vpop.f32.mrb[0].mxu0
      %v743 = vpop.f32.mrb[0].mxu0
      %v744 = vadd.f32 %v551, %v743
      %v745 = vpop.f32.mrb[0].mxu0
      %746 = vmatprep.mubr.bf16.mxu0 0
      %747 = vmatmul.mubr.bf16.gmra.mrb[0].mxu0 %v597
      %v748 = vpop.f32.mrb[0].mxu0
      %v749 = vadd.f32 %v551, %v748
      %v750 = vpop.f32.mrb[0].mxu0
      %v751 = vpop.f32.mrb[0].mxu0
      %v752 = vadd.f32 %v551, %v751
      %v753 = vpop.f32.mrb[0].mxu0
      %754 = vmatprep.mubr.bf16.mxu0 0
      %755 = vmatmul.mubr.bf16.gmra.mrb[0].mxu0 %v600
      %v756 = vpop.f32.mrb[0].mxu0
      %v757 = vadd.f32 %v551, %v756
      %v758 = vpop.f32.mrb[0].mxu0
      %v759 = vpop.f32.mrb[0].mxu0
      %v760 = vadd.f32 %v551, %v759
      %v761 = vpop.f32.mrb[0].mxu0
      %762 = vdwg.mxu0
      %v763 = vmax.f32 %v637, 0.0
      %v764 = vmax.f32 %v640, 0.0
      %v765 = vmax.f32 %v645, 0.0
      %v766 = vmax.f32 %v648, 0.0
      %v767 = vmax.f32 %v653, 0.0
      %v768 = vmax.f32 %v656, 0.0
      %v769 = vmax.f32 %v661, 0.0
      %v770 = vmax.f32 %v664, 0.0
      %v771 = vmax.f32 %v669, 0.0
      %v772 = vmax.f32 %v672, 0.0
      %v773 = vmax.f32 %v677, 0.0
      %v774 = vmax.f32 %v680, 0.0
      %v775 = vmax.f32 %v685, 0.0
      %v776 = vmax.f32 %v688, 0.0
      %v777 = vmax.f32 %v693, 0.0
      %v778 = vmax.f32 %v696, 0.0
      %v779 = vmax.f32 %v701, 0.0
      %v780 = vmax.f32 %v704, 0.0
      %v781 = vmax.f32 %v709, 0.0
      %v782 = vmax.f32 %v712, 0.0
      %v783 = vmax.f32 %v717, 0.0
      %v784 = vmax.f32 %v720, 0.0
      %v785 = vmax.f32 %v725, 0.0
      %v786 = vmax.f32 %v728, 0.0
      %v787 = vmax.f32 %v733, 0.0
      %v788 = vmax.f32 %v736, 0.0
      %v789 = vmax.f32 %v741, 0.0
      %v790 = vmax.f32 %v744, 0.0
      %v791 = vmax.f32 %v749, 0.0
      %v792 = vmax.f32 %v752, 0.0
      %v793 = vmax.f32 %v757, 0.0
      %v794 = vmax.f32 %v760, 0.0
      %v795 = vld [vmem:[%s10 + $0x9] sm:$0x1]
      %v796 = vlaneseq
      %v797 = vshrl.u32 %v796, 7
      %v798 = vsub.s32 0, %v797
      %v799 = vrot.slane %v795, %v798
      %801 = vrot.lane.b32.xlu0 %v799, 48
      %v802 = vpop.permute.xlu0 %801
      %v804 = vmul.f32 %v763, %v802
      %v805 = vmul.f32 %v764, %v802
      %v806 = vmul.f32 %v765, %v802
      %v807 = vmul.f32 %v766, %v802
      %v808 = vmul.f32 %v767, %v802
      %v809 = vmul.f32 %v768, %v802
      %v810 = vmul.f32 %v769, %v802
      %v811 = vmul.f32 %v770, %v802
      %v812 = vmul.f32 %v771, %v802
      %v813 = vmul.f32 %v772, %v802
      %v814 = vmul.f32 %v773, %v802
      %v815 = vmul.f32 %v774, %v802
      %v816 = vmul.f32 %v775, %v802
      %v817 = vmul.f32 %v776, %v802
      %v818 = vmul.f32 %v777, %v802
      %v819 = vmul.f32 %v778, %v802
      %v820 = vmul.f32 %v779, %v802
      %v821 = vmul.f32 %v780, %v802
      %v822 = vmul.f32 %v781, %v802
      %v823 = vmul.f32 %v782, %v802
      %v824 = vmul.f32 %v783, %v802
      %v825 = vmul.f32 %v784, %v802
      %v826 = vmul.f32 %v785, %v802
      %v827 = vmul.f32 %v786, %v802
      %v828 = vmul.f32 %v787, %v802
      %v829 = vmul.f32 %v788, %v802
      %v830 = vmul.f32 %v789, %v802
      %v831 = vmul.f32 %v790, %v802
      %v832 = vmul.f32 %v791, %v802
      %v833 = vmul.f32 %v792, %v802
      %v834 = vmul.f32 %v793, %v802
      %v835 = vmul.f32 %v794, %v802
      %v836 = vld [vmem:[%s10 + $0xa] sm:$0x1]
      %v837 = vlaneseq
      %v838 = vshrl.u32 %v837, 7
      %v839 = vsub.s32 0, %v838
      %v840 = vrot.slane %v836, %v839
      %842 = vrot.lane.b32.xlu0 %v840, 48
      %v843 = vpop.permute.xlu0 %842
      %v845 = vadd.f32 %v804, %v843
      %v846 = vadd.f32 %v805, %v843
      %v847 = vadd.f32 %v806, %v843
      %v848 = vadd.f32 %v807, %v843
      %v849 = vadd.f32 %v808, %v843
      %v850 = vadd.f32 %v809, %v843
      %v851 = vadd.f32 %v810, %v843
      %v852 = vadd.f32 %v811, %v843
      %v853 = vadd.f32 %v812, %v843
      %v854 = vadd.f32 %v813, %v843
      %v855 = vadd.f32 %v814, %v843
      %v856 = vadd.f32 %v815, %v843
      %v857 = vadd.f32 %v816, %v843
      %v858 = vadd.f32 %v817, %v843
      %v859 = vadd.f32 %v818, %v843
      %v860 = vadd.f32 %v819, %v843
      %v861 = vadd.f32 %v820, %v843
      %v862 = vadd.f32 %v821, %v843
      %v863 = vadd.f32 %v822, %v843
      %v864 = vadd.f32 %v823, %v843
      %v865 = vadd.f32 %v824, %v843
      %v866 = vadd.f32 %v825, %v843
      %v867 = vadd.f32 %v826, %v843
      %v868 = vadd.f32 %v827, %v843
      %v869 = vadd.f32 %v828, %v843
      %v870 = vadd.f32 %v829, %v843
      %v871 = vadd.f32 %v830, %v843
      %v872 = vadd.f32 %v831, %v843
      %v873 = vadd.f32 %v832, %v843
      %v874 = vadd.f32 %v833, %v843
      %v875 = vadd.f32 %v834, %v843
      %v876 = vadd.f32 %v835, %v843
      %v877 = vld [vmem:[%s2] sm:$0xff]
      %v878 = vld [vmem:[%s2 + $0x8] sm:$0xff]
      %v879 = vld [vmem:[%s2 + $0x10] sm:$0xff]
      %v880 = vld [vmem:[%s2 + $0x18] sm:$0xff]
      %v881 = vld [vmem:[%s2 + $0x20] sm:$0xff]
      %v882 = vld [vmem:[%s2 + $0x28] sm:$0xff]
      %v883 = vld [vmem:[%s2 + $0x30] sm:$0xff]
      %v884 = vld [vmem:[%s2 + $0x38] sm:$0xff]
      %v885 = vld [vmem:[%s2 + $0x40] sm:$0xff]
      %v886 = vld [vmem:[%s2 + $0x48] sm:$0xff]
      %v887 = vld [vmem:[%s2 + $0x50] sm:$0xff]
      %v888 = vld [vmem:[%s2 + $0x58] sm:$0xff]
      %v889 = vld [vmem:[%s2 + $0x60] sm:$0xff]
      %v890 = vld [vmem:[%s2 + $0x68] sm:$0xff]
      %v891 = vld [vmem:[%s2 + $0x70] sm:$0xff]
      %v892 = vld [vmem:[%s2 + $0x78] sm:$0xff]
      %v893 = vld [vmem:[%s2 + $0x80] sm:$0xff]
      %v894 = vld [vmem:[%s2 + $0x88] sm:$0xff]
      %v895 = vld [vmem:[%s2 + $0x90] sm:$0xff]
      %v896 = vld [vmem:[%s2 + $0x98] sm:$0xff]
      %v897 = vld [vmem:[%s2 + $0xa0] sm:$0xff]
      %v898 = vld [vmem:[%s2 + $0xa8] sm:$0xff]
      %v899 = vld [vmem:[%s2 + $0xb0] sm:$0xff]
      %v900 = vld [vmem:[%s2 + $0xb8] sm:$0xff]
      %v901 = vld [vmem:[%s2 + $0xc0] sm:$0xff]
      %v902 = vld [vmem:[%s2 + $0xc8] sm:$0xff]
      %v903 = vld [vmem:[%s2 + $0xd0] sm:$0xff]
      %v904 = vld [vmem:[%s2 + $0xd8] sm:$0xff]
      %v905 = vld [vmem:[%s2 + $0xe0] sm:$0xff]
      %v906 = vld [vmem:[%s2 + $0xe8] sm:$0xff]
      %v907 = vld [vmem:[%s2 + $0xf0] sm:$0xff]
      %v908 = vld [vmem:[%s2 + $0xf8] sm:$0xff]
      %v909 = vld [vmem:[%s2 + $0x100] sm:$0xff]
      %v910 = vld [vmem:[%s2 + $0x108] sm:$0xff]
      %v911 = vld [vmem:[%s2 + $0x110] sm:$0xff]
      %v912 = vld [vmem:[%s2 + $0x118] sm:$0xff]
      %v913 = vld [vmem:[%s2 + $0x120] sm:$0xff]
      %v914 = vld [vmem:[%s2 + $0x128] sm:$0xff]
      %v915 = vld [vmem:[%s2 + $0x130] sm:$0xff]
      %v916 = vld [vmem:[%s2 + $0x138] sm:$0xff]
      %v917 = vld [vmem:[%s2 + $0x140] sm:$0xff]
      %v918 = vld [vmem:[%s2 + $0x148] sm:$0xff]
      %v919 = vld [vmem:[%s2 + $0x150] sm:$0xff]
      %v920 = vld [vmem:[%s2 + $0x158] sm:$0xff]
      %v921 = vld [vmem:[%s2 + $0x160] sm:$0xff]
      %v922 = vld [vmem:[%s2 + $0x168] sm:$0xff]
      %v923 = vld [vmem:[%s2 + $0x170] sm:$0xff]
      %v924 = vld [vmem:[%s2 + $0x178] sm:$0xff]
      %v925 = vld [vmem:[%s2 + $0x180] sm:$0xff]
      %v926 = vld [vmem:[%s2 + $0x188] sm:$0xff]
      %v927 = vld [vmem:[%s2 + $0x190] sm:$0xff]
      %v928 = vld [vmem:[%s2 + $0x198] sm:$0xff]
      %v929 = vld [vmem:[%s2 + $0x1a0] sm:$0xff]
      %v930 = vld [vmem:[%s2 + $0x1a8] sm:$0xff]
      %v931 = vld [vmem:[%s2 + $0x1b0] sm:$0xff]
      %v932 = vld [vmem:[%s2 + $0x1b8] sm:$0xff]
      %v933 = vld [vmem:[%s2 + $0x1c0] sm:$0xff]
      %v934 = vld [vmem:[%s2 + $0x1c8] sm:$0xff]
      %v935 = vld [vmem:[%s2 + $0x1d0] sm:$0xff]
      %v936 = vld [vmem:[%s2 + $0x1d8] sm:$0xff]
      %v937 = vld [vmem:[%s2 + $0x1e0] sm:$0xff]
      %v938 = vld [vmem:[%s2 + $0x1e8] sm:$0xff]
      %v939 = vld [vmem:[%s2 + $0x1f0] sm:$0xff]
      %v940 = vld [vmem:[%s2 + $0x1f8] sm:$0xff]
      %v941 = vld [vmem:[%s2 + $0x200] sm:$0xff]
      %v942 = vld [vmem:[%s2 + $0x208] sm:$0xff]
      %v943 = vld [vmem:[%s2 + $0x210] sm:$0xff]
      %v944 = vld [vmem:[%s2 + $0x218] sm:$0xff]
      %v945 = vld [vmem:[%s2 + $0x220] sm:$0xff]
      %v946 = vld [vmem:[%s2 + $0x228] sm:$0xff]
      %v947 = vld [vmem:[%s2 + $0x230] sm:$0xff]
      %v948 = vld [vmem:[%s2 + $0x238] sm:$0xff]
      %v949 = vpack.c.bf16 %v846, %v845
      %v950 = vpack.c.bf16 %v848, %v847
      %v951 = vpack.c.bf16 %v850, %v849
      %v952 = vpack.c.bf16 %v852, %v851
      %v953 = vpack.c.bf16 %v854, %v853
      %v954 = vpack.c.bf16 %v856, %v855
      %v955 = vpack.c.bf16 %v858, %v857
      %v956 = vpack.c.bf16 %v860, %v859
      %v957 = vpack.c.bf16 %v862, %v861
      %v958 = vpack.c.bf16 %v864, %v863
      %v959 = vpack.c.bf16 %v866, %v865
      %v960 = vpack.c.bf16 %v868, %v867
      %v961 = vpack.c.bf16 %v870, %v869
      %v962 = vpack.c.bf16 %v872, %v871
      %v963 = vpack.c.bf16 %v874, %v873
      %v964 = vpack.c.bf16 %v876, %v875
      %v1037 = vunpack.c.l.b16 %v877
      %v1038 = vunpack.c.h.b16 %v877
      %v1039 = vunpack.c.l.b16 %v878
      %v1040 = vunpack.c.h.b16 %v878
      %v1041 = vunpack.c.l.b16 %v879
      %v1042 = vunpack.c.h.b16 %v879
      %v1043 = vunpack.c.l.b16 %v880
      %v1044 = vunpack.c.h.b16 %v880
      %v1045 = vunpack.c.l.b16 %v881
      %v1046 = vunpack.c.h.b16 %v881
      %v1047 = vunpack.c.l.b16 %v882
      %v1048 = vunpack.c.h.b16 %v882
      %v1049 = vunpack.c.l.b16 %v883
      %v1050 = vunpack.c.h.b16 %v883
      %v1051 = vunpack.c.l.b16 %v884
      %v1052 = vunpack.c.h.b16 %v884
      %v1053 = vunpack.c.l.b16 %v885
      %v1054 = vunpack.c.h.b16 %v885
      %v1055 = vunpack.c.l.b16 %v886
      %v1056 = vunpack.c.h.b16 %v886
      %v1057 = vunpack.c.l.b16 %v887
      %v1058 = vunpack.c.h.b16 %v887
      %v1059 = vunpack.c.l.b16 %v888
      %v1060 = vunpack.c.h.b16 %v888
      %v1061 = vunpack.c.l.b16 %v889
      %v1062 = vunpack.c.h.b16 %v889
      %v1063 = vunpack.c.l.b16 %v890
      %v1064 = vunpack.c.h.b16 %v890
      %v1065 = vunpack.c.l.b16 %v891
      %v1066 = vunpack.c.h.b16 %v891
      %v1067 = vunpack.c.l.b16 %v892
      %v1068 = vunpack.c.h.b16 %v892
      %v1069 = vunpack.c.l.b16 %v893
      %v1070 = vunpack.c.h.b16 %v893
      %v1071 = vunpack.c.l.b16 %v894
      %v1072 = vunpack.c.h.b16 %v894
      %v1073 = vunpack.c.l.b16 %v895
      %v1074 = vunpack.c.h.b16 %v895
      %v1075 = vunpack.c.l.b16 %v896
      %v1076 = vunpack.c.h.b16 %v896
      %v1077 = vunpack.c.l.b16 %v897
      %v1078 = vunpack.c.h.b16 %v897
      %v1079 = vunpack.c.l.b16 %v898
      %v1080 = vunpack.c.h.b16 %v898
      %v1081 = vunpack.c.l.b16 %v899
      %v1082 = vunpack.c.h.b16 %v899
      %v1083 = vunpack.c.l.b16 %v900
      %v1084 = vunpack.c.h.b16 %v900
      %v1085 = vunpack.c.l.b16 %v901
      %v1086 = vunpack.c.h.b16 %v901
      %v1087 = vunpack.c.l.b16 %v902
      %v1088 = vunpack.c.h.b16 %v902
      %v1089 = vunpack.c.l.b16 %v903
      %v1090 = vunpack.c.h.b16 %v903
      %v1091 = vunpack.c.l.b16 %v904
      %v1092 = vunpack.c.h.b16 %v904
      %v1093 = vunpack.c.l.b16 %v905
      %v1094 = vunpack.c.h.b16 %v905
      %v1095 = vunpack.c.l.b16 %v906
      %v1096 = vunpack.c.h.b16 %v906
      %v1097 = vunpack.c.l.b16 %v907
      %v1098 = vunpack.c.h.b16 %v907
      %v1099 = vunpack.c.l.b16 %v908
      %v1100 = vunpack.c.h.b16 %v908
      %v1101 = vunpack.c.l.b16 %v909
      %v1102 = vunpack.c.h.b16 %v909
      %v1103 = vunpack.c.l.b16 %v910
      %v1104 = vunpack.c.h.b16 %v910
      %v1105 = vunpack.c.l.b16 %v911
      %v1106 = vunpack.c.h.b16 %v911
      %v1107 = vunpack.c.l.b16 %v912
      %v1108 = vunpack.c.h.b16 %v912
      %v1109 = vunpack.c.l.b16 %v913
      %v1110 = vunpack.c.h.b16 %v913
      %v1111 = vunpack.c.l.b16 %v914
      %v1112 = vunpack.c.h.b16 %v914
      %v1113 = vunpack.c.l.b16 %v915
      %v1114 = vunpack.c.h.b16 %v915
      %v1115 = vunpack.c.l.b16 %v916
      %v1116 = vunpack.c.h.b16 %v916
      %v1117 = vunpack.c.l.b16 %v917
      %v1118 = vunpack.c.h.b16 %v917
      %v1119 = vunpack.c.l.b16 %v918
      %v1120 = vunpack.c.h.b16 %v918
      %v1121 = vunpack.c.l.b16 %v919
      %v1122 = vunpack.c.h.b16 %v919
      %v1123 = vunpack.c.l.b16 %v920
      %v1124 = vunpack.c.h.b16 %v920
      %v1125 = vunpack.c.l.b16 %v921
      %v1126 = vunpack.c.h.b16 %v921
      %v1127 = vunpack.c.l.b16 %v922
      %v1128 = vunpack.c.h.b16 %v922
      %v1129 = vunpack.c.l.b16 %v923
      %v1130 = vunpack.c.h.b16 %v923
      %v1131 = vunpack.c.l.b16 %v924
      %v1132 = vunpack.c.h.b16 %v924
      %v1133 = vunpack.c.l.b16 %v925
      %v1134 = vunpack.c.h.b16 %v925
      %v1135 = vunpack.c.l.b16 %v926
      %v1136 = vunpack.c.h.b16 %v926
      %v1137 = vunpack.c.l.b16 %v927
      %v1138 = vunpack.c.h.b16 %v927
      %v1139 = vunpack.c.l.b16 %v928
      %v1140 = vunpack.c.h.b16 %v928
      %v1141 = vunpack.c.l.b16 %v929
      %v1142 = vunpack.c.h.b16 %v929
      %v1143 = vunpack.c.l.b16 %v930
      %v1144 = vunpack.c.h.b16 %v930
      %v1145 = vunpack.c.l.b16 %v931
      %v1146 = vunpack.c.h.b16 %v931
      %v1147 = vunpack.c.l.b16 %v932
      %v1148 = vunpack.c.h.b16 %v932
      %v1149 = vunpack.c.l.b16 %v933
      %v1150 = vunpack.c.h.b16 %v933
      %v1151 = vunpack.c.l.b16 %v934
      %v1152 = vunpack.c.h.b16 %v934
      %v1153 = vunpack.c.l.b16 %v935
      %v1154 = vunpack.c.h.b16 %v935
      %v1155 = vunpack.c.l.b16 %v936
      %v1156 = vunpack.c.h.b16 %v936
      %v1157 = vunpack.c.l.b16 %v937
      %v1158 = vunpack.c.h.b16 %v937
      %v1159 = vunpack.c.l.b16 %v938
      %v1160 = vunpack.c.h.b16 %v938
      %v1161 = vunpack.c.l.b16 %v939
      %v1162 = vunpack.c.h.b16 %v939
      %v1163 = vunpack.c.l.b16 %v940
      %v1164 = vunpack.c.h.b16 %v940
      %v1165 = vunpack.c.l.b16 %v941
      %v1166 = vunpack.c.h.b16 %v941
      %v1167 = vunpack.c.l.b16 %v942
      %v1168 = vunpack.c.h.b16 %v942
      %v1169 = vunpack.c.l.b16 %v943
      %v1170 = vunpack.c.h.b16 %v943
      %v1171 = vunpack.c.l.b16 %v944
      %v1172 = vunpack.c.h.b16 %v944
      %v1173 = vunpack.c.l.b16 %v945
      %v1174 = vunpack.c.h.b16 %v945
      %v1175 = vunpack.c.l.b16 %v946
      %v1176 = vunpack.c.h.b16 %v946
      %v1177 = vunpack.c.l.b16 %v947
      %v1178 = vunpack.c.h.b16 %v947
      %v1179 = vunpack.c.l.b16 %v948
      %v1180 = vunpack.c.h.b16 %v948
      %v1181 = vpack.c.b16 %v1039, %v1037
      %v1182 = vpack.c.b16 %v1040, %v1038
      %v1183 = vpack.c.b16 %v1043, %v1041
      %v1184 = vpack.c.b16 %v1044, %v1042
      %v1185 = vpack.c.b16 %v1047, %v1045
      %v1186 = vpack.c.b16 %v1048, %v1046
      %v1187 = vpack.c.b16 %v1051, %v1049
      %v1188 = vpack.c.b16 %v1052, %v1050
      %v1189 = vpack.c.b16 %v1055, %v1053
      %v1190 = vpack.c.b16 %v1056, %v1054
      %v1191 = vpack.c.b16 %v1059, %v1057
      %v1192 = vpack.c.b16 %v1060, %v1058
      %v1193 = vpack.c.b16 %v1063, %v1061
      %v1194 = vpack.c.b16 %v1064, %v1062
      %v1195 = vpack.c.b16 %v1067, %v1065
      %v1196 = vpack.c.b16 %v1068, %v1066
      %v1197 = vpack.c.b16 %v1071, %v1069
      %v1198 = vpack.c.b16 %v1072, %v1070
      %v1199 = vpack.c.b16 %v1075, %v1073
      %v1200 = vpack.c.b16 %v1076, %v1074
      %v1201 = vpack.c.b16 %v1079, %v1077
      %v1202 = vpack.c.b16 %v1080, %v1078
      %v1203 = vpack.c.b16 %v1083, %v1081
      %v1204 = vpack.c.b16 %v1084, %v1082
      %v1205 = vpack.c.b16 %v1087, %v1085
      %v1206 = vpack.c.b16 %v1088, %v1086
      %v1207 = vpack.c.b16 %v1091, %v1089
      %v1208 = vpack.c.b16 %v1092, %v1090
      %v1209 = vpack.c.b16 %v1095, %v1093
      %v1210 = vpack.c.b16 %v1096, %v1094
      %v1211 = vpack.c.b16 %v1099, %v1097
      %v1212 = vpack.c.b16 %v1100, %v1098
      %v1213 = vpack.c.b16 %v1103, %v1101
      %v1214 = vpack.c.b16 %v1104, %v1102
      %v1215 = vpack.c.b16 %v1107, %v1105
      %v1216 = vpack.c.b16 %v1108, %v1106
      %v1217 = vpack.c.b16 %v1111, %v1109
      %v1218 = vpack.c.b16 %v1112, %v1110
      %v1219 = vpack.c.b16 %v1115, %v1113
      %v1220 = vpack.c.b16 %v1116, %v1114
      %v1221 = vpack.c.b16 %v1119, %v1117
      %v1222 = vpack.c.b16 %v1120, %v1118
      %v1223 = vpack.c.b16 %v1123, %v1121
      %v1224 = vpack.c.b16 %v1124, %v1122
      %v1225 = vpack.c.b16 %v1127, %v1125
      %v1226 = vpack.c.b16 %v1128, %v1126
      %v1227 = vpack.c.b16 %v1131, %v1129
      %v1228 = vpack.c.b16 %v1132, %v1130
      %v1229 = vpack.c.b16 %v1135, %v1133
      %v1230 = vpack.c.b16 %v1136, %v1134
      %v1231 = vpack.c.b16 %v1139, %v1137
      %v1232 = vpack.c.b16 %v1140, %v1138
      %v1233 = vpack.c.b16 %v1143, %v1141
      %v1234 = vpack.c.b16 %v1144, %v1142
      %v1235 = vpack.c.b16 %v1147, %v1145
      %v1236 = vpack.c.b16 %v1148, %v1146
      %v1237 = vpack.c.b16 %v1151, %v1149
      %v1238 = vpack.c.b16 %v1152, %v1150
      %v1239 = vpack.c.b16 %v1155, %v1153
      %v1240 = vpack.c.b16 %v1156, %v1154
      %v1241 = vpack.c.b16 %v1159, %v1157
      %v1242 = vpack.c.b16 %v1160, %v1158
      %v1243 = vpack.c.b16 %v1163, %v1161
      %v1244 = vpack.c.b16 %v1164, %v1162
      %v1245 = vpack.c.b16 %v1167, %v1165
      %v1246 = vpack.c.b16 %v1168, %v1166
      %v1247 = vpack.c.b16 %v1171, %v1169
      %v1248 = vpack.c.b16 %v1172, %v1170
      %v1249 = vpack.c.b16 %v1175, %v1173
      %v1250 = vpack.c.b16 %v1176, %v1174
      %v1251 = vpack.c.b16 %v1179, %v1177
      %v1252 = vpack.c.b16 %v1180, %v1178
      %1325 = vmatprep.subr.bf16.mxu0 0
      %1326 = vmatpush1.bf16.msra.mxu0 %v949
      %1327 = vmatprep.subr.bf16.mxu0 0
      %1328 = vmatpush1.bf16.msra.mxu0 %v950
      %1329 = vmatprep.subr.bf16.mxu0 0
      %1330 = vmatpush1.bf16.msra.mxu0 %v951
      %1331 = vmatprep.subr.bf16.mxu0 0
      %1332 = vmatpush1.bf16.msra.mxu0 %v952
      %1333 = vmatprep.subr.bf16.mxu0 0
      %1334 = vmatpush1.bf16.msra.mxu0 %v953
      %1335 = vmatprep.subr.bf16.mxu0 0
      %1336 = vmatpush1.bf16.msra.mxu0 %v954
      %1337 = vmatprep.subr.bf16.mxu0 0
      %1338 = vmatpush1.bf16.msra.mxu0 %v955
      %1339 = vmatprep.subr.bf16.mxu0 0
      %1340 = vmatpush1.bf16.msra.mxu0 %v956
      %1341 = vmatprep.subr.bf16.mxu0 0
      %1342 = vmatpush1.bf16.msra.mxu0 %v957
      %1343 = vmatprep.subr.bf16.mxu0 0
      %1344 = vmatpush1.bf16.msra.mxu0 %v958
      %1345 = vmatprep.subr.bf16.mxu0 0
      %1346 = vmatpush1.bf16.msra.mxu0 %v959
      %1347 = vmatprep.subr.bf16.mxu0 0
      %1348 = vmatpush1.bf16.msra.mxu0 %v960
      %1349 = vmatprep.subr.bf16.mxu0 0
      %1350 = vmatpush1.bf16.msra.mxu0 %v961
      %1351 = vmatprep.subr.bf16.mxu0 0
      %1352 = vmatpush1.bf16.msra.mxu0 %v962
      %1353 = vmatprep.subr.bf16.mxu0 0
      %1354 = vmatpush1.bf16.msra.mxu0 %v963
      %1355 = vmatprep.subr.bf16.mxu0 0
      %1356 = vmatpush1.bf16.msra.mxu0 %v964
      %1357 = vmatprep.mubr.bf16.mxu0 %v1182
      %1358 = vmatmul.mubr.bf16.gmra.mrb[0].mxu0 %v1181
      %v1359 = vpop.f32.mrb[0].mxu0
      %v1360 = vadd.f32 0.0, %v1359
      %v1361 = vpop.f32.mrb[0].mxu0
      %v1362 = vpop.f32.mrb[0].mxu0
      %v1363 = vadd.f32 0.0, %v1362
      %v1364 = vpop.f32.mrb[0].mxu0
      %1365 = vmatprep.mubr.bf16.mxu0 %v1184
      %1366 = vmatmul.mubr.bf16.gmra.mrb[0].mxu0 %v1183
      %v1367 = vpop.f32.mrb[0].mxu0
      %v1368 = vadd.f32 0.0, %v1367
      %v1369 = vpop.f32.mrb[0].mxu0
      %v1370 = vpop.f32.mrb[0].mxu0
      %v1371 = vadd.f32 0.0, %v1370
      %v1372 = vpop.f32.mrb[0].mxu0
      %1373 = vmatprep.mubr.bf16.mxu0 %v1186
      %1374 = vmatmul.mubr.bf16.gmra.mrb[0].mxu0 %v1185
      %v1375 = vpop.f32.mrb[0].mxu0
      %v1376 = vadd.f32 0.0, %v1375
      %v1377 = vpop.f32.mrb[0].mxu0
      %v1378 = vpop.f32.mrb[0].mxu0
      %v1379 = vadd.f32 0.0, %v1378
      %v1380 = vpop.f32.mrb[0].mxu0
      %1381 = vmatprep.mubr.bf16.mxu0 %v1188
      %1382 = vmatmul.mubr.bf16.gmra.mrb[0].mxu0 %v1187
      %v1383 = vpop.f32.mrb[0].mxu0
      %v1384 = vadd.f32 0.0, %v1383
      %v1385 = vpop.f32.mrb[0].mxu0
      %v1386 = vpop.f32.mrb[0].mxu0
      %v1387 = vadd.f32 0.0, %v1386
      %v1388 = vpop.f32.mrb[0].mxu0
      %1389 = vmatprep.mubr.bf16.mxu0 %v1190
      %1390 = vmatmul.mubr.bf16.gmra.mrb[0].mxu0 %v1189
      %v1391 = vpop.f32.mrb[0].mxu0
      %v1392 = vadd.f32 0.0, %v1391
      %v1393 = vpop.f32.mrb[0].mxu0
      %v1394 = vpop.f32.mrb[0].mxu0
      %v1395 = vadd.f32 0.0, %v1394
      %v1396 = vpop.f32.mrb[0].mxu0
      %1397 = vmatprep.mubr.bf16.mxu0 %v1192
      %1398 = vmatmul.mubr.bf16.gmra.mrb[0].mxu0 %v1191
      %v1399 = vpop.f32.mrb[0].mxu0
      %v1400 = vadd.f32 0.0, %v1399
      %v1401 = vpop.f32.mrb[0].mxu0
      %v1402 = vpop.f32.mrb[0].mxu0
      %v1403 = vadd.f32 0.0, %v1402
      %v1404 = vpop.f32.mrb[0].mxu0
      %1405 = vmatprep.mubr.bf16.mxu0 %v1194
      %1406 = vmatmul.mubr.bf16.gmra.mrb[0].mxu0 %v1193
      %v1407 = vpop.f32.mrb[0].mxu0
      %v1408 = vadd.f32 0.0, %v1407
      %v1409 = vpop.f32.mrb[0].mxu0
      %v1410 = vpop.f32.mrb[0].mxu0
      %v1411 = vadd.f32 0.0, %v1410
      %v1412 = vpop.f32.mrb[0].mxu0
      %1413 = vmatprep.mubr.bf16.mxu0 %v1196
      %1414 = vmatmul.mubr.bf16.gmra.mrb[0].mxu0 %v1195
      %v1415 = vpop.f32.mrb[0].mxu0
      %v1416 = vadd.f32 0.0, %v1415
      %v1417 = vpop.f32.mrb[0].mxu0
      %v1418 = vpop.f32.mrb[0].mxu0
      %v1419 = vadd.f32 0.0, %v1418
      %v1420 = vpop.f32.mrb[0].mxu0
      %1421 = vmatprep.mubr.bf16.mxu0 %v1198
      %1422 = vmatmul.mubr.bf16.gmra.mrb[0].mxu0 %v1197
      %v1423 = vpop.f32.mrb[0].mxu0
      %v1424 = vadd.f32 0.0, %v1423
      %v1425 = vpop.f32.mrb[0].mxu0
      %v1426 = vpop.f32.mrb[0].mxu0
      %v1427 = vadd.f32 0.0, %v1426
      %v1428 = vpop.f32.mrb[0].mxu0
      %1429 = vmatprep.mubr.bf16.mxu0 %v1200
      %1430 = vmatmul.mubr.bf16.gmra.mrb[0].mxu0 %v1199
      %v1431 = vpop.f32.mrb[0].mxu0
      %v1432 = vadd.f32 0.0, %v1431
      %v1433 = vpop.f32.mrb[0].mxu0
      %v1434 = vpop.f32.mrb[0].mxu0
      %v1435 = vadd.f32 0.0, %v1434
      %v1436 = vpop.f32.mrb[0].mxu0
      %1437 = vmatprep.mubr.bf16.mxu0 %v1202
      %1438 = vmatmul.mubr.bf16.gmra.mrb[0].mxu0 %v1201
      %v1439 = vpop.f32.mrb[0].mxu0
      %v1440 = vadd.f32 0.0, %v1439
      %v1441 = vpop.f32.mrb[0].mxu0
      %v1442 = vpop.f32.mrb[0].mxu0
      %v1443 = vadd.f32 0.0, %v1442
      %v1444 = vpop.f32.mrb[0].mxu0
      %1445 = vmatprep.mubr.bf16.mxu0 %v1204
      %1446 = vmatmul.mubr.bf16.gmra.mrb[0].mxu0 %v1203
      %v1447 = vpop.f32.mrb[0].mxu0
      %v1448 = vadd.f32 0.0, %v1447
      %v1449 = vpop.f32.mrb[0].mxu0
      %v1450 = vpop.f32.mrb[0].mxu0
      %v1451 = vadd.f32 0.0, %v1450
      %v1452 = vpop.f32.mrb[0].mxu0
      %1453 = vmatprep.mubr.bf16.mxu0 %v1206
      %1454 = vmatmul.mubr.bf16.gmra.mrb[0].mxu0 %v1205
      %v1455 = vpop.f32.mrb[0].mxu0
      %v1456 = vadd.f32 0.0, %v1455
      %v1457 = vpop.f32.mrb[0].mxu0
      %v1458 = vpop.f32.mrb[0].mxu0
      %v1459 = vadd.f32 0.0, %v1458
      %v1460 = vpop.f32.mrb[0].mxu0
      %1461 = vmatprep.mubr.bf16.mxu0 %v1208
      %1462 = vmatmul.mubr.bf16.gmra.mrb[0].mxu0 %v1207
      %v1463 = vpop.f32.mrb[0].mxu0
      %v1464 = vadd.f32 0.0, %v1463
      %v1465 = vpop.f32.mrb[0].mxu0
      %v1466 = vpop.f32.mrb[0].mxu0
      %v1467 = vadd.f32 0.0, %v1466
      %v1468 = vpop.f32.mrb[0].mxu0
      %1469 = vmatprep.mubr.bf16.mxu0 %v1210
      %1470 = vmatmul.mubr.bf16.gmra.mrb[0].mxu0 %v1209
      %v1471 = vpop.f32.mrb[0].mxu0
      %v1472 = vadd.f32 0.0, %v1471
      %v1473 = vpop.f32.mrb[0].mxu0
      %v1474 = vpop.f32.mrb[0].mxu0
      %v1475 = vadd.f32 0.0, %v1474
      %v1476 = vpop.f32.mrb[0].mxu0
      %1477 = vmatprep.mubr.bf16.mxu0 %v1212
      %1478 = vmatmul.mubr.bf16.gmra.mrb[0].mxu0 %v1211
      %v1479 = vpop.f32.mrb[0].mxu0
      %v1480 = vadd.f32 0.0, %v1479
      %v1481 = vpop.f32.mrb[0].mxu0
      %v1482 = vpop.f32.mrb[0].mxu0
      %v1483 = vadd.f32 0.0, %v1482
      %v1484 = vpop.f32.mrb[0].mxu0
      %1485 = vmatprep.mubr.bf16.mxu0 %v1214
      %1486 = vmatmul.mubr.bf16.gmra.mrb[0].mxu0 %v1213
      %v1487 = vpop.f32.mrb[0].mxu0
      %v1488 = vadd.f32 0.0, %v1487
      %v1489 = vpop.f32.mrb[0].mxu0
      %v1490 = vpop.f32.mrb[0].mxu0
      %v1491 = vadd.f32 0.0, %v1490
      %v1492 = vpop.f32.mrb[0].mxu0
      %1493 = vmatprep.mubr.bf16.mxu0 %v1216
      %1494 = vmatmul.mubr.bf16.gmra.mrb[0].mxu0 %v1215
      %v1495 = vpop.f32.mrb[0].mxu0
      %v1496 = vadd.f32 0.0, %v1495
      %v1497 = vpop.f32.mrb[0].mxu0
      %v1498 = vpop.f32.mrb[0].mxu0
      %v1499 = vadd.f32 0.0, %v1498
      %v1500 = vpop.f32.mrb[0].mxu0
      %1501 = vmatprep.mubr.bf16.mxu0 %v1218
      %1502 = vmatmul.mubr.bf16.gmra.mrb[0].mxu0 %v1217
      %v1503 = vpop.f32.mrb[0].mxu0
      %v1504 = vadd.f32 0.0, %v1503
      %v1505 = vpop.f32.mrb[0].mxu0
      %v1506 = vpop.f32.mrb[0].mxu0
      %v1507 = vadd.f32 0.0, %v1506
      %v1508 = vpop.f32.mrb[0].mxu0
      %1509 = vmatprep.mubr.bf16.mxu0 %v1220
      %1510 = vmatmul.mubr.bf16.gmra.mrb[0].mxu0 %v1219
      %v1511 = vpop.f32.mrb[0].mxu0
      %v1512 = vadd.f32 0.0, %v1511
      %v1513 = vpop.f32.mrb[0].mxu0
      %v1514 = vpop.f32.mrb[0].mxu0
      %v1515 = vadd.f32 0.0, %v1514
      %v1516 = vpop.f32.mrb[0].mxu0
      %1517 = vmatprep.mubr.bf16.mxu0 %v1222
      %1518 = vmatmul.mubr.bf16.gmra.mrb[0].mxu0 %v1221
      %v1519 = vpop.f32.mrb[0].mxu0
      %v1520 = vadd.f32 0.0, %v1519
      %v1521 = vpop.f32.mrb[0].mxu0
      %v1522 = vpop.f32.mrb[0].mxu0
      %v1523 = vadd.f32 0.0, %v1522
      %v1524 = vpop.f32.mrb[0].mxu0
      %1525 = vmatprep.mubr.bf16.mxu0 %v1224
      %1526 = vmatmul.mubr.bf16.gmra.mrb[0].mxu0 %v1223
      %v1527 = vpop.f32.mrb[0].mxu0
      %v1528 = vadd.f32 0.0, %v1527
      %v1529 = vpop.f32.mrb[0].mxu0
      %v1530 = vpop.f32.mrb[0].mxu0
      %v1531 = vadd.f32 0.0, %v1530
      %v1532 = vpop.f32.mrb[0].mxu0
      %1533 = vmatprep.mubr.bf16.mxu0 %v1226
      %1534 = vmatmul.mubr.bf16.gmra.mrb[0].mxu0 %v1225
      %v1535 = vpop.f32.mrb[0].mxu0
      %v1536 = vadd.f32 0.0, %v1535
      %v1537 = vpop.f32.mrb[0].mxu0
      %v1538 = vpop.f32.mrb[0].mxu0
      %v1539 = vadd.f32 0.0, %v1538
      %v1540 = vpop.f32.mrb[0].mxu0
      %1541 = vmatprep.mubr.bf16.mxu0 %v1228
      %1542 = vmatmul.mubr.bf16.gmra.mrb[0].mxu0 %v1227
      %v1543 = vpop.f32.mrb[0].mxu0
      %v1544 = vadd.f32 0.0, %v1543
      %v1545 = vpop.f32.mrb[0].mxu0
      %v1546 = vpop.f32.mrb[0].mxu0
      %v1547 = vadd.f32 0.0, %v1546
      %v1548 = vpop.f32.mrb[0].mxu0
      %1549 = vmatprep.mubr.bf16.mxu0 %v1230
      %1550 = vmatmul.mubr.bf16.gmra.mrb[0].mxu0 %v1229
      %v1551 = vpop.f32.mrb[0].mxu0
      %v1552 = vadd.f32 0.0, %v1551
      %v1553 = vpop.f32.mrb[0].mxu0
      %v1554 = vpop.f32.mrb[0].mxu0
      %v1555 = vadd.f32 0.0, %v1554
      %v1556 = vpop.f32.mrb[0].mxu0
      %1557 = vmatprep.mubr.bf16.mxu0 %v1232
      %1558 = vmatmul.mubr.bf16.gmra.mrb[0].mxu0 %v1231
      %v1559 = vpop.f32.mrb[0].mxu0
      %v1560 = vadd.f32 0.0, %v1559
      %v1561 = vpop.f32.mrb[0].mxu0
      %v1562 = vpop.f32.mrb[0].mxu0
      %v1563 = vadd.f32 0.0, %v1562
      %v1564 = vpop.f32.mrb[0].mxu0
      %1565 = vmatprep.mubr.bf16.mxu0 %v1234
      %1566 = vmatmul.mubr.bf16.gmra.mrb[0].mxu0 %v1233
      %v1567 = vpop.f32.mrb[0].mxu0
      %v1568 = vadd.f32 0.0, %v1567
      %v1569 = vpop.f32.mrb[0].mxu0
      %v1570 = vpop.f32.mrb[0].mxu0
      %v1571 = vadd.f32 0.0, %v1570
      %v1572 = vpop.f32.mrb[0].mxu0
      %1573 = vmatprep.mubr.bf16.mxu0 %v1236
      %1574 = vmatmul.mubr.bf16.gmra.mrb[0].mxu0 %v1235
      %v1575 = vpop.f32.mrb[0].mxu0
      %v1576 = vadd.f32 0.0, %v1575
      %v1577 = vpop.f32.mrb[0].mxu0
      %v1578 = vpop.f32.mrb[0].mxu0
      %v1579 = vadd.f32 0.0, %v1578
      %v1580 = vpop.f32.mrb[0].mxu0
      %1581 = vmatprep.mubr.bf16.mxu0 %v1238
      %1582 = vmatmul.mubr.bf16.gmra.mrb[0].mxu0 %v1237
      %v1583 = vpop.f32.mrb[0].mxu0
      %v1584 = vadd.f32 0.0, %v1583
      %v1585 = vpop.f32.mrb[0].mxu0
      %v1586 = vpop.f32.mrb[0].mxu0
      %v1587 = vadd.f32 0.0, %v1586
      %v1588 = vpop.f32.mrb[0].mxu0
      %1589 = vmatprep.mubr.bf16.mxu0 %v1240
      %1590 = vmatmul.mubr.bf16.gmra.mrb[0].mxu0 %v1239
      %v1591 = vpop.f32.mrb[0].mxu0
      %v1592 = vadd.f32 0.0, %v1591
      %v1593 = vpop.f32.mrb[0].mxu0
      %v1594 = vpop.f32.mrb[0].mxu0
      %v1595 = vadd.f32 0.0, %v1594
      %v1596 = vpop.f32.mrb[0].mxu0
      %1597 = vmatprep.mubr.bf16.mxu0 %v1242
      %1598 = vmatmul.mubr.bf16.gmra.mrb[0].mxu0 %v1241
      %v1599 = vpop.f32.mrb[0].mxu0
      %v1600 = vadd.f32 0.0, %v1599
      %v1601 = vpop.f32.mrb[0].mxu0
      %v1602 = vpop.f32.mrb[0].mxu0
      %v1603 = vadd.f32 0.0, %v1602
      %v1604 = vpop.f32.mrb[0].mxu0
      %1605 = vmatprep.mubr.bf16.mxu0 %v1244
      %1606 = vmatmul.mubr.bf16.gmra.mrb[0].mxu0 %v1243
      %v1607 = vpop.f32.mrb[0].mxu0
      %v1608 = vadd.f32 0.0, %v1607
      %v1609 = vpop.f32.mrb[0].mxu0
      %v1610 = vpop.f32.mrb[0].mxu0
      %v1611 = vadd.f32 0.0, %v1610
      %v1612 = vpop.f32.mrb[0].mxu0
      %1613 = vmatprep.mubr.bf16.mxu0 %v1246
      %1614 = vmatmul.mubr.bf16.gmra.mrb[0].mxu0 %v1245
      %v1615 = vpop.f32.mrb[0].mxu0
      %v1616 = vadd.f32 0.0, %v1615
      %v1617 = vpop.f32.mrb[0].mxu0
      %v1618 = vpop.f32.mrb[0].mxu0
      %v1619 = vadd.f32 0.0, %v1618
      %v1620 = vpop.f32.mrb[0].mxu0
      %1621 = vmatprep.mubr.bf16.mxu0 %v1248
      %1622 = vmatmul.mubr.bf16.gmra.mrb[0].mxu0 %v1247
      %v1623 = vpop.f32.mrb[0].mxu0
      %v1624 = vadd.f32 0.0, %v1623
      %v1625 = vpop.f32.mrb[0].mxu0
      %v1626 = vpop.f32.mrb[0].mxu0
      %v1627 = vadd.f32 0.0, %v1626
      %v1628 = vpop.f32.mrb[0].mxu0
      %1629 = vmatprep.mubr.bf16.mxu0 %v1250
      %1630 = vmatmul.mubr.bf16.gmra.mrb[0].mxu0 %v1249
      %v1631 = vpop.f32.mrb[0].mxu0
      %v1632 = vadd.f32 0.0, %v1631
      %v1633 = vpop.f32.mrb[0].mxu0
      %v1634 = vpop.f32.mrb[0].mxu0
      %v1635 = vadd.f32 0.0, %v1634
      %v1636 = vpop.f32.mrb[0].mxu0
      %1637 = vmatprep.mubr.bf16.mxu0 %v1252
      %1638 = vmatmul.mubr.bf16.gmra.mrb[0].mxu0 %v1251
      %v1639 = vpop.f32.mrb[0].mxu0
      %v1640 = vadd.f32 0.0, %v1639
      %v1641 = vpop.f32.mrb[0].mxu0
      %v1642 = vpop.f32.mrb[0].mxu0
      %v1643 = vadd.f32 0.0, %v1642
      %v1644 = vpop.f32.mrb[0].mxu0
      %1645 = vdwg.mxu0
      %v1646 = vpack.c.bf16 %v1363, %v1360
      %v1647 = vpack.c.bf16 %v1371, %v1368
      %v1648 = vpack.c.bf16 %v1379, %v1376
      %v1649 = vpack.c.bf16 %v1387, %v1384
      %v1650 = vpack.c.bf16 %v1395, %v1392
      %v1651 = vpack.c.bf16 %v1403, %v1400
      %v1652 = vpack.c.bf16 %v1411, %v1408
      %v1653 = vpack.c.bf16 %v1419, %v1416
      %v1654 = vpack.c.bf16 %v1427, %v1424
      %v1655 = vpack.c.bf16 %v1435, %v1432
      %v1656 = vpack.c.bf16 %v1443, %v1440
      %v1657 = vpack.c.bf16 %v1451, %v1448
      %v1658 = vpack.c.bf16 %v1459, %v1456
      %v1659 = vpack.c.bf16 %v1467, %v1464
      %v1660 = vpack.c.bf16 %v1475, %v1472
      %v1661 = vpack.c.bf16 %v1483, %v1480
      %v1662 = vpack.c.bf16 %v1491, %v1488
      %v1663 = vpack.c.bf16 %v1499, %v1496
      %v1664 = vpack.c.bf16 %v1507, %v1504
      %v1665 = vpack.c.bf16 %v1515, %v1512
      %v1666 = vpack.c.bf16 %v1523, %v1520
      %v1667 = vpack.c.bf16 %v1531, %v1528
      %v1668 = vpack.c.bf16 %v1539, %v1536
      %v1669 = vpack.c.bf16 %v1547, %v1544
      %v1670 = vpack.c.bf16 %v1555, %v1552
      %v1671 = vpack.c.bf16 %v1563, %v1560
      %v1672 = vpack.c.bf16 %v1571, %v1568
      %v1673 = vpack.c.bf16 %v1579, %v1576
      %v1674 = vpack.c.bf16 %v1587, %v1584
      %v1675 = vpack.c.bf16 %v1595, %v1592
      %v1676 = vpack.c.bf16 %v1603, %v1600
      %v1677 = vpack.c.bf16 %v1611, %v1608
      %v1678 = vpack.c.bf16 %v1619, %v1616
      %v1679 = vpack.c.bf16 %v1627, %v1624
      %v1680 = vpack.c.bf16 %v1635, %v1632
      %v1681 = vpack.c.bf16 %v1643, %v1640
      %vm1682 = vcmask 195584
      %1683 = vst.msk [vmem:[#allocation2] sm:$0xff] %vm1682, %v1646
      %1684 = vst.msk [vmem:[#allocation2 + $0x8] sm:$0xff] %vm1682, %v1647
      %1685 = vst.msk [vmem:[#allocation2 + $0x10] sm:$0xff] %vm1682, %v1648
      %1686 = vst.msk [vmem:[#allocation2 + $0x18] sm:$0xff] %vm1682, %v1649
      %1687 = vst.msk [vmem:[#allocation2 + $0x20] sm:$0xff] %vm1682, %v1650
      %1688 = vst.msk [vmem:[#allocation2 + $0x28] sm:$0xff] %vm1682, %v1651
      %1689 = vst.msk [vmem:[#allocation2 + $0x30] sm:$0xff] %vm1682, %v1652
      %1690 = vst.msk [vmem:[#allocation2 + $0x38] sm:$0xff] %vm1682, %v1653
      %1691 = vst.msk [vmem:[#allocation2 + $0x40] sm:$0xff] %vm1682, %v1654
      %1692 = vst.msk [vmem:[#allocation2 + $0x48] sm:$0xff] %vm1682, %v1655
      %1693 = vst.msk [vmem:[#allocation2 + $0x50] sm:$0xff] %vm1682, %v1656
      %1694 = vst.msk [vmem:[#allocation2 + $0x58] sm:$0xff] %vm1682, %v1657
      %1695 = vst.msk [vmem:[#allocation2 + $0x60] sm:$0xff] %vm1682, %v1658
      %1696 = vst.msk [vmem:[#allocation2 + $0x68] sm:$0xff] %vm1682, %v1659
      %1697 = vst.msk [vmem:[#allocation2 + $0x70] sm:$0xff] %vm1682, %v1660
      %1698 = vst.msk [vmem:[#allocation2 + $0x78] sm:$0xff] %vm1682, %v1661
      %1699 = vst.msk [vmem:[#allocation2 + $0x80] sm:$0xff] %vm1682, %v1662
      %1700 = vst.msk [vmem:[#allocation2 + $0x88] sm:$0xff] %vm1682, %v1663
      %1701 = vst.msk [vmem:[#allocation2 + $0x90] sm:$0xff] %vm1682, %v1664
      %1702 = vst.msk [vmem:[#allocation2 + $0x98] sm:$0xff] %vm1682, %v1665
      %1703 = vst.msk [vmem:[#allocation2 + $0xa0] sm:$0xff] %vm1682, %v1666
      %1704 = vst.msk [vmem:[#allocation2 + $0xa8] sm:$0xff] %vm1682, %v1667
      %1705 = vst.msk [vmem:[#allocation2 + $0xb0] sm:$0xff] %vm1682, %v1668
      %1706 = vst.msk [vmem:[#allocation2 + $0xb8] sm:$0xff] %vm1682, %v1669
      %1707 = vst.msk [vmem:[#allocation2 + $0xc0] sm:$0xff] %vm1682, %v1670
      %1708 = vst.msk [vmem:[#allocation2 + $0xc8] sm:$0xff] %vm1682, %v1671
      %1709 = vst.msk [vmem:[#allocation2 + $0xd0] sm:$0xff] %vm1682, %v1672
      %1710 = vst.msk [vmem:[#allocation2 + $0xd8] sm:$0xff] %vm1682, %v1673
      %1711 = vst.msk [vmem:[#allocation2 + $0xe0] sm:$0xff] %vm1682, %v1674
      %1712 = vst.msk [vmem:[#allocation2 + $0xe8] sm:$0xff] %vm1682, %v1675
      %1713 = vst.msk [vmem:[#allocation2 + $0xf0] sm:$0xff] %vm1682, %v1676
      %1714 = vst.msk [vmem:[#allocation2 + $0xf8] sm:$0xff] %vm1682, %v1677
      %1715 = vst.msk [vmem:[#allocation2 + $0x100] sm:$0xff] %vm1682, %v1678
      %1716 = vst.msk [vmem:[#allocation2 + $0x108] sm:$0xff] %vm1682, %v1679
      %1717 = vst.msk [vmem:[#allocation2 + $0x110] sm:$0xff] %vm1682, %v1680
      %1718 = vst.msk [vmem:[#allocation2 + $0x118] sm:$0xff] %vm1682, %v1681
      %v1719 = vld [vmem:[#allocation2] sm:$0xff]
      %v1720 = vld [vmem:[#allocation2 + $0x8] sm:$0xff]
      %v1721 = vld [vmem:[#allocation2 + $0x10] sm:$0xff]
      %v1722 = vld [vmem:[#allocation2 + $0x18] sm:$0xff]
      %v1723 = vld [vmem:[%s3] sm:$0xf]
      %v1724 = vld [vmem:[%s3 + $0x4] sm:$0xf]
      %v1725 = vld [vmem:[%s3 + $0x8] sm:$0xf]
      %v1726 = vld [vmem:[#allocation2 + $0x20] sm:$0xff]
      %v1727 = vld [vmem:[#allocation2 + $0x28] sm:$0xff]
      %v1728 = vld [vmem:[#allocation2 + $0x30] sm:$0xff]
      %v1729 = vld [vmem:[#allocation2 + $0x38] sm:$0xff]
      %s1730 = scalar_lea.vmem %s3, 12
      %v1731 = vld [vmem:[%s1730] sm:$0xf]
      %v1732 = vld [vmem:[%s1730 + $0x4] sm:$0xf]
      %v1733 = vld [vmem:[%s1730 + $0x8] sm:$0xf]
      %v1737 = vunpack.c.l.b16 %v1731
      %v1738 = vunpack.c.l.b16 %v1732
      %v1739 = vunpack.c.l.b16 %v1733
      %v1740 = vpack.c.b16 %v1738, %v1737
      %v1741 = vpack.c.b16 %v1739, %v1739
      %v1744 = vsel %vm1682, %v1726, 0
      %v1747 = vsel %vm1682, %v1727, 0
      %v1750 = vsel %vm1682, %v1728, 0
      %v1753 = vsel %vm1682, %v1729, 0
      %vm1755 = vcmask 1043456
      %v1757 = vsel %vm1755, %v1741, 0
      %1759 = vmatprep.subr.bf16.mxu0 0
      %1760 = vmatpush1.bf16.msra.mxu0 %v1740
      %1761 = vmatprep.subr.bf16.mxu0 0
      %1762 = vmatpush1.bf16.msra.mxu0 %v1757
      %1763 = vmatprep.subr.bf16.mxu0 0
      %1764 = vmatpush1.bf16.msra.mxu0 0
      %1765 = vmatprep.subr.bf16.mxu0 0
      %1766 = vmatpush1.bf16.msra.mxu0 0
      %1767 = vmatprep.subr.bf16.mxu0 0
      %1768 = vmatpush1.bf16.msra.mxu0 0
      %1769 = vmatprep.subr.bf16.mxu0 0
      %1770 = vmatpush1.bf16.msra.mxu0 0
      %1771 = vmatprep.subr.bf16.mxu0 0
      %1772 = vmatpush1.bf16.msra.mxu0 0
      %1773 = vmatprep.subr.bf16.mxu0 0
      %1774 = vmatpush1.bf16.msra.mxu0 0
      %1775 = vmatprep.subr.bf16.mxu0 0
      %1776 = vmatpush1.bf16.msra.mxu0 0
      %1777 = vmatprep.subr.bf16.mxu0 0
      %1778 = vmatpush1.bf16.msra.mxu0 0
      %1779 = vmatprep.subr.bf16.mxu0 0
      %1780 = vmatpush1.bf16.msra.mxu0 0
      %1781 = vmatprep.subr.bf16.mxu0 0
      %1782 = vmatpush1.bf16.msra.mxu0 0
      %1783 = vmatprep.subr.bf16.mxu0 0
      %1784 = vmatpush1.bf16.msra.mxu0 0
      %1785 = vmatprep.subr.bf16.mxu0 0
      %1786 = vmatpush1.bf16.msra.mxu0 0
      %1787 = vmatprep.subr.bf16.mxu0 0
      %1788 = vmatpush1.bf16.msra.mxu0 0
      %1789 = vmatprep.subr.bf16.mxu0 0
      %1790 = vmatpush1.bf16.msra.mxu0 0
      %1791 = vmatprep.mubr.bf16.mxu0 0
      %1792 = vmatmul.mubr.bf16.gmra.mrb[0].mxu0 %v1744
      %v1793 = vpop.f32.mrb[0].mxu0
      %v1794 = vadd.f32 0.0, %v1793
      %v1795 = vpop.f32.mrb[0].mxu0
      %v1796 = vpop.f32.mrb[0].mxu0
      %v1797 = vadd.f32 0.0, %v1796
      %v1798 = vpop.f32.mrb[0].mxu0
      %1799 = vmatprep.mubr.bf16.mxu0 0
      %1800 = vmatmul.mubr.bf16.gmra.mrb[0].mxu0 %v1747
      %v1801 = vpop.f32.mrb[0].mxu0
      %v1802 = vadd.f32 0.0, %v1801
      %v1803 = vpop.f32.mrb[0].mxu0
      %v1804 = vpop.f32.mrb[0].mxu0
      %v1805 = vadd.f32 0.0, %v1804
      %v1806 = vpop.f32.mrb[0].mxu0
      %1807 = vmatprep.mubr.bf16.mxu0 0
      %1808 = vmatmul.mubr.bf16.gmra.mrb[0].mxu0 %v1750
      %v1809 = vpop.f32.mrb[0].mxu0
      %v1810 = vadd.f32 0.0, %v1809
      %v1811 = vpop.f32.mrb[0].mxu0
      %v1812 = vpop.f32.mrb[0].mxu0
      %v1813 = vadd.f32 0.0, %v1812
      %v1814 = vpop.f32.mrb[0].mxu0
      %1815 = vmatprep.mubr.bf16.mxu0 0
      %1816 = vmatmul.mubr.bf16.gmra.mrb[0].mxu0 %v1753
      %v1817 = vpop.f32.mrb[0].mxu0
      %v1818 = vadd.f32 0.0, %v1817
      %v1819 = vpop.f32.mrb[0].mxu0
      %v1820 = vpop.f32.mrb[0].mxu0
      %v1821 = vadd.f32 0.0, %v1820
      %v1822 = vpop.f32.mrb[0].mxu0
      %1823 = vdwg.mxu0
      %v1827 = vunpack.c.l.b16 %v1723
      %v1828 = vunpack.c.l.b16 %v1724
      %v1829 = vunpack.c.l.b16 %v1725
      %v1830 = vpack.c.b16 %v1828, %v1827
      %v1831 = vpack.c.b16 %v1829, %v1829
      %v1834 = vsel %vm1682, %v1719, 0
      %v1837 = vsel %vm1682, %v1720, 0
      %v1840 = vsel %vm1682, %v1721, 0
      %v1843 = vsel %vm1682, %v1722, 0
      %v1846 = vsel %vm1755, %v1831, 0
      %1848 = vmatprep.subr.bf16.mxu0 0
      %1849 = vmatpush1.bf16.msra.mxu0 %v1830
      %1850 = vmatprep.subr.bf16.mxu0 0
      %1851 = vmatpush1.bf16.msra.mxu0 %v1846
      %1852 = vmatprep.subr.bf16.mxu0 0
      %1853 = vmatpush1.bf16.msra.mxu0 0
      %1854 = vmatprep.subr.bf16.mxu0 0
      %1855 = vmatpush1.bf16.msra.mxu0 0
      %1856 = vmatprep.subr.bf16.mxu0 0
      %1857 = vmatpush1.bf16.msra.mxu0 0
      %1858 = vmatprep.subr.bf16.mxu0 0
      %1859 = vmatpush1.bf16.msra.mxu0 0
      %1860 = vmatprep.subr.bf16.mxu0 0
      %1861 = vmatpush1.bf16.msra.mxu0 0
      %1862 = vmatprep.subr.bf16.mxu0 0
      %1863 = vmatpush1.bf16.msra.mxu0 0
      %1864 = vmatprep.subr.bf16.mxu0 0
      %1865 = vmatpush1.bf16.msra.mxu0 0
      %1866 = vmatprep.subr.bf16.mxu0 0
      %1867 = vmatpush1.bf16.msra.mxu0 0
      %1868 = vmatprep.subr.bf16.mxu0 0
      %1869 = vmatpush1.bf16.msra.mxu0 0
      %1870 = vmatprep.subr.bf16.mxu0 0
      %1871 = vmatpush1.bf16.msra.mxu0 0
      %1872 = vmatprep.subr.bf16.mxu0 0
      %1873 = vmatpush1.bf16.msra.mxu0 0
      %1874 = vmatprep.subr.bf16.mxu0 0
      %1875 = vmatpush1.bf16.msra.mxu0 0
      %1876 = vmatprep.subr.bf16.mxu0 0
      %1877 = vmatpush1.bf16.msra.mxu0 0
      %1878 = vmatprep.subr.bf16.mxu0 0
      %1879 = vmatpush1.bf16.msra.mxu0 0
      %1880 = vmatprep.mubr.bf16.mxu0 0
      %1881 = vmatmul.mubr.bf16.gmra.mrb[0].mxu0 %v1834
      %v1882 = vpop.f32.mrb[0].mxu0
      %v1883 = vadd.f32 %v1794, %v1882
      %v1884 = vpop.f32.mrb[0].mxu0
      %v1885 = vpop.f32.mrb[0].mxu0
      %v1886 = vadd.f32 %v1797, %v1885
      %v1887 = vpop.f32.mrb[0].mxu0
      %1888 = vmatprep.mubr.bf16.mxu0 0
      %1889 = vmatmul.mubr.bf16.gmra.mrb[0].mxu0 %v1837
      %v1890 = vpop.f32.mrb[0].mxu0
      %v1891 = vadd.f32 %v1802, %v1890
      %v1892 = vpop.f32.mrb[0].mxu0
      %v1893 = vpop.f32.mrb[0].mxu0
      %v1894 = vadd.f32 %v1805, %v1893
      %v1895 = vpop.f32.mrb[0].mxu0
      %1896 = vmatprep.mubr.bf16.mxu0 0
      %1897 = vmatmul.mubr.bf16.gmra.mrb[0].mxu0 %v1840
      %v1898 = vpop.f32.mrb[0].mxu0
      %v1899 = vadd.f32 %v1810, %v1898
      %v1900 = vpop.f32.mrb[0].mxu0
      %v1901 = vpop.f32.mrb[0].mxu0
      %v1902 = vadd.f32 %v1813, %v1901
      %v1903 = vpop.f32.mrb[0].mxu0
      %1904 = vmatprep.mubr.bf16.mxu0 0
      %1905 = vmatmul.mubr.bf16.gmra.mrb[0].mxu0 %v1843
      %v1906 = vpop.f32.mrb[0].mxu0
      %v1907 = vadd.f32 %v1818, %v1906
      %v1908 = vpop.f32.mrb[0].mxu0
      %v1909 = vpop.f32.mrb[0].mxu0
      %v1910 = vadd.f32 %v1821, %v1909
      %v1911 = vpop.f32.mrb[0].mxu0
      %1912 = vdwg.mxu0
      %v1913 = vld [vmem:[#allocation2 + $0x40] sm:$0xff]
      %v1914 = vld [vmem:[#allocation2 + $0x48] sm:$0xff]
      %v1915 = vld [vmem:[#allocation2 + $0x50] sm:$0xff]
      %v1916 = vld [vmem:[#allocation2 + $0x58] sm:$0xff]
      %s1917 = scalar_lea.vmem %s3, 24
      %v1918 = vld [vmem:[%s1917] sm:$0xf]
      %v1919 = vld [vmem:[%s1917 + $0x4] sm:$0xf]
      %v1920 = vld [vmem:[%s1917 + $0x8] sm:$0xf]
      %v1924 = vunpack.c.l.b16 %v1918
      %v1925 = vunpack.c.l.b16 %v1919
      %v1926 = vunpack.c.l.b16 %v1920
      %v1927 = vpack.c.b16 %v1925, %v1924
      %v1928 = vpack.c.b16 %v1926, %v1926
      %v1931 = vsel %vm1682, %v1913, 0
      %v1934 = vsel %vm1682, %v1914, 0
      %v1937 = vsel %vm1682, %v1915, 0
      %v1940 = vsel %vm1682, %v1916, 0
      %v1943 = vsel %vm1755, %v1928, 0
      %1945 = vmatprep.subr.bf16.mxu0 0
      %1946 = vmatpush1.bf16.msra.mxu0 %v1927
      %1947 = vmatprep.subr.bf16.mxu0 0
      %1948 = vmatpush1.bf16.msra.mxu0 %v1943
      %1949 = vmatprep.subr.bf16.mxu0 0
      %1950 = vmatpush1.bf16.msra.mxu0 0
      %1951 = vmatprep.subr.bf16.mxu0 0
      %1952 = vmatpush1.bf16.msra.mxu0 0
      %1953 = vmatprep.subr.bf16.mxu0 0
      %1954 = vmatpush1.bf16.msra.mxu0 0
      %1955 = vmatprep.subr.bf16.mxu0 0
      %1956 = vmatpush1.bf16.msra.mxu0 0
      %1957 = vmatprep.subr.bf16.mxu0 0
      %1958 = vmatpush1.bf16.msra.mxu0 0
      %1959 = vmatprep.subr.bf16.mxu0 0
      %1960 = vmatpush1.bf16.msra.mxu0 0
      %1961 = vmatprep.subr.bf16.mxu0 0
      %1962 = vmatpush1.bf16.msra.mxu0 0
      %1963 = vmatprep.subr.bf16.mxu0 0
      %1964 = vmatpush1.bf16.msra.mxu0 0
      %1965 = vmatprep.subr.bf16.mxu0 0
      %1966 = vmatpush1.bf16.msra.mxu0 0
      %1967 = vmatprep.subr.bf16.mxu0 0
      %1968 = vmatpush1.bf16.msra.mxu0 0
      %1969 = vmatprep.subr.bf16.mxu0 0
      %1970 = vmatpush1.bf16.msra.mxu0 0
      %1971 = vmatprep.subr.bf16.mxu0 0
      %1972 = vmatpush1.bf16.msra.mxu0 0
      %1973 = vmatprep.subr.bf16.mxu0 0
      %1974 = vmatpush1.bf16.msra.mxu0 0
      %1975 = vmatprep.subr.bf16.mxu0 0
      %1976 = vmatpush1.bf16.msra.mxu0 0
      %1977 = vmatprep.mubr.bf16.mxu0 0
      %1978 = vmatmul.mubr.bf16.gmra.mrb[0].mxu0 %v1931
      %v1979 = vpop.f32.mrb[0].mxu0
      %v1980 = vadd.f32 0.0, %v1979
      %v1981 = vpop.f32.mrb[0].mxu0
      %v1982 = vpop.f32.mrb[0].mxu0
      %v1983 = vadd.f32 0.0, %v1982
      %v1984 = vpop.f32.mrb[0].mxu0
      %1985 = vmatprep.mubr.bf16.mxu0 0
      %1986 = vmatmul.mubr.bf16.gmra.mrb[0].mxu0 %v1934
      %v1987 = vpop.f32.mrb[0].mxu0
      %v1988 = vadd.f32 0.0, %v1987
      %v1989 = vpop.f32.mrb[0].mxu0
      %v1990 = vpop.f32.mrb[0].mxu0
      %v1991 = vadd.f32 0.0, %v1990
      %v1992 = vpop.f32.mrb[0].mxu0
      %1993 = vmatprep.mubr.bf16.mxu0 0
      %1994 = vmatmul.mubr.bf16.gmra.mrb[0].mxu0 %v1937
      %v1995 = vpop.f32.mrb[0].mxu0
      %v1996 = vadd.f32 0.0, %v1995
      %v1997 = vpop.f32.mrb[0].mxu0
      %v1998 = vpop.f32.mrb[0].mxu0
      %v1999 = vadd.f32 0.0, %v1998
      %v2000 = vpop.f32.mrb[0].mxu0
      %2001 = vmatprep.mubr.bf16.mxu0 0
      %2002 = vmatmul.mubr.bf16.gmra.mrb[0].mxu0 %v1940
      %v2003 = vpop.f32.mrb[0].mxu0
      %v2004 = vadd.f32 0.0, %v2003
      %v2005 = vpop.f32.mrb[0].mxu0
      %v2006 = vpop.f32.mrb[0].mxu0
      %v2007 = vadd.f32 0.0, %v2006
      %v2008 = vpop.f32.mrb[0].mxu0
      %2009 = vdwg.mxu0
      %v2010 = vadd.f32 %v1883, %v1980
      %v2011 = vadd.f32 %v1886, %v1983
      %v2012 = vadd.f32 %v1891, %v1988
      %v2013 = vadd.f32 %v1894, %v1991
      %v2014 = vadd.f32 %v1899, %v1996
      %v2015 = vadd.f32 %v1902, %v1999
      %v2016 = vadd.f32 %v1907, %v2004
      %v2017 = vadd.f32 %v1910, %v2007
      %v2018 = vld [vmem:[#allocation2 + $0x60] sm:$0xff]
      %v2019 = vld [vmem:[#allocation2 + $0x68] sm:$0xff]
      %v2020 = vld [vmem:[#allocation2 + $0x70] sm:$0xff]
      %v2021 = vld [vmem:[#allocation2 + $0x78] sm:$0xff]
      %s2022 = scalar_lea.vmem %s3, 36
      %v2023 = vld [vmem:[%s2022] sm:$0xf]
      %v2024 = vld [vmem:[%s2022 + $0x4] sm:$0xf]
      %v2025 = vld [vmem:[%s2022 + $0x8] sm:$0xf]
      %v2029 = vunpack.c.l.b16 %v2023
      %v2030 = vunpack.c.l.b16 %v2024
      %v2031 = vunpack.c.l.b16 %v2025
      %v2032 = vpack.c.b16 %v2030, %v2029
      %v2033 = vpack.c.b16 %v2031, %v2031
      %v2036 = vsel %vm1682, %v2018, 0
      %v2039 = vsel %vm1682, %v2019, 0
      %v2042 = vsel %vm1682, %v2020, 0
      %v2045 = vsel %vm1682, %v2021, 0
      %v2048 = vsel %vm1755, %v2033, 0
      %2050 = vmatprep.subr.bf16.mxu0 0
      %2051 = vmatpush1.bf16.msra.mxu0 %v2032
      %2052 = vmatprep.subr.bf16.mxu0 0
      %2053 = vmatpush1.bf16.msra.mxu0 %v2048
      %2054 = vmatprep.subr.bf16.mxu0 0
      %2055 = vmatpush1.bf16.msra.mxu0 0
      %2056 = vmatprep.subr.bf16.mxu0 0
      %2057 = vmatpush1.bf16.msra.mxu0 0
      %2058 = vmatprep.subr.bf16.mxu0 0
      %2059 = vmatpush1.bf16.msra.mxu0 0
      %2060 = vmatprep.subr.bf16.mxu0 0
      %2061 = vmatpush1.bf16.msra.mxu0 0
      %2062 = vmatprep.subr.bf16.mxu0 0
      %2063 = vmatpush1.bf16.msra.mxu0 0
      %2064 = vmatprep.subr.bf16.mxu0 0
      %2065 = vmatpush1.bf16.msra.mxu0 0
      %2066 = vmatprep.subr.bf16.mxu0 0
      %2067 = vmatpush1.bf16.msra.mxu0 0
      %2068 = vmatprep.subr.bf16.mxu0 0
      %2069 = vmatpush1.bf16.msra.mxu0 0
      %2070 = vmatprep.subr.bf16.mxu0 0
      %2071 = vmatpush1.bf16.msra.mxu0 0
      %2072 = vmatprep.subr.bf16.mxu0 0
      %2073 = vmatpush1.bf16.msra.mxu0 0
      %2074 = vmatprep.subr.bf16.mxu0 0
      %2075 = vmatpush1.bf16.msra.mxu0 0
      %2076 = vmatprep.subr.bf16.mxu0 0
      %2077 = vmatpush1.bf16.msra.mxu0 0
      %2078 = vmatprep.subr.bf16.mxu0 0
      %2079 = vmatpush1.bf16.msra.mxu0 0
      %2080 = vmatprep.subr.bf16.mxu0 0
      %2081 = vmatpush1.bf16.msra.mxu0 0
      %2082 = vmatprep.mubr.bf16.mxu0 0
      %2083 = vmatmul.mubr.bf16.gmra.mrb[0].mxu0 %v2036
      %v2084 = vpop.f32.mrb[0].mxu0
      %v2085 = vadd.f32 0.0, %v2084
      %v2086 = vpop.f32.mrb[0].mxu0
      %v2087 = vpop.f32.mrb[0].mxu0
      %v2088 = vadd.f32 0.0, %v2087
      %v2089 = vpop.f32.mrb[0].mxu0
      %2090 = vmatprep.mubr.bf16.mxu0 0
      %2091 = vmatmul.mubr.bf16.gmra.mrb[0].mxu0 %v2039
      %v2092 = vpop.f32.mrb[0].mxu0
      %v2093 = vadd.f32 0.0, %v2092
      %v2094 = vpop.f32.mrb[0].mxu0
      %v2095 = vpop.f32.mrb[0].mxu0
      %v2096 = vadd.f32 0.0, %v2095
      %v2097 = vpop.f32.mrb[0].mxu0
      %2098 = vmatprep.mubr.bf16.mxu0 0
      %2099 = vmatmul.mubr.bf16.gmra.mrb[0].mxu0 %v2042
      %v2100 = vpop.f32.mrb[0].mxu0
      %v2101 = vadd.f32 0.0, %v2100
      %v2102 = vpop.f32.mrb[0].mxu0
      %v2103 = vpop.f32.mrb[0].mxu0
      %v2104 = vadd.f32 0.0, %v2103
      %v2105 = vpop.f32.mrb[0].mxu0
      %2106 = vmatprep.mubr.bf16.mxu0 0
      %2107 = vmatmul.mubr.bf16.gmra.mrb[0].mxu0 %v2045
      %v2108 = vpop.f32.mrb[0].mxu0
      %v2109 = vadd.f32 0.0, %v2108
      %v2110 = vpop.f32.mrb[0].mxu0
      %v2111 = vpop.f32.mrb[0].mxu0
      %v2112 = vadd.f32 0.0, %v2111
      %v2113 = vpop.f32.mrb[0].mxu0
      %2114 = vdwg.mxu0
      %v2115 = vadd.f32 %v2010, %v2085
      %v2116 = vadd.f32 %v2011, %v2088
      %v2117 = vadd.f32 %v2012, %v2093
      %v2118 = vadd.f32 %v2013, %v2096
      %v2119 = vadd.f32 %v2014, %v2101
      %v2120 = vadd.f32 %v2015, %v2104
      %v2121 = vadd.f32 %v2016, %v2109
      %v2122 = vadd.f32 %v2017, %v2112
      %v2123 = vld [vmem:[#allocation2 + $0x80] sm:$0xff]
      %v2124 = vld [vmem:[#allocation2 + $0x88] sm:$0xff]
      %v2125 = vld [vmem:[#allocation2 + $0x90] sm:$0xff]
      %v2126 = vld [vmem:[#allocation2 + $0x98] sm:$0xff]
      %s2127 = scalar_lea.vmem %s3, 48
      %v2128 = vld [vmem:[%s2127] sm:$0xf]
      %v2129 = vld [vmem:[%s2127 + $0x4] sm:$0xf]
      %v2130 = vld [vmem:[%s2127 + $0x8] sm:$0xf]
      %v2134 = vunpack.c.l.b16 %v2128
      %v2135 = vunpack.c.l.b16 %v2129
      %v2136 = vunpack.c.l.b16 %v2130
      %v2137 = vpack.c.b16 %v2135, %v2134
      %v2138 = vpack.c.b16 %v2136, %v2136
      %v2141 = vsel %vm1682, %v2123, 0
      %v2144 = vsel %vm1682, %v2124, 0
      %v2147 = vsel %vm1682, %v2125, 0
      %v2150 = vsel %vm1682, %v2126, 0
      %v2153 = vsel %vm1755, %v2138, 0
      %2155 = vmatprep.subr.bf16.mxu0 0
      %2156 = vmatpush1.bf16.msra.mxu0 %v2137
      %2157 = vmatprep.subr.bf16.mxu0 0
      %2158 = vmatpush1.bf16.msra.mxu0 %v2153
      %2159 = vmatprep.subr.bf16.mxu0 0
      %2160 = vmatpush1.bf16.msra.mxu0 0
      %2161 = vmatprep.subr.bf16.mxu0 0
      %2162 = vmatpush1.bf16.msra.mxu0 0
      %2163 = vmatprep.subr.bf16.mxu0 0
      %2164 = vmatpush1.bf16.msra.mxu0 0
      %2165 = vmatprep.subr.bf16.mxu0 0
      %2166 = vmatpush1.bf16.msra.mxu0 0
      %2167 = vmatprep.subr.bf16.mxu0 0
      %2168 = vmatpush1.bf16.msra.mxu0 0
      %2169 = vmatprep.subr.bf16.mxu0 0
      %2170 = vmatpush1.bf16.msra.mxu0 0
      %2171 = vmatprep.subr.bf16.mxu0 0
      %2172 = vmatpush1.bf16.msra.mxu0 0
      %2173 = vmatprep.subr.bf16.mxu0 0
      %2174 = vmatpush1.bf16.msra.mxu0 0
      %2175 = vmatprep.subr.bf16.mxu0 0
      %2176 = vmatpush1.bf16.msra.mxu0 0
      %2177 = vmatprep.subr.bf16.mxu0 0
      %2178 = vmatpush1.bf16.msra.mxu0 0
      %2179 = vmatprep.subr.bf16.mxu0 0
      %2180 = vmatpush1.bf16.msra.mxu0 0
      %2181 = vmatprep.subr.bf16.mxu0 0
      %2182 = vmatpush1.bf16.msra.mxu0 0
      %2183 = vmatprep.subr.bf16.mxu0 0
      %2184 = vmatpush1.bf16.msra.mxu0 0
      %2185 = vmatprep.subr.bf16.mxu0 0
      %2186 = vmatpush1.bf16.msra.mxu0 0
      %2187 = vmatprep.mubr.bf16.mxu0 0
      %2188 = vmatmul.mubr.bf16.gmra.mrb[0].mxu0 %v2141
      %v2189 = vpop.f32.mrb[0].mxu0
      %v2190 = vadd.f32 0.0, %v2189
      %v2191 = vpop.f32.mrb[0].mxu0
      %v2192 = vpop.f32.mrb[0].mxu0
      %v2193 = vadd.f32 0.0, %v2192
      %v2194 = vpop.f32.mrb[0].mxu0
      %2195 = vmatprep.mubr.bf16.mxu0 0
      %2196 = vmatmul.mubr.bf16.gmra.mrb[0].mxu0 %v2144
      %v2197 = vpop.f32.mrb[0].mxu0
      %v2198 = vadd.f32 0.0, %v2197
      %v2199 = vpop.f32.mrb[0].mxu0
      %v2200 = vpop.f32.mrb[0].mxu0
      %v2201 = vadd.f32 0.0, %v2200
      %v2202 = vpop.f32.mrb[0].mxu0
      %2203 = vmatprep.mubr.bf16.mxu0 0
      %2204 = vmatmul.mubr.bf16.gmra.mrb[0].mxu0 %v2147
      %v2205 = vpop.f32.mrb[0].mxu0
      %v2206 = vadd.f32 0.0, %v2205
      %v2207 = vpop.f32.mrb[0].mxu0
      %v2208 = vpop.f32.mrb[0].mxu0
      %v2209 = vadd.f32 0.0, %v2208
      %v2210 = vpop.f32.mrb[0].mxu0
      %2211 = vmatprep.mubr.bf16.mxu0 0
      %2212 = vmatmul.mubr.bf16.gmra.mrb[0].mxu0 %v2150
      %v2213 = vpop.f32.mrb[0].mxu0
      %v2214 = vadd.f32 0.0, %v2213
      %v2215 = vpop.f32.mrb[0].mxu0
      %v2216 = vpop.f32.mrb[0].mxu0
      %v2217 = vadd.f32 0.0, %v2216
      %v2218 = vpop.f32.mrb[0].mxu0
      %2219 = vdwg.mxu0
      %v2220 = vadd.f32 %v2115, %v2190
      %v2221 = vadd.f32 %v2116, %v2193
      %v2222 = vadd.f32 %v2117, %v2198
      %v2223 = vadd.f32 %v2118, %v2201
      %v2224 = vadd.f32 %v2119, %v2206
      %v2225 = vadd.f32 %v2120, %v2209
      %v2226 = vadd.f32 %v2121, %v2214
      %v2227 = vadd.f32 %v2122, %v2217
      %v2228 = vld [vmem:[#allocation2 + $0xa0] sm:$0xff]
      %v2229 = vld [vmem:[#allocation2 + $0xa8] sm:$0xff]
      %v2230 = vld [vmem:[#allocation2 + $0xb0] sm:$0xff]
      %v2231 = vld [vmem:[#allocation2 + $0xb8] sm:$0xff]
      %s2232 = scalar_lea.vmem %s3, 60
      %v2233 = vld [vmem:[%s2232] sm:$0xf]
      %v2234 = vld [vmem:[%s2232 + $0x4] sm:$0xf]
      %v2235 = vld [vmem:[%s2232 + $0x8] sm:$0xf]
      %v2239 = vunpack.c.l.b16 %v2233
      %v2240 = vunpack.c.l.b16 %v2234
      %v2241 = vunpack.c.l.b16 %v2235
      %v2242 = vpack.c.b16 %v2240, %v2239
      %v2243 = vpack.c.b16 %v2241, %v2241
      %v2246 = vsel %vm1682, %v2228, 0
      %v2249 = vsel %vm1682, %v2229, 0
      %v2252 = vsel %vm1682, %v2230, 0
      %v2255 = vsel %vm1682, %v2231, 0
      %v2258 = vsel %vm1755, %v2243, 0
      %2260 = vmatprep.subr.bf16.mxu0 0
      %2261 = vmatpush1.bf16.msra.mxu0 %v2242
      %2262 = vmatprep.subr.bf16.mxu0 0
      %2263 = vmatpush1.bf16.msra.mxu0 %v2258
      %2264 = vmatprep.subr.bf16.mxu0 0
      %2265 = vmatpush1.bf16.msra.mxu0 0
      %2266 = vmatprep.subr.bf16.mxu0 0
      %2267 = vmatpush1.bf16.msra.mxu0 0
      %2268 = vmatprep.subr.bf16.mxu0 0
      %2269 = vmatpush1.bf16.msra.mxu0 0
      %2270 = vmatprep.subr.bf16.mxu0 0
      %2271 = vmatpush1.bf16.msra.mxu0 0
      %2272 = vmatprep.subr.bf16.mxu0 0
      %2273 = vmatpush1.bf16.msra.mxu0 0
      %2274 = vmatprep.subr.bf16.mxu0 0
      %2275 = vmatpush1.bf16.msra.mxu0 0
      %2276 = vmatprep.subr.bf16.mxu0 0
      %2277 = vmatpush1.bf16.msra.mxu0 0
      %2278 = vmatprep.subr.bf16.mxu0 0
      %2279 = vmatpush1.bf16.msra.mxu0 0
      %2280 = vmatprep.subr.bf16.mxu0 0
      %2281 = vmatpush1.bf16.msra.mxu0 0
      %2282 = vmatprep.subr.bf16.mxu0 0
      %2283 = vmatpush1.bf16.msra.mxu0 0
      %2284 = vmatprep.subr.bf16.mxu0 0
      %2285 = vmatpush1.bf16.msra.mxu0 0
      %2286 = vmatprep.subr.bf16.mxu0 0
      %2287 = vmatpush1.bf16.msra.mxu0 0
      %2288 = vmatprep.subr.bf16.mxu0 0
      %2289 = vmatpush1.bf16.msra.mxu0 0
      %2290 = vmatprep.subr.bf16.mxu0 0
      %2291 = vmatpush1.bf16.msra.mxu0 0
      %2292 = vmatprep.mubr.bf16.mxu0 0
      %2293 = vmatmul.mubr.bf16.gmra.mrb[0].mxu0 %v2246
      %v2294 = vpop.f32.mrb[0].mxu0
      %v2295 = vadd.f32 0.0, %v2294
      %v2296 = vpop.f32.mrb[0].mxu0
      %v2297 = vpop.f32.mrb[0].mxu0
      %v2298 = vadd.f32 0.0, %v2297
      %v2299 = vpop.f32.mrb[0].mxu0
      %2300 = vmatprep.mubr.bf16.mxu0 0
      %2301 = vmatmul.mubr.bf16.gmra.mrb[0].mxu0 %v2249
      %v2302 = vpop.f32.mrb[0].mxu0
      %v2303 = vadd.f32 0.0, %v2302
      %v2304 = vpop.f32.mrb[0].mxu0
      %v2305 = vpop.f32.mrb[0].mxu0
      %v2306 = vadd.f32 0.0, %v2305
      %v2307 = vpop.f32.mrb[0].mxu0
      %2308 = vmatprep.mubr.bf16.mxu0 0
      %2309 = vmatmul.mubr.bf16.gmra.mrb[0].mxu0 %v2252
      %v2310 = vpop.f32.mrb[0].mxu0
      %v2311 = vadd.f32 0.0, %v2310
      %v2312 = vpop.f32.mrb[0].mxu0
      %v2313 = vpop.f32.mrb[0].mxu0
      %v2314 = vadd.f32 0.0, %v2313
      %v2315 = vpop.f32.mrb[0].mxu0
      %2316 = vmatprep.mubr.bf16.mxu0 0
      %2317 = vmatmul.mubr.bf16.gmra.mrb[0].mxu0 %v2255
      %v2318 = vpop.f32.mrb[0].mxu0
      %v2319 = vadd.f32 0.0, %v2318
      %v2320 = vpop.f32.mrb[0].mxu0
      %v2321 = vpop.f32.mrb[0].mxu0
      %v2322 = vadd.f32 0.0, %v2321
      %v2323 = vpop.f32.mrb[0].mxu0
      %2324 = vdwg.mxu0
      %v2325 = vadd.f32 %v2220, %v2295
      %v2326 = vadd.f32 %v2221, %v2298
      %v2327 = vadd.f32 %v2222, %v2303
      %v2328 = vadd.f32 %v2223, %v2306
      %v2329 = vadd.f32 %v2224, %v2311
      %v2330 = vadd.f32 %v2225, %v2314
      %v2331 = vadd.f32 %v2226, %v2319
      %v2332 = vadd.f32 %v2227, %v2322
      %v2333 = vld [vmem:[#allocation2 + $0xc0] sm:$0xff]
      %v2334 = vld [vmem:[#allocation2 + $0xc8] sm:$0xff]
      %v2335 = vld [vmem:[#allocation2 + $0xd0] sm:$0xff]
      %v2336 = vld [vmem:[#allocation2 + $0xd8] sm:$0xff]
      %s2337 = scalar_lea.vmem %s3, 72
      %v2338 = vld [vmem:[%s2337] sm:$0xf]
      %v2339 = vld [vmem:[%s2337 + $0x4] sm:$0xf]
      %v2340 = vld [vmem:[%s2337 + $0x8] sm:$0xf]
      %v2344 = vunpack.c.l.b16 %v2338
      %v2345 = vunpack.c.l.b16 %v2339
      %v2346 = vunpack.c.l.b16 %v2340
      %v2347 = vpack.c.b16 %v2345, %v2344
      %v2348 = vpack.c.b16 %v2346, %v2346
      %v2351 = vsel %vm1682, %v2333, 0
      %v2354 = vsel %vm1682, %v2334, 0
      %v2357 = vsel %vm1682, %v2335, 0
      %v2360 = vsel %vm1682, %v2336, 0
      %v2363 = vsel %vm1755, %v2348, 0
      %2365 = vmatprep.subr.bf16.mxu0 0
      %2366 = vmatpush1.bf16.msra.mxu0 %v2347
      %2367 = vmatprep.subr.bf16.mxu0 0
      %2368 = vmatpush1.bf16.msra.mxu0 %v2363
      %2369 = vmatprep.subr.bf16.mxu0 0
      %2370 = vmatpush1.bf16.msra.mxu0 0
      %2371 = vmatprep.subr.bf16.mxu0 0
      %2372 = vmatpush1.bf16.msra.mxu0 0
      %2373 = vmatprep.subr.bf16.mxu0 0
      %2374 = vmatpush1.bf16.msra.mxu0 0
      %2375 = vmatprep.subr.bf16.mxu0 0
      %2376 = vmatpush1.bf16.msra.mxu0 0
      %2377 = vmatprep.subr.bf16.mxu0 0
      %2378 = vmatpush1.bf16.msra.mxu0 0
      %2379 = vmatprep.subr.bf16.mxu0 0
      %2380 = vmatpush1.bf16.msra.mxu0 0
      %2381 = vmatprep.subr.bf16.mxu0 0
      %2382 = vmatpush1.bf16.msra.mxu0 0
      %2383 = vmatprep.subr.bf16.mxu0 0
      %2384 = vmatpush1.bf16.msra.mxu0 0
      %2385 = vmatprep.subr.bf16.mxu0 0
      %2386 = vmatpush1.bf16.msra.mxu0 0
      %2387 = vmatprep.subr.bf16.mxu0 0
      %2388 = vmatpush1.bf16.msra.mxu0 0
      %2389 = vmatprep.subr.bf16.mxu0 0
      %2390 = vmatpush1.bf16.msra.mxu0 0
      %2391 = vmatprep.subr.bf16.mxu0 0
      %2392 = vmatpush1.bf16.msra.mxu0 0
      %2393 = vmatprep.subr.bf16.mxu0 0
      %2394 = vmatpush1.bf16.msra.mxu0 0
      %2395 = vmatprep.subr.bf16.mxu0 0
      %2396 = vmatpush1.bf16.msra.mxu0 0
      %2397 = vmatprep.mubr.bf16.mxu0 0
      %2398 = vmatmul.mubr.bf16.gmra.mrb[0].mxu0 %v2351
      %v2399 = vpop.f32.mrb[0].mxu0
      %v2400 = vadd.f32 0.0, %v2399
      %v2401 = vpop.f32.mrb[0].mxu0
      %v2402 = vpop.f32.mrb[0].mxu0
      %v2403 = vadd.f32 0.0, %v2402
      %v2404 = vpop.f32.mrb[0].mxu0
      %2405 = vmatprep.mubr.bf16.mxu0 0
      %2406 = vmatmul.mubr.bf16.gmra.mrb[0].mxu0 %v2354
      %v2407 = vpop.f32.mrb[0].mxu0
      %v2408 = vadd.f32 0.0, %v2407
      %v2409 = vpop.f32.mrb[0].mxu0
      %v2410 = vpop.f32.mrb[0].mxu0
      %v2411 = vadd.f32 0.0, %v2410
      %v2412 = vpop.f32.mrb[0].mxu0
      %2413 = vmatprep.mubr.bf16.mxu0 0
      %2414 = vmatmul.mubr.bf16.gmra.mrb[0].mxu0 %v2357
      %v2415 = vpop.f32.mrb[0].mxu0
      %v2416 = vadd.f32 0.0, %v2415
      %v2417 = vpop.f32.mrb[0].mxu0
      %v2418 = vpop.f32.mrb[0].mxu0
      %v2419 = vadd.f32 0.0, %v2418
      %v2420 = vpop.f32.mrb[0].mxu0
      %2421 = vmatprep.mubr.bf16.mxu0 0
      %2422 = vmatmul.mubr.bf16.gmra.mrb[0].mxu0 %v2360
      %v2423 = vpop.f32.mrb[0].mxu0
      %v2424 = vadd.f32 0.0, %v2423
      %v2425 = vpop.f32.mrb[0].mxu0
      %v2426 = vpop.f32.mrb[0].mxu0
      %v2427 = vadd.f32 0.0, %v2426
      %v2428 = vpop.f32.mrb[0].mxu0
      %2429 = vdwg.mxu0
      %v2430 = vadd.f32 %v2325, %v2400
      %v2431 = vadd.f32 %v2326, %v2403
      %v2432 = vadd.f32 %v2327, %v2408
      %v2433 = vadd.f32 %v2328, %v2411
      %v2434 = vadd.f32 %v2329, %v2416
      %v2435 = vadd.f32 %v2330, %v2419
      %v2436 = vadd.f32 %v2331, %v2424
      %v2437 = vadd.f32 %v2332, %v2427
      %v2438 = vld [vmem:[#allocation2 + $0xe0] sm:$0xff]
      %v2439 = vld [vmem:[#allocation2 + $0xe8] sm:$0xff]
      %v2440 = vld [vmem:[#allocation2 + $0xf0] sm:$0xff]
      %v2441 = vld [vmem:[#allocation2 + $0xf8] sm:$0xff]
      %s2442 = scalar_lea.vmem %s3, 84
      %v2443 = vld [vmem:[%s2442] sm:$0xf]
      %v2444 = vld [vmem:[%s2442 + $0x4] sm:$0xf]
      %v2445 = vld [vmem:[%s2442 + $0x8] sm:$0xf]
      %v2449 = vunpack.c.l.b16 %v2443
      %v2450 = vunpack.c.l.b16 %v2444
      %v2451 = vunpack.c.l.b16 %v2445
      %v2452 = vpack.c.b16 %v2450, %v2449
      %v2453 = vpack.c.b16 %v2451, %v2451
      %v2456 = vsel %vm1682, %v2438, 0
      %v2459 = vsel %vm1682, %v2439, 0
      %v2462 = vsel %vm1682, %v2440, 0
      %v2465 = vsel %vm1682, %v2441, 0
      %v2468 = vsel %vm1755, %v2453, 0
      %2470 = vmatprep.subr.bf16.mxu0 0
      %2471 = vmatpush1.bf16.msra.mxu0 %v2452
      %2472 = vmatprep.subr.bf16.mxu0 0
      %2473 = vmatpush1.bf16.msra.mxu0 %v2468
      %2474 = vmatprep.subr.bf16.mxu0 0
      %2475 = vmatpush1.bf16.msra.mxu0 0
      %2476 = vmatprep.subr.bf16.mxu0 0
      %2477 = vmatpush1.bf16.msra.mxu0 0
      %2478 = vmatprep.subr.bf16.mxu0 0
      %2479 = vmatpush1.bf16.msra.mxu0 0
      %2480 = vmatprep.subr.bf16.mxu0 0
      %2481 = vmatpush1.bf16.msra.mxu0 0
      %2482 = vmatprep.subr.bf16.mxu0 0
      %2483 = vmatpush1.bf16.msra.mxu0 0
      %2484 = vmatprep.subr.bf16.mxu0 0
      %2485 = vmatpush1.bf16.msra.mxu0 0
      %2486 = vmatprep.subr.bf16.mxu0 0
      %2487 = vmatpush1.bf16.msra.mxu0 0
      %2488 = vmatprep.subr.bf16.mxu0 0
      %2489 = vmatpush1.bf16.msra.mxu0 0
      %2490 = vmatprep.subr.bf16.mxu0 0
      %2491 = vmatpush1.bf16.msra.mxu0 0
      %2492 = vmatprep.subr.bf16.mxu0 0
      %2493 = vmatpush1.bf16.msra.mxu0 0
      %2494 = vmatprep.subr.bf16.mxu0 0
      %2495 = vmatpush1.bf16.msra.mxu0 0
      %2496 = vmatprep.subr.bf16.mxu0 0
      %2497 = vmatpush1.bf16.msra.mxu0 0
      %2498 = vmatprep.subr.bf16.mxu0 0
      %2499 = vmatpush1.bf16.msra.mxu0 0
      %2500 = vmatprep.subr.bf16.mxu0 0
      %2501 = vmatpush1.bf16.msra.mxu0 0
      %2502 = vmatprep.mubr.bf16.mxu0 0
      %2503 = vmatmul.mubr.bf16.gmra.mrb[0].mxu0 %v2456
      %v2504 = vpop.f32.mrb[0].mxu0
      %v2505 = vadd.f32 0.0, %v2504
      %v2506 = vpop.f32.mrb[0].mxu0
      %v2507 = vpop.f32.mrb[0].mxu0
      %v2508 = vadd.f32 0.0, %v2507
      %v2509 = vpop.f32.mrb[0].mxu0
      %2510 = vmatprep.mubr.bf16.mxu0 0
      %2511 = vmatmul.mubr.bf16.gmra.mrb[0].mxu0 %v2459
      %v2512 = vpop.f32.mrb[0].mxu0
      %v2513 = vadd.f32 0.0, %v2512
      %v2514 = vpop.f32.mrb[0].mxu0
      %v2515 = vpop.f32.mrb[0].mxu0
      %v2516 = vadd.f32 0.0, %v2515
      %v2517 = vpop.f32.mrb[0].mxu0
      %2518 = vmatprep.mubr.bf16.mxu0 0
      %2519 = vmatmul.mubr.bf16.gmra.mrb[0].mxu0 %v2462
      %v2520 = vpop.f32.mrb[0].mxu0
      %v2521 = vadd.f32 0.0, %v2520
      %v2522 = vpop.f32.mrb[0].mxu0
      %v2523 = vpop.f32.mrb[0].mxu0
      %v2524 = vadd.f32 0.0, %v2523
      %v2525 = vpop.f32.mrb[0].mxu0
      %2526 = vmatprep.mubr.bf16.mxu0 0
      %2527 = vmatmul.mubr.bf16.gmra.mrb[0].mxu0 %v2465
      %v2528 = vpop.f32.mrb[0].mxu0
      %v2529 = vadd.f32 0.0, %v2528
      %v2530 = vpop.f32.mrb[0].mxu0
      %v2531 = vpop.f32.mrb[0].mxu0
      %v2532 = vadd.f32 0.0, %v2531
      %v2533 = vpop.f32.mrb[0].mxu0
      %2534 = vdwg.mxu0
      %v2535 = vadd.f32 %v2430, %v2505
      %v2536 = vadd.f32 %v2431, %v2508
      %v2537 = vadd.f32 %v2432, %v2513
      %v2538 = vadd.f32 %v2433, %v2516
      %v2539 = vadd.f32 %v2434, %v2521
      %v2540 = vadd.f32 %v2435, %v2524
      %v2541 = vadd.f32 %v2436, %v2529
      %v2542 = vadd.f32 %v2437, %v2532
      %v2543 = vld [vmem:[#allocation2 + $0x100] sm:$0xff]
      %v2544 = vld [vmem:[#allocation2 + $0x108] sm:$0xff]
      %v2545 = vld [vmem:[#allocation2 + $0x110] sm:$0xff]
      %v2546 = vld [vmem:[#allocation2 + $0x118] sm:$0xff]
      %s2547 = scalar_lea.vmem %s3, 96
      %v2548 = vld [vmem:[%s2547] sm:$0xf]
      %v2549 = vld [vmem:[%s2547 + $0x4] sm:$0xf]
      %v2550 = vld [vmem:[%s2547 + $0x8] sm:$0xf]
      %v2554 = vunpack.c.l.b16 %v2548
      %v2555 = vunpack.c.l.b16 %v2549
      %v2556 = vunpack.c.l.b16 %v2550
      %v2557 = vpack.c.b16 %v2555, %v2554
      %v2558 = vpack.c.b16 %v2556, %v2556
      %v2561 = vsel %vm1682, %v2543, 0
      %v2564 = vsel %vm1682, %v2544, 0
      %v2567 = vsel %vm1682, %v2545, 0
      %v2570 = vsel %vm1682, %v2546, 0
      %v2573 = vsel %vm1755, %v2558, 0
      %2575 = vmatprep.subr.bf16.mxu0 0
      %2576 = vmatpush1.bf16.msra.mxu0 %v2557
      %2577 = vmatprep.subr.bf16.mxu0 0
      %2578 = vmatpush1.bf16.msra.mxu0 %v2573
      %2579 = vmatprep.subr.bf16.mxu0 0
      %2580 = vmatpush1.bf16.msra.mxu0 0
      %2581 = vmatprep.subr.bf16.mxu0 0
      %2582 = vmatpush1.bf16.msra.mxu0 0
      %2583 = vmatprep.subr.bf16.mxu0 0
      %2584 = vmatpush1.bf16.msra.mxu0 0
      %2585 = vmatprep.subr.bf16.mxu0 0
      %2586 = vmatpush1.bf16.msra.mxu0 0
      %2587 = vmatprep.subr.bf16.mxu0 0
      %2588 = vmatpush1.bf16.msra.mxu0 0
      %2589 = vmatprep.subr.bf16.mxu0 0
      %2590 = vmatpush1.bf16.msra.mxu0 0
      %2591 = vmatprep.subr.bf16.mxu0 0
      %2592 = vmatpush1.bf16.msra.mxu0 0
      %2593 = vmatprep.subr.bf16.mxu0 0
      %2594 = vmatpush1.bf16.msra.mxu0 0
      %2595 = vmatprep.subr.bf16.mxu0 0
      %2596 = vmatpush1.bf16.msra.mxu0 0
      %2597 = vmatprep.subr.bf16.mxu0 0
      %2598 = vmatpush1.bf16.msra.mxu0 0
      %2599 = vmatprep.subr.bf16.mxu0 0
      %2600 = vmatpush1.bf16.msra.mxu0 0
      %2601 = vmatprep.subr.bf16.mxu0 0
      %2602 = vmatpush1.bf16.msra.mxu0 0
      %2603 = vmatprep.subr.bf16.mxu0 0
      %2604 = vmatpush1.bf16.msra.mxu0 0
      %2605 = vmatprep.subr.bf16.mxu0 0
      %2606 = vmatpush1.bf16.msra.mxu0 0
      %2607 = vmatprep.mubr.bf16.mxu0 0
      %2608 = vmatmul.mubr.bf16.gmra.mrb[0].mxu0 %v2561
      %v2609 = vpop.f32.mrb[0].mxu0
      %v2610 = vadd.f32 0.0, %v2609
      %v2611 = vpop.f32.mrb[0].mxu0
      %v2612 = vpop.f32.mrb[0].mxu0
      %v2613 = vadd.f32 0.0, %v2612
      %v2614 = vpop.f32.mrb[0].mxu0
      %2615 = vmatprep.mubr.bf16.mxu0 0
      %2616 = vmatmul.mubr.bf16.gmra.mrb[0].mxu0 %v2564
      %v2617 = vpop.f32.mrb[0].mxu0
      %v2618 = vadd.f32 0.0, %v2617
      %v2619 = vpop.f32.mrb[0].mxu0
      %v2620 = vpop.f32.mrb[0].mxu0
      %v2621 = vadd.f32 0.0, %v2620
      %v2622 = vpop.f32.mrb[0].mxu0
      %2623 = vmatprep.mubr.bf16.mxu0 0
      %2624 = vmatmul.mubr.bf16.gmra.mrb[0].mxu0 %v2567
      %v2625 = vpop.f32.mrb[0].mxu0
      %v2626 = vadd.f32 0.0, %v2625
      %v2627 = vpop.f32.mrb[0].mxu0
      %v2628 = vpop.f32.mrb[0].mxu0
      %v2629 = vadd.f32 0.0, %v2628
      %v2630 = vpop.f32.mrb[0].mxu0
      %2631 = vmatprep.mubr.bf16.mxu0 0
      %2632 = vmatmul.mubr.bf16.gmra.mrb[0].mxu0 %v2570
      %v2633 = vpop.f32.mrb[0].mxu0
      %v2634 = vadd.f32 0.0, %v2633
      %v2635 = vpop.f32.mrb[0].mxu0
      %v2636 = vpop.f32.mrb[0].mxu0
      %v2637 = vadd.f32 0.0, %v2636
      %v2638 = vpop.f32.mrb[0].mxu0
      %2639 = vdwg.mxu0
      %v2640 = vadd.f32 %v2535, %v2610
      %v2641 = vadd.f32 %v2536, %v2613
      %v2642 = vadd.f32 %v2537, %v2618
      %v2643 = vadd.f32 %v2538, %v2621
      %v2644 = vadd.f32 %v2539, %v2626
      %v2645 = vadd.f32 %v2540, %v2629
      %v2646 = vadd.f32 %v2541, %v2634
      %v2647 = vadd.f32 %v2542, %v2637
      %v2648 = vld [vmem:[%s10 + $0x8] sm:$0x1]
      %v2649 = vlaneseq
      %v2650 = vshrl.u32 %v2649, 7
      %v2651 = vsub.s32 0, %v2650
      %v2652 = vrot.slane %v2648, %v2651
      %2654 = vrot.lane.b32.xlu0 %v2652, 96
      %v2655 = vpop.permute.xlu0 %2654
      %v2657 = vadd.f32 %v2640, %v2655
      %v2658 = vadd.f32 %v2641, %v2655
      %v2659 = vadd.f32 %v2642, %v2655
      %v2660 = vadd.f32 %v2643, %v2655
      %v2661 = vadd.f32 %v2644, %v2655
      %v2662 = vadd.f32 %v2645, %v2655
      %v2663 = vadd.f32 %v2646, %v2655
      %v2664 = vadd.f32 %v2647, %v2655
      %v2665 = vmax.f32 %v2657, 0.0
      %v2666 = vmax.f32 %v2658, 0.0
      %v2667 = vmax.f32 %v2659, 0.0
      %v2668 = vmax.f32 %v2660, 0.0
      %v2669 = vmax.f32 %v2661, 0.0
      %v2670 = vmax.f32 %v2662, 0.0
      %v2671 = vmax.f32 %v2663, 0.0
      %v2672 = vmax.f32 %v2664, 0.0
      %v2673 = vld [vmem:[%s10 + $0x9] sm:$0x1]
      %v2674 = vlaneseq
      %v2675 = vshrl.u32 %v2674, 7
      %v2676 = vsub.s32 0, %v2675
      %v2677 = vrot.slane %v2673, %v2676
      %2679 = vrot.lane.b32.xlu0 %v2677, 96
      %v2680 = vpop.permute.xlu0 %2679
      %v2682 = vmul.f32 %v2665, %v2680
      %v2683 = vmul.f32 %v2666, %v2680
      %v2684 = vmul.f32 %v2667, %v2680
      %v2685 = vmul.f32 %v2668, %v2680
      %v2686 = vmul.f32 %v2669, %v2680
      %v2687 = vmul.f32 %v2670, %v2680
      %v2688 = vmul.f32 %v2671, %v2680
      %v2689 = vmul.f32 %v2672, %v2680
      %v2690 = vld [vmem:[%s10 + $0xa] sm:$0x1]
      %v2691 = vlaneseq
      %v2692 = vshrl.u32 %v2691, 7
      %v2693 = vsub.s32 0, %v2692
      %v2694 = vrot.slane %v2690, %v2693
      %2696 = vrot.lane.b32.xlu0 %v2694, 96
      %v2697 = vpop.permute.xlu0 %2696
      %v2699 = vadd.f32 %v2682, %v2697
      %v2700 = vadd.f32 %v2683, %v2697
      %v2701 = vadd.f32 %v2684, %v2697
      %v2702 = vadd.f32 %v2685, %v2697
      %v2703 = vadd.f32 %v2686, %v2697
      %v2704 = vadd.f32 %v2687, %v2697
      %v2705 = vadd.f32 %v2688, %v2697
      %v2706 = vadd.f32 %v2689, %v2697
      %v2707 = vld [vmem:[%s4] sm:$0xf]
      %v2708 = vld [vmem:[%s4 + $0x4] sm:$0xf]
      %v2709 = vld [vmem:[%s4 + $0x8] sm:$0xf]
      %v2710 = vld [vmem:[%s4 + $0xc] sm:$0xf]
      %v2711 = vld [vmem:[%s4 + $0x10] sm:$0xf]
      %v2712 = vld [vmem:[%s4 + $0x14] sm:$0xf]
      %v2713 = vld [vmem:[%s4 + $0x18] sm:$0xf]
      %v2714 = vld [vmem:[%s4 + $0x1c] sm:$0xf]
      %v2715 = vld [vmem:[%s4 + $0x20] sm:$0xf]
      %v2716 = vld [vmem:[%s4 + $0x24] sm:$0xf]
      %v2717 = vld [vmem:[%s4 + $0x28] sm:$0xf]
      %v2718 = vld [vmem:[%s4 + $0x2c] sm:$0xf]
      %v2719 = vld [vmem:[%s4 + $0x30] sm:$0xf]
      %v2720 = vld [vmem:[%s4 + $0x34] sm:$0xf]
      %v2721 = vld [vmem:[%s4 + $0x38] sm:$0xf]
      %v2722 = vld [vmem:[%s4 + $0x3c] sm:$0xf]
      %v2723 = vld [vmem:[%s4 + $0x40] sm:$0xf]
      %v2724 = vld [vmem:[%s4 + $0x44] sm:$0xf]
      %v2725 = vpack.c.bf16 %v2700, %v2699
      %v2726 = vpack.c.bf16 %v2702, %v2701
      %v2727 = vpack.c.bf16 %v2704, %v2703
      %v2728 = vpack.c.bf16 %v2706, %v2705
      %v2747 = vunpack.c.l.b16 %v2707
      %v2748 = vunpack.c.l.b16 %v2708
      %v2749 = vunpack.c.l.b16 %v2709
      %v2750 = vunpack.c.l.b16 %v2710
      %v2751 = vunpack.c.l.b16 %v2711
      %v2752 = vunpack.c.l.b16 %v2712
      %v2753 = vunpack.c.l.b16 %v2713
      %v2754 = vunpack.c.l.b16 %v2714
      %v2755 = vunpack.c.l.b16 %v2715
      %v2756 = vunpack.c.l.b16 %v2716
      %v2757 = vunpack.c.l.b16 %v2717
      %v2758 = vunpack.c.l.b16 %v2718
      %v2759 = vunpack.c.l.b16 %v2719
      %v2760 = vunpack.c.l.b16 %v2720
      %v2761 = vunpack.c.l.b16 %v2721
      %v2762 = vunpack.c.l.b16 %v2722
      %v2763 = vunpack.c.l.b16 %v2723
      %v2764 = vunpack.c.l.b16 %v2724
      %v2765 = vpack.c.b16 %v2748, %v2747
      %v2766 = vpack.c.b16 %v2750, %v2749
      %v2767 = vpack.c.b16 %v2752, %v2751
      %v2768 = vpack.c.b16 %v2754, %v2753
      %v2769 = vpack.c.b16 %v2756, %v2755
      %v2770 = vpack.c.b16 %v2758, %v2757
      %v2771 = vpack.c.b16 %v2760, %v2759
      %v2772 = vpack.c.b16 %v2762, %v2761
      %v2773 = vpack.c.b16 %v2764, %v2763
      %vm2774 = vcmask 523264
      %v2776 = vsel %vm2774, %v2765, 0
      %v2779 = vsel %vm2774, %v2766, 0
      %v2782 = vsel %vm2774, %v2767, 0
      %v2785 = vsel %vm2774, %v2768, 0
      %v2788 = vsel %vm2774, %v2769, 0
      %v2791 = vsel %vm2774, %v2770, 0
      %v2794 = vsel %vm2774, %v2771, 0
      %v2797 = vsel %vm2774, %v2772, 0
      %v2800 = vsel %vm2774, %v2773, 0
      %2802 = vmatprep.subr.bf16.mxu0 0
      %2803 = vmatpush1.bf16.msra.mxu0 %v2725
      %2804 = vmatprep.subr.bf16.mxu0 0
      %2805 = vmatpush1.bf16.msra.mxu0 %v2726
      %2806 = vmatprep.subr.bf16.mxu0 0
      %2807 = vmatpush1.bf16.msra.mxu0 %v2727
      %2808 = vmatprep.subr.bf16.mxu0 0
      %2809 = vmatpush1.bf16.msra.mxu0 %v2728
      %2810 = vmatprep.subr.bf16.mxu0 0
      %2811 = vmatpush1.bf16.msra.mxu0 0
      %2812 = vmatprep.subr.bf16.mxu0 0
      %2813 = vmatpush1.bf16.msra.mxu0 0
      %2814 = vmatprep.subr.bf16.mxu0 0
      %2815 = vmatpush1.bf16.msra.mxu0 0
      %2816 = vmatprep.subr.bf16.mxu0 0
      %2817 = vmatpush1.bf16.msra.mxu0 0
      %2818 = vmatprep.subr.bf16.mxu0 0
      %2819 = vmatpush1.bf16.msra.mxu0 0
      %2820 = vmatprep.subr.bf16.mxu0 0
      %2821 = vmatpush1.bf16.msra.mxu0 0
      %2822 = vmatprep.subr.bf16.mxu0 0
      %2823 = vmatpush1.bf16.msra.mxu0 0
      %2824 = vmatprep.subr.bf16.mxu0 0
      %2825 = vmatpush1.bf16.msra.mxu0 0
      %2826 = vmatprep.subr.bf16.mxu0 0
      %2827 = vmatpush1.bf16.msra.mxu0 0
      %2828 = vmatprep.subr.bf16.mxu0 0
      %2829 = vmatpush1.bf16.msra.mxu0 0
      %2830 = vmatprep.subr.bf16.mxu0 0
      %2831 = vmatpush1.bf16.msra.mxu0 0
      %2832 = vmatprep.subr.bf16.mxu0 0
      %2833 = vmatpush1.bf16.msra.mxu0 0
      %2834 = vmatprep.mubr.bf16.mxu0 0
      %2835 = vmatmul.mubr.bf16.gmra.mrb[0].mxu0 %v2776
      %v2836 = vpop.f32.mrb[0].mxu0
      %v2837 = vadd.f32 0.0, %v2836
      %v2838 = vpop.f32.mrb[0].mxu0
      %v2839 = vpop.f32.mrb[0].mxu0
      %v2840 = vadd.f32 0.0, %v2839
      %v2841 = vpop.f32.mrb[0].mxu0
      %2842 = vmatprep.mubr.bf16.mxu0 0
      %2843 = vmatmul.mubr.bf16.gmra.mrb[0].mxu0 %v2779
      %v2844 = vpop.f32.mrb[0].mxu0
      %v2845 = vadd.f32 0.0, %v2844
      %v2846 = vpop.f32.mrb[0].mxu0
      %v2847 = vpop.f32.mrb[0].mxu0
      %v2848 = vadd.f32 0.0, %v2847
      %v2849 = vpop.f32.mrb[0].mxu0
      %2850 = vmatprep.mubr.bf16.mxu0 0
      %2851 = vmatmul.mubr.bf16.gmra.mrb[0].mxu0 %v2782
      %v2852 = vpop.f32.mrb[0].mxu0
      %v2853 = vadd.f32 0.0, %v2852
      %v2854 = vpop.f32.mrb[0].mxu0
      %v2855 = vpop.f32.mrb[0].mxu0
      %v2856 = vadd.f32 0.0, %v2855
      %v2857 = vpop.f32.mrb[0].mxu0
      %2858 = vmatprep.mubr.bf16.mxu0 0
      %2859 = vmatmul.mubr.bf16.gmra.mrb[0].mxu0 %v2785
      %v2860 = vpop.f32.mrb[0].mxu0
      %v2861 = vadd.f32 0.0, %v2860
      %v2862 = vpop.f32.mrb[0].mxu0
      %v2863 = vpop.f32.mrb[0].mxu0
      %v2864 = vadd.f32 0.0, %v2863
      %v2865 = vpop.f32.mrb[0].mxu0
      %2866 = vmatprep.mubr.bf16.mxu0 0
      %2867 = vmatmul.mubr.bf16.gmra.mrb[0].mxu0 %v2788
      %v2868 = vpop.f32.mrb[0].mxu0
      %v2869 = vadd.f32 0.0, %v2868
      %v2870 = vpop.f32.mrb[0].mxu0
      %v2871 = vpop.f32.mrb[0].mxu0
      %v2872 = vadd.f32 0.0, %v2871
      %v2873 = vpop.f32.mrb[0].mxu0
      %2874 = vmatprep.mubr.bf16.mxu0 0
      %2875 = vmatmul.mubr.bf16.gmra.mrb[0].mxu0 %v2791
      %v2876 = vpop.f32.mrb[0].mxu0
      %v2877 = vadd.f32 0.0, %v2876
      %v2878 = vpop.f32.mrb[0].mxu0
      %v2879 = vpop.f32.mrb[0].mxu0
      %v2880 = vadd.f32 0.0, %v2879
      %v2881 = vpop.f32.mrb[0].mxu0
      %2882 = vmatprep.mubr.bf16.mxu0 0
      %2883 = vmatmul.mubr.bf16.gmra.mrb[0].mxu0 %v2794
      %v2884 = vpop.f32.mrb[0].mxu0
      %v2885 = vadd.f32 0.0, %v2884
      %v2886 = vpop.f32.mrb[0].mxu0
      %v2887 = vpop.f32.mrb[0].mxu0
      %v2888 = vadd.f32 0.0, %v2887
      %v2889 = vpop.f32.mrb[0].mxu0
      %2890 = vmatprep.mubr.bf16.mxu0 0
      %2891 = vmatmul.mubr.bf16.gmra.mrb[0].mxu0 %v2797
      %v2892 = vpop.f32.mrb[0].mxu0
      %v2893 = vadd.f32 0.0, %v2892
      %v2894 = vpop.f32.mrb[0].mxu0
      %v2895 = vpop.f32.mrb[0].mxu0
      %v2896 = vadd.f32 0.0, %v2895
      %v2897 = vpop.f32.mrb[0].mxu0
      %2898 = vmatprep.mubr.bf16.mxu0 0
      %2899 = vmatmul.mubr.bf16.gmra.mrb[0].mxu0 %v2800
      %v2900 = vpop.f32.mrb[0].mxu0
      %v2901 = vadd.f32 0.0, %v2900
      %v2902 = vpop.f32.mrb[0].mxu0
      %v2903 = vpop.f32.mrb[0].mxu0
      %v2904 = vadd.f32 0.0, %v2903
      %v2905 = vpop.f32.mrb[0].mxu0
      %2906 = vdwg.mxu0
      %v2907 = vpack.c.bf16 %v2840, %v2837
      %v2908 = vpack.c.bf16 %v2848, %v2845
      %v2909 = vpack.c.bf16 %v2856, %v2853
      %v2910 = vpack.c.bf16 %v2864, %v2861
      %v2911 = vpack.c.bf16 %v2872, %v2869
      %v2912 = vpack.c.bf16 %v2880, %v2877
      %v2913 = vpack.c.bf16 %v2888, %v2885
      %v2914 = vpack.c.bf16 %v2896, %v2893
      %v2915 = vpack.c.bf16 %v2904, %v2901
      %vm2916 = vcmask 392192
      %2917 = vst.msk [vmem:[#allocation3] sm:$0xff] %vm2916, %v2907
      %2918 = vst.msk [vmem:[#allocation3 + $0x8] sm:$0xff] %vm2916, %v2908
      %2919 = vst.msk [vmem:[#allocation3 + $0x10] sm:$0xff] %vm2916, %v2909
      %2920 = vst.msk [vmem:[#allocation3 + $0x18] sm:$0xff] %vm2916, %v2910
      %2921 = vst.msk [vmem:[#allocation3 + $0x20] sm:$0xff] %vm2916, %v2911
      %2922 = vst.msk [vmem:[#allocation3 + $0x28] sm:$0xff] %vm2916, %v2912
      %2923 = vst.msk [vmem:[#allocation3 + $0x30] sm:$0xff] %vm2916, %v2913
      %2924 = vst.msk [vmem:[#allocation3 + $0x38] sm:$0xff] %vm2916, %v2914
      %2925 = vst.msk [vmem:[#allocation3 + $0x40] sm:$0xff] %vm2916, %v2915
      %v2926 = vld [vmem:[#allocation3] sm:$0xff]
      %v2927 = vld [vmem:[%s5] sm:$0xf]
      %v2928 = vld [vmem:[%s5 + $0x4] sm:$0xf]
      %v2929 = vld [vmem:[%s5 + $0x8] sm:$0xf]
      %v2930 = vld [vmem:[%s5 + $0xc] sm:$0xf]
      %v2931 = vld [vmem:[%s5 + $0x10] sm:$0xf]
      %v2932 = vld [vmem:[%s5 + $0x14] sm:$0xf]
      %v2933 = vld [vmem:[#allocation3 + $0x8] sm:$0xff]
      %s2934 = scalar_lea.vmem %s5, 24
      %v2935 = vld [vmem:[%s2934] sm:$0xf]
      %v2936 = vld [vmem:[%s2934 + $0x4] sm:$0xf]
      %v2937 = vld [vmem:[%s2934 + $0x8] sm:$0xf]
      %v2938 = vld [vmem:[%s2934 + $0xc] sm:$0xf]
      %v2939 = vld [vmem:[%s2934 + $0x10] sm:$0xf]
      %v2940 = vld [vmem:[%s2934 + $0x14] sm:$0xf]
      %v2947 = vunpack.c.l.b16 %v2935
      %v2948 = vunpack.c.l.b16 %v2936
      %v2949 = vunpack.c.l.b16 %v2937
      %v2950 = vunpack.c.l.b16 %v2938
      %v2951 = vunpack.c.l.b16 %v2939
      %v2952 = vunpack.c.l.b16 %v2940
      %v2953 = vpack.c.b16 %v2948, %v2947
      %v2954 = vpack.c.b16 %v2950, %v2949
      %v2955 = vpack.c.b16 %v2952, %v2951
      %v2960 = vsel %vm2916, %v2933, 0
      %2962 = vmatprep.subr.bf16.mxu0 0
      %2963 = vmatpush1.bf16.msra.mxu0 %v2953
      %2964 = vmatprep.subr.bf16.mxu0 0
      %2965 = vmatpush1.bf16.msra.mxu0 %v2954
      %2966 = vmatprep.subr.bf16.mxu0 0
      %2967 = vmatpush1.bf16.msra.mxu0 %v2955
      %2968 = vmatprep.subr.bf16.mxu0 0
      %2969 = vmatpush1.bf16.msra.mxu0 0
      %2970 = vmatprep.subr.bf16.mxu0 0
      %2971 = vmatpush1.bf16.msra.mxu0 0
      %2972 = vmatprep.subr.bf16.mxu0 0
      %2973 = vmatpush1.bf16.msra.mxu0 0
      %2974 = vmatprep.subr.bf16.mxu0 0
      %2975 = vmatpush1.bf16.msra.mxu0 0
      %2976 = vmatprep.subr.bf16.mxu0 0
      %2977 = vmatpush1.bf16.msra.mxu0 0
      %2978 = vmatprep.subr.bf16.mxu0 0
      %2979 = vmatpush1.bf16.msra.mxu0 0
      %2980 = vmatprep.subr.bf16.mxu0 0
      %2981 = vmatpush1.bf16.msra.mxu0 0
      %2982 = vmatprep.subr.bf16.mxu0 0
      %2983 = vmatpush1.bf16.msra.mxu0 0
      %2984 = vmatprep.subr.bf16.mxu0 0
      %2985 = vmatpush1.bf16.msra.mxu0 0
      %2986 = vmatprep.subr.bf16.mxu0 0
      %2987 = vmatpush1.bf16.msra.mxu0 0
      %2988 = vmatprep.subr.bf16.mxu0 0
      %2989 = vmatpush1.bf16.msra.mxu0 0
      %2990 = vmatprep.subr.bf16.mxu0 0
      %2991 = vmatpush1.bf16.msra.mxu0 0
      %2992 = vmatprep.subr.bf16.mxu0 0
      %2993 = vmatpush1.bf16.msra.mxu0 0
      %2994 = vmatprep.mubr.bf16.mxu0 0
      %2995 = vmatmul.mubr.bf16.gmra.mrb[0].mxu0 %v2960
      %v2996 = vpop.f32.mrb[0].mxu0
      %v2997 = vadd.f32 0.0, %v2996
      %v2998 = vpop.f32.mrb[0].mxu0
      %v2999 = vpop.f32.mrb[0].mxu0
      %v3000 = vadd.f32 0.0, %v2999
      %v3001 = vpop.f32.mrb[0].mxu0
      %3002 = vdwg.mxu0
      %v3009 = vunpack.c.l.b16 %v2927
      %v3010 = vunpack.c.l.b16 %v2928
      %v3011 = vunpack.c.l.b16 %v2929
      %v3012 = vunpack.c.l.b16 %v2930
      %v3013 = vunpack.c.l.b16 %v2931
      %v3014 = vunpack.c.l.b16 %v2932
      %v3015 = vpack.c.b16 %v3010, %v3009
      %v3016 = vpack.c.b16 %v3012, %v3011
      %v3017 = vpack.c.b16 %v3014, %v3013
      %v3022 = vsel %vm2916, %v2926, 0
      %3024 = vmatprep.subr.bf16.mxu0 0
      %3025 = vmatpush1.bf16.msra.mxu0 %v3015
      %3026 = vmatprep.subr.bf16.mxu0 0
      %3027 = vmatpush1.bf16.msra.mxu0 %v3016
      %3028 = vmatprep.subr.bf16.mxu0 0
      %3029 = vmatpush1.bf16.msra.mxu0 %v3017
      %3030 = vmatprep.subr.bf16.mxu0 0
      %3031 = vmatpush1.bf16.msra.mxu0 0
      %3032 = vmatprep.subr.bf16.mxu0 0
      %3033 = vmatpush1.bf16.msra.mxu0 0
      %3034 = vmatprep.subr.bf16.mxu0 0
      %3035 = vmatpush1.bf16.msra.mxu0 0
      %3036 = vmatprep.subr.bf16.mxu0 0
      %3037 = vmatpush1.bf16.msra.mxu0 0
      %3038 = vmatprep.subr.bf16.mxu0 0
      %3039 = vmatpush1.bf16.msra.mxu0 0
      %3040 = vmatprep.subr.bf16.mxu0 0
      %3041 = vmatpush1.bf16.msra.mxu0 0
      %3042 = vmatprep.subr.bf16.mxu0 0
      %3043 = vmatpush1.bf16.msra.mxu0 0
      %3044 = vmatprep.subr.bf16.mxu0 0
      %3045 = vmatpush1.bf16.msra.mxu0 0
      %3046 = vmatprep.subr.bf16.mxu0 0
      %3047 = vmatpush1.bf16.msra.mxu0 0
      %3048 = vmatprep.subr.bf16.mxu0 0
      %3049 = vmatpush1.bf16.msra.mxu0 0
      %3050 = vmatprep.subr.bf16.mxu0 0
      %3051 = vmatpush1.bf16.msra.mxu0 0
      %3052 = vmatprep.subr.bf16.mxu0 0
      %3053 = vmatpush1.bf16.msra.mxu0 0
      %3054 = vmatprep.subr.bf16.mxu0 0
      %3055 = vmatpush1.bf16.msra.mxu0 0
      %3056 = vmatprep.mubr.bf16.mxu0 0
      %3057 = vmatmul.mubr.bf16.gmra.mrb[0].mxu0 %v3022
      %v3058 = vpop.f32.mrb[0].mxu0
      %v3059 = vadd.f32 %v2997, %v3058
      %v3060 = vpop.f32.mrb[0].mxu0
      %v3061 = vpop.f32.mrb[0].mxu0
      %v3062 = vadd.f32 %v3000, %v3061
      %v3063 = vpop.f32.mrb[0].mxu0
      %3064 = vdwg.mxu0
      %v3065 = vld [vmem:[#allocation3 + $0x10] sm:$0xff]
      %s3066 = scalar_lea.vmem %s5, 48
      %v3067 = vld [vmem:[%s3066] sm:$0xf]
      %v3068 = vld [vmem:[%s3066 + $0x4] sm:$0xf]
      %v3069 = vld [vmem:[%s3066 + $0x8] sm:$0xf]
      %v3070 = vld [vmem:[%s3066 + $0xc] sm:$0xf]
      %v3071 = vld [vmem:[%s3066 + $0x10] sm:$0xf]
      %v3072 = vld [vmem:[%s3066 + $0x14] sm:$0xf]
      %v3079 = vunpack.c.l.b16 %v3067
      %v3080 = vunpack.c.l.b16 %v3068
      %v3081 = vunpack.c.l.b16 %v3069
      %v3082 = vunpack.c.l.b16 %v3070
      %v3083 = vunpack.c.l.b16 %v3071
      %v3084 = vunpack.c.l.b16 %v3072
      %v3085 = vpack.c.b16 %v3080, %v3079
      %v3086 = vpack.c.b16 %v3082, %v3081
      %v3087 = vpack.c.b16 %v3084, %v3083
      %v3092 = vsel %vm2916, %v3065, 0
      %3094 = vmatprep.subr.bf16.mxu0 0
      %3095 = vmatpush1.bf16.msra.mxu0 %v3085
      %3096 = vmatprep.subr.bf16.mxu0 0
      %3097 = vmatpush1.bf16.msra.mxu0 %v3086
      %3098 = vmatprep.subr.bf16.mxu0 0
      %3099 = vmatpush1.bf16.msra.mxu0 %v3087
      %3100 = vmatprep.subr.bf16.mxu0 0
      %3101 = vmatpush1.bf16.msra.mxu0 0
      %3102 = vmatprep.subr.bf16.mxu0 0
      %3103 = vmatpush1.bf16.msra.mxu0 0
      %3104 = vmatprep.subr.bf16.mxu0 0
      %3105 = vmatpush1.bf16.msra.mxu0 0
      %3106 = vmatprep.subr.bf16.mxu0 0
      %3107 = vmatpush1.bf16.msra.mxu0 0
      %3108 = vmatprep.subr.bf16.mxu0 0
      %3109 = vmatpush1.bf16.msra.mxu0 0
      %3110 = vmatprep.subr.bf16.mxu0 0
      %3111 = vmatpush1.bf16.msra.mxu0 0
      %3112 = vmatprep.subr.bf16.mxu0 0
      %3113 = vmatpush1.bf16.msra.mxu0 0
      %3114 = vmatprep.subr.bf16.mxu0 0
      %3115 = vmatpush1.bf16.msra.mxu0 0
      %3116 = vmatprep.subr.bf16.mxu0 0
      %3117 = vmatpush1.bf16.msra.mxu0 0
      %3118 = vmatprep.subr.bf16.mxu0 0
      %3119 = vmatpush1.bf16.msra.mxu0 0
      %3120 = vmatprep.subr.bf16.mxu0 0
      %3121 = vmatpush1.bf16.msra.mxu0 0
      %3122 = vmatprep.subr.bf16.mxu0 0
      %3123 = vmatpush1.bf16.msra.mxu0 0
      %3124 = vmatprep.subr.bf16.mxu0 0
      %3125 = vmatpush1.bf16.msra.mxu0 0
      %3126 = vmatprep.mubr.bf16.mxu0 0
      %3127 = vmatmul.mubr.bf16.gmra.mrb[0].mxu0 %v3092
      %v3128 = vpop.f32.mrb[0].mxu0
      %v3129 = vadd.f32 0.0, %v3128
      %v3130 = vpop.f32.mrb[0].mxu0
      %v3131 = vpop.f32.mrb[0].mxu0
      %v3132 = vadd.f32 0.0, %v3131
      %v3133 = vpop.f32.mrb[0].mxu0
      %3134 = vdwg.mxu0
      %v3135 = vadd.f32 %v3059, %v3129
      %v3136 = vadd.f32 %v3062, %v3132
      %v3137 = vld [vmem:[#allocation3 + $0x18] sm:$0xff]
      %s3138 = scalar_lea.vmem %s5, 72
      %v3139 = vld [vmem:[%s3138] sm:$0xf]
      %v3140 = vld [vmem:[%s3138 + $0x4] sm:$0xf]
      %v3141 = vld [vmem:[%s3138 + $0x8] sm:$0xf]
      %v3142 = vld [vmem:[%s3138 + $0xc] sm:$0xf]
      %v3143 = vld [vmem:[%s3138 + $0x10] sm:$0xf]
      %v3144 = vld [vmem:[%s3138 + $0x14] sm:$0xf]
      %v3151 = vunpack.c.l.b16 %v3139
      %v3152 = vunpack.c.l.b16 %v3140
      %v3153 = vunpack.c.l.b16 %v3141
      %v3154 = vunpack.c.l.b16 %v3142
      %v3155 = vunpack.c.l.b16 %v3143
      %v3156 = vunpack.c.l.b16 %v3144
      %v3157 = vpack.c.b16 %v3152, %v3151
      %v3158 = vpack.c.b16 %v3154, %v3153
      %v3159 = vpack.c.b16 %v3156, %v3155
      %v3164 = vsel %vm2916, %v3137, 0
      %3166 = vmatprep.subr.bf16.mxu0 0
      %3167 = vmatpush1.bf16.msra.mxu0 %v3157
      %3168 = vmatprep.subr.bf16.mxu0 0
      %3169 = vmatpush1.bf16.msra.mxu0 %v3158
      %3170 = vmatprep.subr.bf16.mxu0 0
      %3171 = vmatpush1.bf16.msra.mxu0 %v3159
      %3172 = vmatprep.subr.bf16.mxu0 0
      %3173 = vmatpush1.bf16.msra.mxu0 0
      %3174 = vmatprep.subr.bf16.mxu0 0
      %3175 = vmatpush1.bf16.msra.mxu0 0
      %3176 = vmatprep.subr.bf16.mxu0 0
      %3177 = vmatpush1.bf16.msra.mxu0 0
      %3178 = vmatprep.subr.bf16.mxu0 0
      %3179 = vmatpush1.bf16.msra.mxu0 0
      %3180 = vmatprep.subr.bf16.mxu0 0
      %3181 = vmatpush1.bf16.msra.mxu0 0
      %3182 = vmatprep.subr.bf16.mxu0 0
      %3183 = vmatpush1.bf16.msra.mxu0 0
      %3184 = vmatprep.subr.bf16.mxu0 0
      %3185 = vmatpush1.bf16.msra.mxu0 0
      %3186 = vmatprep.subr.bf16.mxu0 0
      %3187 = vmatpush1.bf16.msra.mxu0 0
      %3188 = vmatprep.subr.bf16.mxu0 0
      %3189 = vmatpush1.bf16.msra.mxu0 0
      %3190 = vmatprep.subr.bf16.mxu0 0
      %3191 = vmatpush1.bf16.msra.mxu0 0
      %3192 = vmatprep.subr.bf16.mxu0 0
      %3193 = vmatpush1.bf16.msra.mxu0 0
      %3194 = vmatprep.subr.bf16.mxu0 0
      %3195 = vmatpush1.bf16.msra.mxu0 0
      %3196 = vmatprep.subr.bf16.mxu0 0
      %3197 = vmatpush1.bf16.msra.mxu0 0
      %3198 = vmatprep.mubr.bf16.mxu0 0
      %3199 = vmatmul.mubr.bf16.gmra.mrb[0].mxu0 %v3164
      %v3200 = vpop.f32.mrb[0].mxu0
      %v3201 = vadd.f32 0.0, %v3200
      %v3202 = vpop.f32.mrb[0].mxu0
      %v3203 = vpop.f32.mrb[0].mxu0
      %v3204 = vadd.f32 0.0, %v3203
      %v3205 = vpop.f32.mrb[0].mxu0
      %3206 = vdwg.mxu0
      %v3207 = vadd.f32 %v3135, %v3201
      %v3208 = vadd.f32 %v3136, %v3204
      %v3209 = vld [vmem:[#allocation3 + $0x20] sm:$0xff]
      %s3210 = scalar_lea.vmem %s5, 96
      %v3211 = vld [vmem:[%s3210] sm:$0xf]
      %v3212 = vld [vmem:[%s3210 + $0x4] sm:$0xf]
      %v3213 = vld [vmem:[%s3210 + $0x8] sm:$0xf]
      %v3214 = vld [vmem:[%s3210 + $0xc] sm:$0xf]
      %v3215 = vld [vmem:[%s3210 + $0x10] sm:$0xf]
      %v3216 = vld [vmem:[%s3210 + $0x14] sm:$0xf]
      %v3223 = vunpack.c.l.b16 %v3211
      %v3224 = vunpack.c.l.b16 %v3212
      %v3225 = vunpack.c.l.b16 %v3213
      %v3226 = vunpack.c.l.b16 %v3214
      %v3227 = vunpack.c.l.b16 %v3215
      %v3228 = vunpack.c.l.b16 %v3216
      %v3229 = vpack.c.b16 %v3224, %v3223
      %v3230 = vpack.c.b16 %v3226, %v3225
      %v3231 = vpack.c.b16 %v3228, %v3227
      %v3236 = vsel %vm2916, %v3209, 0
      %3238 = vmatprep.subr.bf16.mxu0 0
      %3239 = vmatpush1.bf16.msra.mxu0 %v3229
      %3240 = vmatprep.subr.bf16.mxu0 0
      %3241 = vmatpush1.bf16.msra.mxu0 %v3230
      %3242 = vmatprep.subr.bf16.mxu0 0
      %3243 = vmatpush1.bf16.msra.mxu0 %v3231
      %3244 = vmatprep.subr.bf16.mxu0 0
      %3245 = vmatpush1.bf16.msra.mxu0 0
      %3246 = vmatprep.subr.bf16.mxu0 0
      %3247 = vmatpush1.bf16.msra.mxu0 0
      %3248 = vmatprep.subr.bf16.mxu0 0
      %3249 = vmatpush1.bf16.msra.mxu0 0
      %3250 = vmatprep.subr.bf16.mxu0 0
      %3251 = vmatpush1.bf16.msra.mxu0 0
      %3252 = vmatprep.subr.bf16.mxu0 0
      %3253 = vmatpush1.bf16.msra.mxu0 0
      %3254 = vmatprep.subr.bf16.mxu0 0
      %3255 = vmatpush1.bf16.msra.mxu0 0
      %3256 = vmatprep.subr.bf16.mxu0 0
      %3257 = vmatpush1.bf16.msra.mxu0 0
      %3258 = vmatprep.subr.bf16.mxu0 0
      %3259 = vmatpush1.bf16.msra.mxu0 0
      %3260 = vmatprep.subr.bf16.mxu0 0
      %3261 = vmatpush1.bf16.msra.mxu0 0
      %3262 = vmatprep.subr.bf16.mxu0 0
      %3263 = vmatpush1.bf16.msra.mxu0 0
      %3264 = vmatprep.subr.bf16.mxu0 0
      %3265 = vmatpush1.bf16.msra.mxu0 0
      %3266 = vmatprep.subr.bf16.mxu0 0
      %3267 = vmatpush1.bf16.msra.mxu0 0
      %3268 = vmatprep.subr.bf16.mxu0 0
      %3269 = vmatpush1.bf16.msra.mxu0 0
      %3270 = vmatprep.mubr.bf16.mxu0 0
      %3271 = vmatmul.mubr.bf16.gmra.mrb[0].mxu0 %v3236
      %v3272 = vpop.f32.mrb[0].mxu0
      %v3273 = vadd.f32 0.0, %v3272
      %v3274 = vpop.f32.mrb[0].mxu0
      %v3275 = vpop.f32.mrb[0].mxu0
      %v3276 = vadd.f32 0.0, %v3275
      %v3277 = vpop.f32.mrb[0].mxu0
      %3278 = vdwg.mxu0
      %v3279 = vadd.f32 %v3207, %v3273
      %v3280 = vadd.f32 %v3208, %v3276
      %v3281 = vld [vmem:[#allocation3 + $0x28] sm:$0xff]
      %s3282 = scalar_lea.vmem %s5, 120
      %v3283 = vld [vmem:[%s3282] sm:$0xf]
      %v3284 = vld [vmem:[%s3282 + $0x4] sm:$0xf]
      %v3285 = vld [vmem:[%s3282 + $0x8] sm:$0xf]
      %v3286 = vld [vmem:[%s3282 + $0xc] sm:$0xf]
      %v3287 = vld [vmem:[%s3282 + $0x10] sm:$0xf]
      %v3288 = vld [vmem:[%s3282 + $0x14] sm:$0xf]
      %v3295 = vunpack.c.l.b16 %v3283
      %v3296 = vunpack.c.l.b16 %v3284
      %v3297 = vunpack.c.l.b16 %v3285
      %v3298 = vunpack.c.l.b16 %v3286
      %v3299 = vunpack.c.l.b16 %v3287
      %v3300 = vunpack.c.l.b16 %v3288
      %v3301 = vpack.c.b16 %v3296, %v3295
      %v3302 = vpack.c.b16 %v3298, %v3297
      %v3303 = vpack.c.b16 %v3300, %v3299
      %v3308 = vsel %vm2916, %v3281, 0
      %3310 = vmatprep.subr.bf16.mxu0 0
      %3311 = vmatpush1.bf16.msra.mxu0 %v3301
      %3312 = vmatprep.subr.bf16.mxu0 0
      %3313 = vmatpush1.bf16.msra.mxu0 %v3302
      %3314 = vmatprep.subr.bf16.mxu0 0
      %3315 = vmatpush1.bf16.msra.mxu0 %v3303
      %3316 = vmatprep.subr.bf16.mxu0 0
      %3317 = vmatpush1.bf16.msra.mxu0 0
      %3318 = vmatprep.subr.bf16.mxu0 0
      %3319 = vmatpush1.bf16.msra.mxu0 0
      %3320 = vmatprep.subr.bf16.mxu0 0
      %3321 = vmatpush1.bf16.msra.mxu0 0
      %3322 = vmatprep.subr.bf16.mxu0 0
      %3323 = vmatpush1.bf16.msra.mxu0 0
      %3324 = vmatprep.subr.bf16.mxu0 0
      %3325 = vmatpush1.bf16.msra.mxu0 0
      %3326 = vmatprep.subr.bf16.mxu0 0
      %3327 = vmatpush1.bf16.msra.mxu0 0
      %3328 = vmatprep.subr.bf16.mxu0 0
      %3329 = vmatpush1.bf16.msra.mxu0 0
      %3330 = vmatprep.subr.bf16.mxu0 0
      %3331 = vmatpush1.bf16.msra.mxu0 0
      %3332 = vmatprep.subr.bf16.mxu0 0
      %3333 = vmatpush1.bf16.msra.mxu0 0
      %3334 = vmatprep.subr.bf16.mxu0 0
      %3335 = vmatpush1.bf16.msra.mxu0 0
      %3336 = vmatprep.subr.bf16.mxu0 0
      %3337 = vmatpush1.bf16.msra.mxu0 0
      %3338 = vmatprep.subr.bf16.mxu0 0
      %3339 = vmatpush1.bf16.msra.mxu0 0
      %3340 = vmatprep.subr.bf16.mxu0 0
      %3341 = vmatpush1.bf16.msra.mxu0 0
      %3342 = vmatprep.mubr.bf16.mxu0 0
      %3343 = vmatmul.mubr.bf16.gmra.mrb[0].mxu0 %v3308
      %v3344 = vpop.f32.mrb[0].mxu0
      %v3345 = vadd.f32 0.0, %v3344
      %v3346 = vpop.f32.mrb[0].mxu0
      %v3347 = vpop.f32.mrb[0].mxu0
      %v3348 = vadd.f32 0.0, %v3347
      %v3349 = vpop.f32.mrb[0].mxu0
      %3350 = vdwg.mxu0
      %v3351 = vadd.f32 %v3279, %v3345
      %v3352 = vadd.f32 %v3280, %v3348
      %v3353 = vld [vmem:[#allocation3 + $0x30] sm:$0xff]
      %s3354 = scalar_lea.vmem %s5, 144
      %v3355 = vld [vmem:[%s3354] sm:$0xf]
      %v3356 = vld [vmem:[%s3354 + $0x4] sm:$0xf]
      %v3357 = vld [vmem:[%s3354 + $0x8] sm:$0xf]
      %v3358 = vld [vmem:[%s3354 + $0xc] sm:$0xf]
      %v3359 = vld [vmem:[%s3354 + $0x10] sm:$0xf]
      %v3360 = vld [vmem:[%s3354 + $0x14] sm:$0xf]
      %v3367 = vunpack.c.l.b16 %v3355
      %v3368 = vunpack.c.l.b16 %v3356
      %v3369 = vunpack.c.l.b16 %v3357
      %v3370 = vunpack.c.l.b16 %v3358
      %v3371 = vunpack.c.l.b16 %v3359
      %v3372 = vunpack.c.l.b16 %v3360
      %v3373 = vpack.c.b16 %v3368, %v3367
      %v3374 = vpack.c.b16 %v3370, %v3369
      %v3375 = vpack.c.b16 %v3372, %v3371
      %v3380 = vsel %vm2916, %v3353, 0
      %3382 = vmatprep.subr.bf16.mxu0 0
      %3383 = vmatpush1.bf16.msra.mxu0 %v3373
      %3384 = vmatprep.subr.bf16.mxu0 0
      %3385 = vmatpush1.bf16.msra.mxu0 %v3374
      %3386 = vmatprep.subr.bf16.mxu0 0
      %3387 = vmatpush1.bf16.msra.mxu0 %v3375
      %3388 = vmatprep.subr.bf16.mxu0 0
      %3389 = vmatpush1.bf16.msra.mxu0 0
      %3390 = vmatprep.subr.bf16.mxu0 0
      %3391 = vmatpush1.bf16.msra.mxu0 0
      %3392 = vmatprep.subr.bf16.mxu0 0
      %3393 = vmatpush1.bf16.msra.mxu0 0
      %3394 = vmatprep.subr.bf16.mxu0 0
      %3395 = vmatpush1.bf16.msra.mxu0 0
      %3396 = vmatprep.subr.bf16.mxu0 0
      %3397 = vmatpush1.bf16.msra.mxu0 0
      %3398 = vmatprep.subr.bf16.mxu0 0
      %3399 = vmatpush1.bf16.msra.mxu0 0
      %3400 = vmatprep.subr.bf16.mxu0 0
      %3401 = vmatpush1.bf16.msra.mxu0 0
      %3402 = vmatprep.subr.bf16.mxu0 0
      %3403 = vmatpush1.bf16.msra.mxu0 0
      %3404 = vmatprep.subr.bf16.mxu0 0
      %3405 = vmatpush1.bf16.msra.mxu0 0
      %3406 = vmatprep.subr.bf16.mxu0 0
      %3407 = vmatpush1.bf16.msra.mxu0 0
      %3408 = vmatprep.subr.bf16.mxu0 0
      %3409 = vmatpush1.bf16.msra.mxu0 0
      %3410 = vmatprep.subr.bf16.mxu0 0
      %3411 = vmatpush1.bf16.msra.mxu0 0
      %3412 = vmatprep.subr.bf16.mxu0 0
      %3413 = vmatpush1.bf16.msra.mxu0 0
      %3414 = vmatprep.mubr.bf16.mxu0 0
      %3415 = vmatmul.mubr.bf16.gmra.mrb[0].mxu0 %v3380
      %v3416 = vpop.f32.mrb[0].mxu0
      %v3417 = vadd.f32 0.0, %v3416
      %v3418 = vpop.f32.mrb[0].mxu0
      %v3419 = vpop.f32.mrb[0].mxu0
      %v3420 = vadd.f32 0.0, %v3419
      %v3421 = vpop.f32.mrb[0].mxu0
      %3422 = vdwg.mxu0
      %v3423 = vadd.f32 %v3351, %v3417
      %v3424 = vadd.f32 %v3352, %v3420
      %v3425 = vld [vmem:[#allocation3 + $0x38] sm:$0xff]
      %s3426 = scalar_lea.vmem %s5, 168
      %v3427 = vld [vmem:[%s3426] sm:$0xf]
      %v3428 = vld [vmem:[%s3426 + $0x4] sm:$0xf]
      %v3429 = vld [vmem:[%s3426 + $0x8] sm:$0xf]
      %v3430 = vld [vmem:[%s3426 + $0xc] sm:$0xf]
      %v3431 = vld [vmem:[%s3426 + $0x10] sm:$0xf]
      %v3432 = vld [vmem:[%s3426 + $0x14] sm:$0xf]
      %v3439 = vunpack.c.l.b16 %v3427
      %v3440 = vunpack.c.l.b16 %v3428
      %v3441 = vunpack.c.l.b16 %v3429
      %v3442 = vunpack.c.l.b16 %v3430
      %v3443 = vunpack.c.l.b16 %v3431
      %v3444 = vunpack.c.l.b16 %v3432
      %v3445 = vpack.c.b16 %v3440, %v3439
      %v3446 = vpack.c.b16 %v3442, %v3441
      %v3447 = vpack.c.b16 %v3444, %v3443
      %v3452 = vsel %vm2916, %v3425, 0
      %3454 = vmatprep.subr.bf16.mxu0 0
      %3455 = vmatpush1.bf16.msra.mxu0 %v3445
      %3456 = vmatprep.subr.bf16.mxu0 0
      %3457 = vmatpush1.bf16.msra.mxu0 %v3446
      %3458 = vmatprep.subr.bf16.mxu0 0
      %3459 = vmatpush1.bf16.msra.mxu0 %v3447
      %3460 = vmatprep.subr.bf16.mxu0 0
      %3461 = vmatpush1.bf16.msra.mxu0 0
      %3462 = vmatprep.subr.bf16.mxu0 0
      %3463 = vmatpush1.bf16.msra.mxu0 0
      %3464 = vmatprep.subr.bf16.mxu0 0
      %3465 = vmatpush1.bf16.msra.mxu0 0
      %3466 = vmatprep.subr.bf16.mxu0 0
      %3467 = vmatpush1.bf16.msra.mxu0 0
      %3468 = vmatprep.subr.bf16.mxu0 0
      %3469 = vmatpush1.bf16.msra.mxu0 0
      %3470 = vmatprep.subr.bf16.mxu0 0
      %3471 = vmatpush1.bf16.msra.mxu0 0
      %3472 = vmatprep.subr.bf16.mxu0 0
      %3473 = vmatpush1.bf16.msra.mxu0 0
      %3474 = vmatprep.subr.bf16.mxu0 0
      %3475 = vmatpush1.bf16.msra.mxu0 0
      %3476 = vmatprep.subr.bf16.mxu0 0
      %3477 = vmatpush1.bf16.msra.mxu0 0
      %3478 = vmatprep.subr.bf16.mxu0 0
      %3479 = vmatpush1.bf16.msra.mxu0 0
      %3480 = vmatprep.subr.bf16.mxu0 0
      %3481 = vmatpush1.bf16.msra.mxu0 0
      %3482 = vmatprep.subr.bf16.mxu0 0
      %3483 = vmatpush1.bf16.msra.mxu0 0
      %3484 = vmatprep.subr.bf16.mxu0 0
      %3485 = vmatpush1.bf16.msra.mxu0 0
      %3486 = vmatprep.mubr.bf16.mxu0 0
      %3487 = vmatmul.mubr.bf16.gmra.mrb[0].mxu0 %v3452
      %v3488 = vpop.f32.mrb[0].mxu0
      %v3489 = vadd.f32 0.0, %v3488
      %v3490 = vpop.f32.mrb[0].mxu0
      %v3491 = vpop.f32.mrb[0].mxu0
      %v3492 = vadd.f32 0.0, %v3491
      %v3493 = vpop.f32.mrb[0].mxu0
      %3494 = vdwg.mxu0
      %v3495 = vadd.f32 %v3423, %v3489
      %v3496 = vadd.f32 %v3424, %v3492
      %v3497 = vld [vmem:[#allocation3 + $0x40] sm:$0xff]
      %s3498 = scalar_lea.vmem %s5, 192
      %v3499 = vld [vmem:[%s3498] sm:$0xf]
      %v3500 = vld [vmem:[%s3498 + $0x4] sm:$0xf]
      %v3501 = vld [vmem:[%s3498 + $0x8] sm:$0xf]
      %v3502 = vld [vmem:[%s3498 + $0xc] sm:$0xf]
      %v3503 = vld [vmem:[%s3498 + $0x10] sm:$0xf]
      %v3504 = vld [vmem:[%s3498 + $0x14] sm:$0xf]
      %v3511 = vunpack.c.l.b16 %v3499
      %v3512 = vunpack.c.l.b16 %v3500
      %v3513 = vunpack.c.l.b16 %v3501
      %v3514 = vunpack.c.l.b16 %v3502
      %v3515 = vunpack.c.l.b16 %v3503
      %v3516 = vunpack.c.l.b16 %v3504
      %v3517 = vpack.c.b16 %v3512, %v3511
      %v3518 = vpack.c.b16 %v3514, %v3513
      %v3519 = vpack.c.b16 %v3516, %v3515
      %v3524 = vsel %vm2916, %v3497, 0
      %3526 = vmatprep.subr.bf16.mxu0 0
      %3527 = vmatpush1.bf16.msra.mxu0 %v3517
      %3528 = vmatprep.subr.bf16.mxu0 0
      %3529 = vmatpush1.bf16.msra.mxu0 %v3518
      %3530 = vmatprep.subr.bf16.mxu0 0
      %3531 = vmatpush1.bf16.msra.mxu0 %v3519
      %3532 = vmatprep.subr.bf16.mxu0 0
      %3533 = vmatpush1.bf16.msra.mxu0 0
      %3534 = vmatprep.subr.bf16.mxu0 0
      %3535 = vmatpush1.bf16.msra.mxu0 0
      %3536 = vmatprep.subr.bf16.mxu0 0
      %3537 = vmatpush1.bf16.msra.mxu0 0
      %3538 = vmatprep.subr.bf16.mxu0 0
      %3539 = vmatpush1.bf16.msra.mxu0 0
      %3540 = vmatprep.subr.bf16.mxu0 0
      %3541 = vmatpush1.bf16.msra.mxu0 0
      %3542 = vmatprep.subr.bf16.mxu0 0
      %3543 = vmatpush1.bf16.msra.mxu0 0
      %3544 = vmatprep.subr.bf16.mxu0 0
      %3545 = vmatpush1.bf16.msra.mxu0 0
      %3546 = vmatprep.subr.bf16.mxu0 0
      %3547 = vmatpush1.bf16.msra.mxu0 0
      %3548 = vmatprep.subr.bf16.mxu0 0
      %3549 = vmatpush1.bf16.msra.mxu0 0
      %3550 = vmatprep.subr.bf16.mxu0 0
      %3551 = vmatpush1.bf16.msra.mxu0 0
      %3552 = vmatprep.subr.bf16.mxu0 0
      %3553 = vmatpush1.bf16.msra.mxu0 0
      %3554 = vmatprep.subr.bf16.mxu0 0
      %3555 = vmatpush1.bf16.msra.mxu0 0
      %3556 = vmatprep.subr.bf16.mxu0 0
      %3557 = vmatpush1.bf16.msra.mxu0 0
      %3558 = vmatprep.mubr.bf16.mxu0 0
      %3559 = vmatmul.mubr.bf16.gmra.mrb[0].mxu0 %v3524
      %v3560 = vpop.f32.mrb[0].mxu0
      %v3561 = vadd.f32 0.0, %v3560
      %v3562 = vpop.f32.mrb[0].mxu0
      %v3563 = vpop.f32.mrb[0].mxu0
      %v3564 = vadd.f32 0.0, %v3563
      %v3565 = vpop.f32.mrb[0].mxu0
      %3566 = vdwg.mxu0
      %v3567 = vadd.f32 %v3495, %v3561
      %v3568 = vadd.f32 %v3496, %v3564
      %v3569 = vld [vmem:[%s10 + $0x4] sm:$0x11]
      %v3571 = vlaneseq
      %v3572 = vshrl.u32 %v3571, 7
      %v3573 = vsub.s32 0, %v3572
      %v3574 = vrot.slane %v3569, %v3573
      %v3575 = vlaneseq
      %v3576 = vshrl.u32 %v3575, 7
      %v3577 = vsub.s32 4, %v3576
      %v3578 = vrot.slane %v3569, %v3577
      %v3581 = vlaneseq
      %v3582 = vshrl.u32 %v3581, 7
      %v3583 = vsub.s32 0, %v3582
      %v3584 = vrot.slane %v3574, %v3583
      %v3585 = vlaneseq
      %v3586 = vshrl.u32 %v3585, 7
      %v3587 = vsub.s32 0, %v3586
      %v3588 = vrot.slane %v3578, %v3587
      %3591 = vrot.lane.b32.xlu0 %v3584, 64
      %v3592 = vpop.permute.xlu0 %3591
      %3593 = vrot.lane.b32.xlu0 %v3588, 64
      %v3594 = vpop.permute.xlu0 %3593
      %v3595 = vsel %vm2774, %v3592, %v3594
      %v3597 = vadd.f32 %v3567, %v3595
      %v3598 = vadd.f32 %v3568, %v3595
      %v3599 = vmax.f32 %v3597, 0.0
      %v3600 = vmax.f32 %v3598, 0.0
      %v3601 = vld [vmem:[%s10 + $0x5] sm:$0x11]
      %v3603 = vlaneseq
      %v3604 = vshrl.u32 %v3603, 7
      %v3605 = vsub.s32 0, %v3604
      %v3606 = vrot.slane %v3601, %v3605
      %v3607 = vlaneseq
      %v3608 = vshrl.u32 %v3607, 7
      %v3609 = vsub.s32 4, %v3608
      %v3610 = vrot.slane %v3601, %v3609
      %v3613 = vlaneseq
      %v3614 = vshrl.u32 %v3613, 7
      %v3615 = vsub.s32 0, %v3614
      %v3616 = vrot.slane %v3606, %v3615
      %v3617 = vlaneseq
      %v3618 = vshrl.u32 %v3617, 7
      %v3619 = vsub.s32 0, %v3618
      %v3620 = vrot.slane %v3610, %v3619
      %3623 = vrot.lane.b32.xlu0 %v3616, 64
      %v3624 = vpop.permute.xlu0 %3623
      %3625 = vrot.lane.b32.xlu0 %v3620, 64
      %v3626 = vpop.permute.xlu0 %3625
      %v3627 = vsel %vm2774, %v3624, %v3626
      %v3629 = vmul.f32 %v3599, %v3627
      %v3630 = vmul.f32 %v3600, %v3627
      %v3631 = vld [vmem:[%s10 + $0x6] sm:$0x11]
      %v3633 = vlaneseq
      %v3634 = vshrl.u32 %v3633, 7
      %v3635 = vsub.s32 0, %v3634
      %v3636 = vrot.slane %v3631, %v3635
      %v3637 = vlaneseq
      %v3638 = vshrl.u32 %v3637, 7
      %v3639 = vsub.s32 4, %v3638
      %v3640 = vrot.slane %v3631, %v3639
      %v3643 = vlaneseq
      %v3644 = vshrl.u32 %v3643, 7
      %v3645 = vsub.s32 0, %v3644
      %v3646 = vrot.slane %v3636, %v3645
      %v3647 = vlaneseq
      %v3648 = vshrl.u32 %v3647, 7
      %v3649 = vsub.s32 0, %v3648
      %v3650 = vrot.slane %v3640, %v3649
      %3653 = vrot.lane.b32.xlu0 %v3646, 64
      %v3654 = vpop.permute.xlu0 %3653
      %3655 = vrot.lane.b32.xlu0 %v3650, 64
      %v3656 = vpop.permute.xlu0 %3655
      %v3657 = vsel %vm2774, %v3654, %v3656
      %v3659 = vadd.f32 %v3629, %v3657
      %v3660 = vadd.f32 %v3630, %v3657
      %v3661 = vld [vmem:[%s6] sm:$0xf]
      %v3662 = vld [vmem:[%s6 + $0x4] sm:$0xf]
      %v3663 = vld [vmem:[%s6 + $0x8] sm:$0xf]
      %v3664 = vld [vmem:[%s6 + $0xc] sm:$0xf]
      %v3665 = vld [vmem:[%s6 + $0x10] sm:$0xf]
      %v3666 = vld [vmem:[%s6 + $0x14] sm:$0xf]
      %v3667 = vld [vmem:[%s6 + $0x18] sm:$0xf]
      %v3668 = vld [vmem:[%s6 + $0x1c] sm:$0xf]
      %v3669 = vld [vmem:[%s6 + $0x20] sm:$0xf]
      %v3670 = vpack.c.bf16 %v3660, %v3659
      %v3680 = vunpack.c.l.b16 %v3661
      %v3681 = vunpack.c.l.b16 %v3662
      %v3682 = vunpack.c.l.b16 %v3663
      %v3683 = vunpack.c.l.b16 %v3664
      %v3684 = vunpack.c.l.b16 %v3665
      %v3685 = vunpack.c.l.b16 %v3666
      %v3686 = vunpack.c.l.b16 %v3667
      %v3687 = vunpack.c.l.b16 %v3668
      %v3688 = vunpack.c.l.b16 %v3669
      %v3689 = vpack.c.b16 %v3681, %v3680
      %v3690 = vpack.c.b16 %v3683, %v3682
      %v3691 = vpack.c.b16 %v3685, %v3684
      %v3692 = vpack.c.b16 %v3687, %v3686
      %v3693 = vpack.c.b16 %v3688, %v3688
      %vm3694 = vcmask 130048
      %v3696 = vsel %vm3694, %v3689, 0
      %v3699 = vsel %vm3694, %v3690, 0
      %v3702 = vsel %vm3694, %v3691, 0
      %v3705 = vsel %vm3694, %v3692, 0
      %v3708 = vsel %vm3694, %v3693, 0
      %3710 = vmatprep.subr.bf16.mxu0 0
      %3711 = vmatpush1.bf16.msra.mxu0 %v3670
      %3712 = vmatprep.subr.bf16.mxu0 0
      %3713 = vmatpush1.bf16.msra.mxu0 0
      %3714 = vmatprep.subr.bf16.mxu0 0
      %3715 = vmatpush1.bf16.msra.mxu0 0
      %3716 = vmatprep.subr.bf16.mxu0 0
      %3717 = vmatpush1.bf16.msra.mxu0 0
      %3718 = vmatprep.subr.bf16.mxu0 0
      %3719 = vmatpush1.bf16.msra.mxu0 0
      %3720 = vmatprep.subr.bf16.mxu0 0
      %3721 = vmatpush1.bf16.msra.mxu0 0
      %3722 = vmatprep.subr.bf16.mxu0 0
      %3723 = vmatpush1.bf16.msra.mxu0 0
      %3724 = vmatprep.subr.bf16.mxu0 0
      %3725 = vmatpush1.bf16.msra.mxu0 0
      %3726 = vmatprep.subr.bf16.mxu0 0
      %3727 = vmatpush1.bf16.msra.mxu0 0
      %3728 = vmatprep.subr.bf16.mxu0 0
      %3729 = vmatpush1.bf16.msra.mxu0 0
      %3730 = vmatprep.subr.bf16.mxu0 0
      %3731 = vmatpush1.bf16.msra.mxu0 0
      %3732 = vmatprep.subr.bf16.mxu0 0
      %3733 = vmatpush1.bf16.msra.mxu0 0
      %3734 = vmatprep.subr.bf16.mxu0 0
      %3735 = vmatpush1.bf16.msra.mxu0 0
      %3736 = vmatprep.subr.bf16.mxu0 0
      %3737 = vmatpush1.bf16.msra.mxu0 0
      %3738 = vmatprep.subr.bf16.mxu0 0
      %3739 = vmatpush1.bf16.msra.mxu0 0
      %3740 = vmatprep.subr.bf16.mxu0 0
      %3741 = vmatpush1.bf16.msra.mxu0 0
      %3742 = vmatprep.mubr.bf16.mxu0 0
      %3743 = vmatmul.mubr.bf16.gmra.mrb[0].mxu0 %v3696
      %v3744 = vpop.f32.mrb[0].mxu0
      %v3745 = vadd.f32 0.0, %v3744
      %v3746 = vpop.f32.mrb[0].mxu0
      %v3747 = vpop.f32.mrb[0].mxu0
      %v3748 = vadd.f32 0.0, %v3747
      %v3749 = vpop.f32.mrb[0].mxu0
      %3750 = vmatprep.mubr.bf16.mxu0 0
      %3751 = vmatmul.mubr.bf16.gmra.mrb[0].mxu0 %v3699
      %v3752 = vpop.f32.mrb[0].mxu0
      %v3753 = vadd.f32 0.0, %v3752
      %v3754 = vpop.f32.mrb[0].mxu0
      %v3755 = vpop.f32.mrb[0].mxu0
      %v3756 = vadd.f32 0.0, %v3755
      %v3757 = vpop.f32.mrb[0].mxu0
      %3758 = vmatprep.mubr.bf16.mxu0 0
      %3759 = vmatmul.mubr.bf16.gmra.mrb[0].mxu0 %v3702
      %v3760 = vpop.f32.mrb[0].mxu0
      %v3761 = vadd.f32 0.0, %v3760
      %v3762 = vpop.f32.mrb[0].mxu0
      %v3763 = vpop.f32.mrb[0].mxu0
      %v3764 = vadd.f32 0.0, %v3763
      %v3765 = vpop.f32.mrb[0].mxu0
      %3766 = vmatprep.mubr.bf16.mxu0 0
      %3767 = vmatmul.mubr.bf16.gmra.mrb[0].mxu0 %v3705
      %v3768 = vpop.f32.mrb[0].mxu0
      %v3769 = vadd.f32 0.0, %v3768
      %v3770 = vpop.f32.mrb[0].mxu0
      %v3771 = vpop.f32.mrb[0].mxu0
      %v3772 = vadd.f32 0.0, %v3771
      %v3773 = vpop.f32.mrb[0].mxu0
      %3774 = vmatprep.mubr.bf16.mxu0 0
      %3775 = vmatmul.mubr.bf16.gmra.mrb[0].mxu0 %v3708
      %v3776 = vpop.f32.mrb[0].mxu0
      %v3777 = vadd.f32 0.0, %v3776
      %v3778 = vpop.f32.mrb[0].mxu0
      %v3779 = vpop.f32.mrb[0].mxu0
      %v3780 = vpop.f32.mrb[0].mxu0
      %3781 = vdwg.mxu0
      %v3782 = vpack.c.bf16 %v3748, %v3745
      %v3783 = vpack.c.bf16 %v3756, %v3753
      %v3784 = vpack.c.bf16 %v3764, %v3761
      %v3785 = vpack.c.bf16 %v3772, %v3769
      %v3786 = vpack.c.bf16 %v3777, %v3777
      %v3792 = vunpack.c.l.b16 %v3782
      %v3793 = vunpack.c.h.b16 %v3782
      %v3794 = vunpack.c.l.b16 %v3783
      %v3795 = vunpack.c.h.b16 %v3783
      %v3796 = vunpack.c.l.b16 %v3784
      %v3797 = vunpack.c.h.b16 %v3784
      %v3798 = vunpack.c.l.b16 %v3785
      %v3799 = vunpack.c.h.b16 %v3785
      %v3800 = vunpack.c.l.b16 %v3786
      %v3801 = vpack.c.b16 %v3792, %v3792
      %v3802 = vpack.c.b16 %v3793, %v3793
      %v3803 = vpack.c.b16 %v3794, %v3794
      %v3804 = vpack.c.b16 %v3795, %v3795
      %v3805 = vpack.c.b16 %v3796, %v3796
      %v3806 = vpack.c.b16 %v3797, %v3797
      %v3807 = vpack.c.b16 %v3798, %v3798
      %v3808 = vpack.c.b16 %v3799, %v3799
      %v3809 = vpack.c.b16 %v3800, %v3800
      %vm3819 = vcmask 781312
      %3820 = vst.msk [vmem:[#allocation4] sm:$0xf] %vm3819, %v3801
      %3821 = vst.msk [vmem:[#allocation4 + $0x4] sm:$0xf] %vm3819, %v3802
      %3822 = vst.msk [vmem:[#allocation4 + $0x8] sm:$0xf] %vm3819, %v3803
      %3823 = vst.msk [vmem:[#allocation4 + $0xc] sm:$0xf] %vm3819, %v3804
      %3824 = vst.msk [vmem:[#allocation4 + $0x10] sm:$0xf] %vm3819, %v3805
      %3825 = vst.msk [vmem:[#allocation4 + $0x14] sm:$0xf] %vm3819, %v3806
      %3826 = vst.msk [vmem:[#allocation4 + $0x18] sm:$0xf] %vm3819, %v3807
      %3827 = vst.msk [vmem:[#allocation4 + $0x1c] sm:$0xf] %vm3819, %v3808
      %3828 = vst.msk [vmem:[#allocation4 + $0x20] sm:$0xf] %vm3819, %v3809
      %v3829 = vld [vmem:[#allocation4] sm:$0xf]
      %v3830 = vld [vmem:[%s7] sm:$0xff]
      %v3831 = vld [vmem:[%s7 + $0x8] sm:$0xff]
      %v3832 = vld [vmem:[%s7 + $0x10] sm:$0xff]
      %v3833 = vld [vmem:[%s7 + $0x18] sm:$0xff]
      %v3834 = vld [vmem:[%s7 + $0x20] sm:$0xff]
      %v3835 = vld [vmem:[%s7 + $0x28] sm:$0xff]
      %v3836 = vld [vmem:[%s7 + $0x30] sm:$0xff]
      %v3837 = vld [vmem:[%s7 + $0x38] sm:$0xff]
      %v3838 = vld [vmem:[%s7 + $0x40] sm:$0xff]
      %v3839 = vld [vmem:[%s7 + $0x48] sm:$0xff]
      %v3840 = vld [vmem:[%s7 + $0x50] sm:$0xff]
      %v3841 = vld [vmem:[%s7 + $0x58] sm:$0xff]
      %v3842 = vld [vmem:[#allocation4 + $0x4] sm:$0xf]
      %s3843 = scalar_lea.vmem %s7, 96
      %v3844 = vld [vmem:[%s3843] sm:$0xff]
      %v3845 = vld [vmem:[%s3843 + $0x8] sm:$0xff]
      %v3846 = vld [vmem:[%s3843 + $0x10] sm:$0xff]
      %v3847 = vld [vmem:[%s3843 + $0x18] sm:$0xff]
      %v3848 = vld [vmem:[%s3843 + $0x20] sm:$0xff]
      %v3849 = vld [vmem:[%s3843 + $0x28] sm:$0xff]
      %v3850 = vld [vmem:[%s3843 + $0x30] sm:$0xff]
      %v3851 = vld [vmem:[%s3843 + $0x38] sm:$0xff]
      %v3852 = vld [vmem:[%s3843 + $0x40] sm:$0xff]
      %v3853 = vld [vmem:[%s3843 + $0x48] sm:$0xff]
      %v3854 = vld [vmem:[%s3843 + $0x50] sm:$0xff]
      %v3855 = vld [vmem:[%s3843 + $0x58] sm:$0xff]
      %v3868 = vunpack.c.l.b16 %v3844
      %v3869 = vunpack.c.h.b16 %v3844
      %v3870 = vunpack.c.l.b16 %v3845
      %v3871 = vunpack.c.h.b16 %v3845
      %v3872 = vunpack.c.l.b16 %v3846
      %v3873 = vunpack.c.h.b16 %v3846
      %v3874 = vunpack.c.l.b16 %v3847
      %v3875 = vunpack.c.h.b16 %v3847
      %v3876 = vunpack.c.l.b16 %v3848
      %v3877 = vunpack.c.h.b16 %v3848
      %v3878 = vunpack.c.l.b16 %v3849
      %v3879 = vunpack.c.h.b16 %v3849
      %v3880 = vunpack.c.l.b16 %v3850
      %v3881 = vunpack.c.h.b16 %v3850
      %v3882 = vunpack.c.l.b16 %v3851
      %v3883 = vunpack.c.h.b16 %v3851
      %v3884 = vunpack.c.l.b16 %v3852
      %v3885 = vunpack.c.h.b16 %v3852
      %v3886 = vunpack.c.l.b16 %v3853
      %v3887 = vunpack.c.h.b16 %v3853
      %v3888 = vunpack.c.l.b16 %v3854
      %v3889 = vunpack.c.h.b16 %v3854
      %v3890 = vunpack.c.l.b16 %v3855
      %v3891 = vunpack.c.h.b16 %v3855
      %v3892 = vpack.c.b16 %v3870, %v3868
      %v3893 = vpack.c.b16 %v3871, %v3869
      %v3894 = vpack.c.b16 %v3874, %v3872
      %v3895 = vpack.c.b16 %v3875, %v3873
      %v3896 = vpack.c.b16 %v3878, %v3876
      %v3897 = vpack.c.b16 %v3879, %v3877
      %v3898 = vpack.c.b16 %v3882, %v3880
      %v3899 = vpack.c.b16 %v3883, %v3881
      %v3900 = vpack.c.b16 %v3886, %v3884
      %v3901 = vpack.c.b16 %v3887, %v3885
      %v3902 = vpack.c.b16 %v3890, %v3888
      %v3903 = vpack.c.b16 %v3891, %v3889
      %v3917 = vsel %vm553, %v3842, 0
      %3919 = vmatprep.subr.bf16.mxu0 %v3893
      %3920 = vmatpush1.bf16.msra.mxu0 %v3892
      %3921 = vmatprep.subr.bf16.mxu0 %v3895
      %3922 = vmatpush1.bf16.msra.mxu0 %v3894
      %3923 = vmatprep.subr.bf16.mxu0 %v3897
      %3924 = vmatpush1.bf16.msra.mxu0 %v3896
      %3925 = vmatprep.subr.bf16.mxu0 %v3899
      %3926 = vmatpush1.bf16.msra.mxu0 %v3898
      %3927 = vmatprep.subr.bf16.mxu0 %v3901
      %3928 = vmatpush1.bf16.msra.mxu0 %v3900
      %3929 = vmatprep.subr.bf16.mxu0 %v3903
      %3930 = vmatpush1.bf16.msra.mxu0 %v3902
      %3931 = vmatprep.subr.bf16.mxu0 0
      %3932 = vmatpush1.bf16.msra.mxu0 0
      %3933 = vmatprep.subr.bf16.mxu0 0
      %3934 = vmatpush1.bf16.msra.mxu0 0
      %3935 = vmatprep.subr.bf16.mxu0 0
      %3936 = vmatpush1.bf16.msra.mxu0 0
      %3937 = vmatprep.subr.bf16.mxu0 0
      %3938 = vmatpush1.bf16.msra.mxu0 0
      %3939 = vmatprep.subr.bf16.mxu0 0
      %3940 = vmatpush1.bf16.msra.mxu0 0
      %3941 = vmatprep.subr.bf16.mxu0 0
      %3942 = vmatpush1.bf16.msra.mxu0 0
      %3943 = vmatprep.subr.bf16.mxu0 0
      %3944 = vmatpush1.bf16.msra.mxu0 0
      %3945 = vmatprep.subr.bf16.mxu0 0
      %3946 = vmatpush1.bf16.msra.mxu0 0
      %3947 = vmatprep.subr.bf16.mxu0 0
      %3948 = vmatpush1.bf16.msra.mxu0 0
      %3949 = vmatprep.subr.bf16.mxu0 0
      %3950 = vmatpush1.bf16.msra.mxu0 0
      %3951 = vmatprep.mubr.bf16.mxu0 0
      %3952 = vmatmul.mubr.bf16.gmra.mrb[0].mxu0 %v3917
      %v3953 = vpop.f32.mrb[0].mxu0
      %v3954 = vadd.f32 0.0, %v3953
      %v3955 = vpop.f32.mrb[0].mxu0
      %v3956 = vadd.f32 0.0, %v3955
      %v3957 = vpop.f32.mrb[0].mxu0
      %v3958 = vpop.f32.mrb[0].mxu0
      %3959 = vdwg.mxu0
      %v3972 = vunpack.c.l.b16 %v3830
      %v3973 = vunpack.c.h.b16 %v3830
      %v3974 = vunpack.c.l.b16 %v3831
      %v3975 = vunpack.c.h.b16 %v3831
      %v3976 = vunpack.c.l.b16 %v3832
      %v3977 = vunpack.c.h.b16 %v3832
      %v3978 = vunpack.c.l.b16 %v3833
      %v3979 = vunpack.c.h.b16 %v3833
      %v3980 = vunpack.c.l.b16 %v3834
      %v3981 = vunpack.c.h.b16 %v3834
      %v3982 = vunpack.c.l.b16 %v3835
      %v3983 = vunpack.c.h.b16 %v3835
      %v3984 = vunpack.c.l.b16 %v3836
      %v3985 = vunpack.c.h.b16 %v3836
      %v3986 = vunpack.c.l.b16 %v3837
      %v3987 = vunpack.c.h.b16 %v3837
      %v3988 = vunpack.c.l.b16 %v3838
      %v3989 = vunpack.c.h.b16 %v3838
      %v3990 = vunpack.c.l.b16 %v3839
      %v3991 = vunpack.c.h.b16 %v3839
      %v3992 = vunpack.c.l.b16 %v3840
      %v3993 = vunpack.c.h.b16 %v3840
      %v3994 = vunpack.c.l.b16 %v3841
      %v3995 = vunpack.c.h.b16 %v3841
      %v3996 = vpack.c.b16 %v3974, %v3972
      %v3997 = vpack.c.b16 %v3975, %v3973
      %v3998 = vpack.c.b16 %v3978, %v3976
      %v3999 = vpack.c.b16 %v3979, %v3977
      %v4000 = vpack.c.b16 %v3982, %v3980
      %v4001 = vpack.c.b16 %v3983, %v3981
      %v4002 = vpack.c.b16 %v3986, %v3984
      %v4003 = vpack.c.b16 %v3987, %v3985
      %v4004 = vpack.c.b16 %v3990, %v3988
      %v4005 = vpack.c.b16 %v3991, %v3989
      %v4006 = vpack.c.b16 %v3994, %v3992
      %v4007 = vpack.c.b16 %v3995, %v3993
      %v4021 = vsel %vm553, %v3829, 0
      %4023 = vmatprep.subr.bf16.mxu0 %v3997
      %4024 = vmatpush1.bf16.msra.mxu0 %v3996
      %4025 = vmatprep.subr.bf16.mxu0 %v3999
      %4026 = vmatpush1.bf16.msra.mxu0 %v3998
      %4027 = vmatprep.subr.bf16.mxu0 %v4001
      %4028 = vmatpush1.bf16.msra.mxu0 %v4000
      %4029 = vmatprep.subr.bf16.mxu0 %v4003
      %4030 = vmatpush1.bf16.msra.mxu0 %v4002
      %4031 = vmatprep.subr.bf16.mxu0 %v4005
      %4032 = vmatpush1.bf16.msra.mxu0 %v4004
      %4033 = vmatprep.subr.bf16.mxu0 %v4007
      %4034 = vmatpush1.bf16.msra.mxu0 %v4006
      %4035 = vmatprep.subr.bf16.mxu0 0
      %4036 = vmatpush1.bf16.msra.mxu0 0
      %4037 = vmatprep.subr.bf16.mxu0 0
      %4038 = vmatpush1.bf16.msra.mxu0 0
      %4039 = vmatprep.subr.bf16.mxu0 0
      %4040 = vmatpush1.bf16.msra.mxu0 0
      %4041 = vmatprep.subr.bf16.mxu0 0
      %4042 = vmatpush1.bf16.msra.mxu0 0
      %4043 = vmatprep.subr.bf16.mxu0 0
      %4044 = vmatpush1.bf16.msra.mxu0 0
      %4045 = vmatprep.subr.bf16.mxu0 0
      %4046 = vmatpush1.bf16.msra.mxu0 0
      %4047 = vmatprep.subr.bf16.mxu0 0
      %4048 = vmatpush1.bf16.msra.mxu0 0
      %4049 = vmatprep.subr.bf16.mxu0 0
      %4050 = vmatpush1.bf16.msra.mxu0 0
      %4051 = vmatprep.subr.bf16.mxu0 0
      %4052 = vmatpush1.bf16.msra.mxu0 0
      %4053 = vmatprep.subr.bf16.mxu0 0
      %4054 = vmatpush1.bf16.msra.mxu0 0
      %4055 = vmatprep.mubr.bf16.mxu0 0
      %4056 = vmatmul.mubr.bf16.gmra.mrb[0].mxu0 %v4021
      %v4057 = vpop.f32.mrb[0].mxu0
      %v4058 = vadd.f32 %v3954, %v4057
      %v4059 = vpop.f32.mrb[0].mxu0
      %v4060 = vadd.f32 %v3956, %v4059
      %v4061 = vpop.f32.mrb[0].mxu0
      %v4062 = vpop.f32.mrb[0].mxu0
      %4063 = vdwg.mxu0
      %v4064 = vld [vmem:[#allocation4 + $0x8] sm:$0xf]
      %s4065 = scalar_lea.vmem %s7, 192
      %v4066 = vld [vmem:[%s4065] sm:$0xff]
      %v4067 = vld [vmem:[%s4065 + $0x8] sm:$0xff]
      %v4068 = vld [vmem:[%s4065 + $0x10] sm:$0xff]
      %v4069 = vld [vmem:[%s4065 + $0x18] sm:$0xff]
      %v4070 = vld [vmem:[%s4065 + $0x20] sm:$0xff]
      %v4071 = vld [vmem:[%s4065 + $0x28] sm:$0xff]
      %v4072 = vld [vmem:[%s4065 + $0x30] sm:$0xff]
      %v4073 = vld [vmem:[%s4065 + $0x38] sm:$0xff]
      %v4074 = vld [vmem:[%s4065 + $0x40] sm:$0xff]
      %v4075 = vld [vmem:[%s4065 + $0x48] sm:$0xff]
      %v4076 = vld [vmem:[%s4065 + $0x50] sm:$0xff]
      %v4077 = vld [vmem:[%s4065 + $0x58] sm:$0xff]
      %v4090 = vunpack.c.l.b16 %v4066
      %v4091 = vunpack.c.h.b16 %v4066
      %v4092 = vunpack.c.l.b16 %v4067
      %v4093 = vunpack.c.h.b16 %v4067
      %v4094 = vunpack.c.l.b16 %v4068
      %v4095 = vunpack.c.h.b16 %v4068
      %v4096 = vunpack.c.l.b16 %v4069
      %v4097 = vunpack.c.h.b16 %v4069
      %v4098 = vunpack.c.l.b16 %v4070
      %v4099 = vunpack.c.h.b16 %v4070
      %v4100 = vunpack.c.l.b16 %v4071
      %v4101 = vunpack.c.h.b16 %v4071
      %v4102 = vunpack.c.l.b16 %v4072
      %v4103 = vunpack.c.h.b16 %v4072
      %v4104 = vunpack.c.l.b16 %v4073
      %v4105 = vunpack.c.h.b16 %v4073
      %v4106 = vunpack.c.l.b16 %v4074
      %v4107 = vunpack.c.h.b16 %v4074
      %v4108 = vunpack.c.l.b16 %v4075
      %v4109 = vunpack.c.h.b16 %v4075
      %v4110 = vunpack.c.l.b16 %v4076
      %v4111 = vunpack.c.h.b16 %v4076
      %v4112 = vunpack.c.l.b16 %v4077
      %v4113 = vunpack.c.h.b16 %v4077
      %v4114 = vpack.c.b16 %v4092, %v4090
      %v4115 = vpack.c.b16 %v4093, %v4091
      %v4116 = vpack.c.b16 %v4096, %v4094
      %v4117 = vpack.c.b16 %v4097, %v4095
      %v4118 = vpack.c.b16 %v4100, %v4098
      %v4119 = vpack.c.b16 %v4101, %v4099
      %v4120 = vpack.c.b16 %v4104, %v4102
      %v4121 = vpack.c.b16 %v4105, %v4103
      %v4122 = vpack.c.b16 %v4108, %v4106
      %v4123 = vpack.c.b16 %v4109, %v4107
      %v4124 = vpack.c.b16 %v4112, %v4110
      %v4125 = vpack.c.b16 %v4113, %v4111
      %v4139 = vsel %vm553, %v4064, 0
      %4141 = vmatprep.subr.bf16.mxu0 %v4115
      %4142 = vmatpush1.bf16.msra.mxu0 %v4114
      %4143 = vmatprep.subr.bf16.mxu0 %v4117
      %4144 = vmatpush1.bf16.msra.mxu0 %v4116
      %4145 = vmatprep.subr.bf16.mxu0 %v4119
      %4146 = vmatpush1.bf16.msra.mxu0 %v4118
      %4147 = vmatprep.subr.bf16.mxu0 %v4121
      %4148 = vmatpush1.bf16.msra.mxu0 %v4120
      %4149 = vmatprep.subr.bf16.mxu0 %v4123
      %4150 = vmatpush1.bf16.msra.mxu0 %v4122
      %4151 = vmatprep.subr.bf16.mxu0 %v4125
      %4152 = vmatpush1.bf16.msra.mxu0 %v4124
      %4153 = vmatprep.subr.bf16.mxu0 0
      %4154 = vmatpush1.bf16.msra.mxu0 0
      %4155 = vmatprep.subr.bf16.mxu0 0
      %4156 = vmatpush1.bf16.msra.mxu0 0
      %4157 = vmatprep.subr.bf16.mxu0 0
      %4158 = vmatpush1.bf16.msra.mxu0 0
      %4159 = vmatprep.subr.bf16.mxu0 0
      %4160 = vmatpush1.bf16.msra.mxu0 0
      %4161 = vmatprep.subr.bf16.mxu0 0
      %4162 = vmatpush1.bf16.msra.mxu0 0
      %4163 = vmatprep.subr.bf16.mxu0 0
      %4164 = vmatpush1.bf16.msra.mxu0 0
      %4165 = vmatprep.subr.bf16.mxu0 0
      %4166 = vmatpush1.bf16.msra.mxu0 0
      %4167 = vmatprep.subr.bf16.mxu0 0
      %4168 = vmatpush1.bf16.msra.mxu0 0
      %4169 = vmatprep.subr.bf16.mxu0 0
      %4170 = vmatpush1.bf16.msra.mxu0 0
      %4171 = vmatprep.subr.bf16.mxu0 0
      %4172 = vmatpush1.bf16.msra.mxu0 0
      %4173 = vmatprep.mubr.bf16.mxu0 0
      %4174 = vmatmul.mubr.bf16.gmra.mrb[0].mxu0 %v4139
      %v4175 = vpop.f32.mrb[0].mxu0
      %v4176 = vadd.f32 0.0, %v4175
      %v4177 = vpop.f32.mrb[0].mxu0
      %v4178 = vadd.f32 0.0, %v4177
      %v4179 = vpop.f32.mrb[0].mxu0
      %v4180 = vpop.f32.mrb[0].mxu0
      %4181 = vdwg.mxu0
      %v4182 = vadd.f32 %v4058, %v4176
      %v4183 = vadd.f32 %v4060, %v4178
      %v4184 = vld [vmem:[#allocation4 + $0xc] sm:$0xf]
      %s4185 = scalar_lea.vmem %s7, 288
      %v4186 = vld [vmem:[%s4185] sm:$0xff]
      %v4187 = vld [vmem:[%s4185 + $0x8] sm:$0xff]
      %v4188 = vld [vmem:[%s4185 + $0x10] sm:$0xff]
      %v4189 = vld [vmem:[%s4185 + $0x18] sm:$0xff]
      %v4190 = vld [vmem:[%s4185 + $0x20] sm:$0xff]
      %v4191 = vld [vmem:[%s4185 + $0x28] sm:$0xff]
      %v4192 = vld [vmem:[%s4185 + $0x30] sm:$0xff]
      %v4193 = vld [vmem:[%s4185 + $0x38] sm:$0xff]
      %v4194 = vld [vmem:[%s4185 + $0x40] sm:$0xff]
      %v4195 = vld [vmem:[%s4185 + $0x48] sm:$0xff]
      %v4196 = vld [vmem:[%s4185 + $0x50] sm:$0xff]
      %v4197 = vld [vmem:[%s4185 + $0x58] sm:$0xff]
      %v4210 = vunpack.c.l.b16 %v4186
      %v4211 = vunpack.c.h.b16 %v4186
      %v4212 = vunpack.c.l.b16 %v4187
      %v4213 = vunpack.c.h.b16 %v4187
      %v4214 = vunpack.c.l.b16 %v4188
      %v4215 = vunpack.c.h.b16 %v4188
      %v4216 = vunpack.c.l.b16 %v4189
      %v4217 = vunpack.c.h.b16 %v4189
      %v4218 = vunpack.c.l.b16 %v4190
      %v4219 = vunpack.c.h.b16 %v4190
      %v4220 = vunpack.c.l.b16 %v4191
      %v4221 = vunpack.c.h.b16 %v4191
      %v4222 = vunpack.c.l.b16 %v4192
      %v4223 = vunpack.c.h.b16 %v4192
      %v4224 = vunpack.c.l.b16 %v4193
      %v4225 = vunpack.c.h.b16 %v4193
      %v4226 = vunpack.c.l.b16 %v4194
      %v4227 = vunpack.c.h.b16 %v4194
      %v4228 = vunpack.c.l.b16 %v4195
      %v4229 = vunpack.c.h.b16 %v4195
      %v4230 = vunpack.c.l.b16 %v4196
      %v4231 = vunpack.c.h.b16 %v4196
      %v4232 = vunpack.c.l.b16 %v4197
      %v4233 = vunpack.c.h.b16 %v4197
      %v4234 = vpack.c.b16 %v4212, %v4210
      %v4235 = vpack.c.b16 %v4213, %v4211
      %v4236 = vpack.c.b16 %v4216, %v4214
      %v4237 = vpack.c.b16 %v4217, %v4215
      %v4238 = vpack.c.b16 %v4220, %v4218
      %v4239 = vpack.c.b16 %v4221, %v4219
      %v4240 = vpack.c.b16 %v4224, %v4222
      %v4241 = vpack.c.b16 %v4225, %v4223
      %v4242 = vpack.c.b16 %v4228, %v4226
      %v4243 = vpack.c.b16 %v4229, %v4227
      %v4244 = vpack.c.b16 %v4232, %v4230
      %v4245 = vpack.c.b16 %v4233, %v4231
      %v4259 = vsel %vm553, %v4184, 0
      %4261 = vmatprep.subr.bf16.mxu0 %v4235
      %4262 = vmatpush1.bf16.msra.mxu0 %v4234
      %4263 = vmatprep.subr.bf16.mxu0 %v4237
      %4264 = vmatpush1.bf16.msra.mxu0 %v4236
      %4265 = vmatprep.subr.bf16.mxu0 %v4239
      %4266 = vmatpush1.bf16.msra.mxu0 %v4238
      %4267 = vmatprep.subr.bf16.mxu0 %v4241
      %4268 = vmatpush1.bf16.msra.mxu0 %v4240
      %4269 = vmatprep.subr.bf16.mxu0 %v4243
      %4270 = vmatpush1.bf16.msra.mxu0 %v4242
      %4271 = vmatprep.subr.bf16.mxu0 %v4245
      %4272 = vmatpush1.bf16.msra.mxu0 %v4244
      %4273 = vmatprep.subr.bf16.mxu0 0
      %4274 = vmatpush1.bf16.msra.mxu0 0
      %4275 = vmatprep.subr.bf16.mxu0 0
      %4276 = vmatpush1.bf16.msra.mxu0 0
      %4277 = vmatprep.subr.bf16.mxu0 0
      %4278 = vmatpush1.bf16.msra.mxu0 0
      %4279 = vmatprep.subr.bf16.mxu0 0
      %4280 = vmatpush1.bf16.msra.mxu0 0
      %4281 = vmatprep.subr.bf16.mxu0 0
      %4282 = vmatpush1.bf16.msra.mxu0 0
      %4283 = vmatprep.subr.bf16.mxu0 0
      %4284 = vmatpush1.bf16.msra.mxu0 0
      %4285 = vmatprep.subr.bf16.mxu0 0
      %4286 = vmatpush1.bf16.msra.mxu0 0
      %4287 = vmatprep.subr.bf16.mxu0 0
      %4288 = vmatpush1.bf16.msra.mxu0 0
      %4289 = vmatprep.subr.bf16.mxu0 0
      %4290 = vmatpush1.bf16.msra.mxu0 0
      %4291 = vmatprep.subr.bf16.mxu0 0
      %4292 = vmatpush1.bf16.msra.mxu0 0
      %4293 = vmatprep.mubr.bf16.mxu0 0
      %4294 = vmatmul.mubr.bf16.gmra.mrb[0].mxu0 %v4259
      %v4295 = vpop.f32.mrb[0].mxu0
      %v4296 = vadd.f32 0.0, %v4295
      %v4297 = vpop.f32.mrb[0].mxu0
      %v4298 = vadd.f32 0.0, %v4297
      %v4299 = vpop.f32.mrb[0].mxu0
      %v4300 = vpop.f32.mrb[0].mxu0
      %4301 = vdwg.mxu0
      %v4302 = vadd.f32 %v4182, %v4296
      %v4303 = vadd.f32 %v4183, %v4298
      %v4304 = vld [vmem:[#allocation4 + $0x10] sm:$0xf]
      %s4305 = scalar_lea.vmem %s7, 384
      %v4306 = vld [vmem:[%s4305] sm:$0xff]
      %v4307 = vld [vmem:[%s4305 + $0x8] sm:$0xff]
      %v4308 = vld [vmem:[%s4305 + $0x10] sm:$0xff]
      %v4309 = vld [vmem:[%s4305 + $0x18] sm:$0xff]
      %v4310 = vld [vmem:[%s4305 + $0x20] sm:$0xff]
      %v4311 = vld [vmem:[%s4305 + $0x28] sm:$0xff]
      %v4312 = vld [vmem:[%s4305 + $0x30] sm:$0xff]
      %v4313 = vld [vmem:[%s4305 + $0x38] sm:$0xff]
      %v4314 = vld [vmem:[%s4305 + $0x40] sm:$0xff]
      %v4315 = vld [vmem:[%s4305 + $0x48] sm:$0xff]
      %v4316 = vld [vmem:[%s4305 + $0x50] sm:$0xff]
      %v4317 = vld [vmem:[%s4305 + $0x58] sm:$0xff]
      %v4330 = vunpack.c.l.b16 %v4306
      %v4331 = vunpack.c.h.b16 %v4306
      %v4332 = vunpack.c.l.b16 %v4307
      %v4333 = vunpack.c.h.b16 %v4307
      %v4334 = vunpack.c.l.b16 %v4308
      %v4335 = vunpack.c.h.b16 %v4308
      %v4336 = vunpack.c.l.b16 %v4309
      %v4337 = vunpack.c.h.b16 %v4309
      %v4338 = vunpack.c.l.b16 %v4310
      %v4339 = vunpack.c.h.b16 %v4310
      %v4340 = vunpack.c.l.b16 %v4311
      %v4341 = vunpack.c.h.b16 %v4311
      %v4342 = vunpack.c.l.b16 %v4312
      %v4343 = vunpack.c.h.b16 %v4312
      %v4344 = vunpack.c.l.b16 %v4313
      %v4345 = vunpack.c.h.b16 %v4313
      %v4346 = vunpack.c.l.b16 %v4314
      %v4347 = vunpack.c.h.b16 %v4314
      %v4348 = vunpack.c.l.b16 %v4315
      %v4349 = vunpack.c.h.b16 %v4315
      %v4350 = vunpack.c.l.b16 %v4316
      %v4351 = vunpack.c.h.b16 %v4316
      %v4352 = vunpack.c.l.b16 %v4317
      %v4353 = vunpack.c.h.b16 %v4317
      %v4354 = vpack.c.b16 %v4332, %v4330
      %v4355 = vpack.c.b16 %v4333, %v4331
      %v4356 = vpack.c.b16 %v4336, %v4334
      %v4357 = vpack.c.b16 %v4337, %v4335
      %v4358 = vpack.c.b16 %v4340, %v4338
      %v4359 = vpack.c.b16 %v4341, %v4339
      %v4360 = vpack.c.b16 %v4344, %v4342
      %v4361 = vpack.c.b16 %v4345, %v4343
      %v4362 = vpack.c.b16 %v4348, %v4346
      %v4363 = vpack.c.b16 %v4349, %v4347
      %v4364 = vpack.c.b16 %v4352, %v4350
      %v4365 = vpack.c.b16 %v4353, %v4351
      %v4379 = vsel %vm553, %v4304, 0
      %4381 = vmatprep.subr.bf16.mxu0 %v4355
      %4382 = vmatpush1.bf16.msra.mxu0 %v4354
      %4383 = vmatprep.subr.bf16.mxu0 %v4357
      %4384 = vmatpush1.bf16.msra.mxu0 %v4356
      %4385 = vmatprep.subr.bf16.mxu0 %v4359
      %4386 = vmatpush1.bf16.msra.mxu0 %v4358
      %4387 = vmatprep.subr.bf16.mxu0 %v4361
      %4388 = vmatpush1.bf16.msra.mxu0 %v4360
      %4389 = vmatprep.subr.bf16.mxu0 %v4363
      %4390 = vmatpush1.bf16.msra.mxu0 %v4362
      %4391 = vmatprep.subr.bf16.mxu0 %v4365
      %4392 = vmatpush1.bf16.msra.mxu0 %v4364
      %4393 = vmatprep.subr.bf16.mxu0 0
      %4394 = vmatpush1.bf16.msra.mxu0 0
      %4395 = vmatprep.subr.bf16.mxu0 0
      %4396 = vmatpush1.bf16.msra.mxu0 0
      %4397 = vmatprep.subr.bf16.mxu0 0
      %4398 = vmatpush1.bf16.msra.mxu0 0
      %4399 = vmatprep.subr.bf16.mxu0 0
      %4400 = vmatpush1.bf16.msra.mxu0 0
      %4401 = vmatprep.subr.bf16.mxu0 0
      %4402 = vmatpush1.bf16.msra.mxu0 0
      %4403 = vmatprep.subr.bf16.mxu0 0
      %4404 = vmatpush1.bf16.msra.mxu0 0
      %4405 = vmatprep.subr.bf16.mxu0 0
      %4406 = vmatpush1.bf16.msra.mxu0 0
      %4407 = vmatprep.subr.bf16.mxu0 0
      %4408 = vmatpush1.bf16.msra.mxu0 0
      %4409 = vmatprep.subr.bf16.mxu0 0
      %4410 = vmatpush1.bf16.msra.mxu0 0
      %4411 = vmatprep.subr.bf16.mxu0 0
      %4412 = vmatpush1.bf16.msra.mxu0 0
      %4413 = vmatprep.mubr.bf16.mxu0 0
      %4414 = vmatmul.mubr.bf16.gmra.mrb[0].mxu0 %v4379
      %v4415 = vpop.f32.mrb[0].mxu0
      %v4416 = vadd.f32 0.0, %v4415
      %v4417 = vpop.f32.mrb[0].mxu0
      %v4418 = vadd.f32 0.0, %v4417
      %v4419 = vpop.f32.mrb[0].mxu0
      %v4420 = vpop.f32.mrb[0].mxu0
      %4421 = vdwg.mxu0
      %v4422 = vadd.f32 %v4302, %v4416
      %v4423 = vadd.f32 %v4303, %v4418
      %v4424 = vld [vmem:[#allocation4 + $0x14] sm:$0xf]
      %s4425 = scalar_lea.vmem %s7, 480
      %v4426 = vld [vmem:[%s4425] sm:$0xff]
      %v4427 = vld [vmem:[%s4425 + $0x8] sm:$0xff]
      %v4428 = vld [vmem:[%s4425 + $0x10] sm:$0xff]
      %v4429 = vld [vmem:[%s4425 + $0x18] sm:$0xff]
      %v4430 = vld [vmem:[%s4425 + $0x20] sm:$0xff]
      %v4431 = vld [vmem:[%s4425 + $0x28] sm:$0xff]
      %v4432 = vld [vmem:[%s4425 + $0x30] sm:$0xff]
      %v4433 = vld [vmem:[%s4425 + $0x38] sm:$0xff]
      %v4434 = vld [vmem:[%s4425 + $0x40] sm:$0xff]
      %v4435 = vld [vmem:[%s4425 + $0x48] sm:$0xff]
      %v4436 = vld [vmem:[%s4425 + $0x50] sm:$0xff]
      %v4437 = vld [vmem:[%s4425 + $0x58] sm:$0xff]
      %v4450 = vunpack.c.l.b16 %v4426
      %v4451 = vunpack.c.h.b16 %v4426
      %v4452 = vunpack.c.l.b16 %v4427
      %v4453 = vunpack.c.h.b16 %v4427
      %v4454 = vunpack.c.l.b16 %v4428
      %v4455 = vunpack.c.h.b16 %v4428
      %v4456 = vunpack.c.l.b16 %v4429
      %v4457 = vunpack.c.h.b16 %v4429
      %v4458 = vunpack.c.l.b16 %v4430
      %v4459 = vunpack.c.h.b16 %v4430
      %v4460 = vunpack.c.l.b16 %v4431
      %v4461 = vunpack.c.h.b16 %v4431
      %v4462 = vunpack.c.l.b16 %v4432
      %v4463 = vunpack.c.h.b16 %v4432
      %v4464 = vunpack.c.l.b16 %v4433
      %v4465 = vunpack.c.h.b16 %v4433
      %v4466 = vunpack.c.l.b16 %v4434
      %v4467 = vunpack.c.h.b16 %v4434
      %v4468 = vunpack.c.l.b16 %v4435
      %v4469 = vunpack.c.h.b16 %v4435
      %v4470 = vunpack.c.l.b16 %v4436
      %v4471 = vunpack.c.h.b16 %v4436
      %v4472 = vunpack.c.l.b16 %v4437
      %v4473 = vunpack.c.h.b16 %v4437
      %v4474 = vpack.c.b16 %v4452, %v4450
      %v4475 = vpack.c.b16 %v4453, %v4451
      %v4476 = vpack.c.b16 %v4456, %v4454
      %v4477 = vpack.c.b16 %v4457, %v4455
      %v4478 = vpack.c.b16 %v4460, %v4458
      %v4479 = vpack.c.b16 %v4461, %v4459
      %v4480 = vpack.c.b16 %v4464, %v4462
      %v4481 = vpack.c.b16 %v4465, %v4463
      %v4482 = vpack.c.b16 %v4468, %v4466
      %v4483 = vpack.c.b16 %v4469, %v4467
      %v4484 = vpack.c.b16 %v4472, %v4470
      %v4485 = vpack.c.b16 %v4473, %v4471
      %v4499 = vsel %vm553, %v4424, 0
      %4501 = vmatprep.subr.bf16.mxu0 %v4475
      %4502 = vmatpush1.bf16.msra.mxu0 %v4474
      %4503 = vmatprep.subr.bf16.mxu0 %v4477
      %4504 = vmatpush1.bf16.msra.mxu0 %v4476
      %4505 = vmatprep.subr.bf16.mxu0 %v4479
      %4506 = vmatpush1.bf16.msra.mxu0 %v4478
      %4507 = vmatprep.subr.bf16.mxu0 %v4481
      %4508 = vmatpush1.bf16.msra.mxu0 %v4480
      %4509 = vmatprep.subr.bf16.mxu0 %v4483
      %4510 = vmatpush1.bf16.msra.mxu0 %v4482
      %4511 = vmatprep.subr.bf16.mxu0 %v4485
      %4512 = vmatpush1.bf16.msra.mxu0 %v4484
      %4513 = vmatprep.subr.bf16.mxu0 0
      %4514 = vmatpush1.bf16.msra.mxu0 0
      %4515 = vmatprep.subr.bf16.mxu0 0
      %4516 = vmatpush1.bf16.msra.mxu0 0
      %4517 = vmatprep.subr.bf16.mxu0 0
      %4518 = vmatpush1.bf16.msra.mxu0 0
      %4519 = vmatprep.subr.bf16.mxu0 0
      %4520 = vmatpush1.bf16.msra.mxu0 0
      %4521 = vmatprep.subr.bf16.mxu0 0
      %4522 = vmatpush1.bf16.msra.mxu0 0
      %4523 = vmatprep.subr.bf16.mxu0 0
      %4524 = vmatpush1.bf16.msra.mxu0 0
      %4525 = vmatprep.subr.bf16.mxu0 0
      %4526 = vmatpush1.bf16.msra.mxu0 0
      %4527 = vmatprep.subr.bf16.mxu0 0
      %4528 = vmatpush1.bf16.msra.mxu0 0
      %4529 = vmatprep.subr.bf16.mxu0 0
      %4530 = vmatpush1.bf16.msra.mxu0 0
      %4531 = vmatprep.subr.bf16.mxu0 0
      %4532 = vmatpush1.bf16.msra.mxu0 0
      %4533 = vmatprep.mubr.bf16.mxu0 0
      %4534 = vmatmul.mubr.bf16.gmra.mrb[0].mxu0 %v4499
      %v4535 = vpop.f32.mrb[0].mxu0
      %v4536 = vadd.f32 0.0, %v4535
      %v4537 = vpop.f32.mrb[0].mxu0
      %v4538 = vadd.f32 0.0, %v4537
      %v4539 = vpop.f32.mrb[0].mxu0
      %v4540 = vpop.f32.mrb[0].mxu0
      %4541 = vdwg.mxu0
      %v4542 = vadd.f32 %v4422, %v4536
      %v4543 = vadd.f32 %v4423, %v4538
      %v4544 = vld [vmem:[#allocation4 + $0x18] sm:$0xf]
      %s4545 = scalar_lea.vmem %s7, 576
      %v4546 = vld [vmem:[%s4545] sm:$0xff]
      %v4547 = vld [vmem:[%s4545 + $0x8] sm:$0xff]
      %v4548 = vld [vmem:[%s4545 + $0x10] sm:$0xff]
      %v4549 = vld [vmem:[%s4545 + $0x18] sm:$0xff]
      %v4550 = vld [vmem:[%s4545 + $0x20] sm:$0xff]
      %v4551 = vld [vmem:[%s4545 + $0x28] sm:$0xff]
      %v4552 = vld [vmem:[%s4545 + $0x30] sm:$0xff]
      %v4553 = vld [vmem:[%s4545 + $0x38] sm:$0xff]
      %v4554 = vld [vmem:[%s4545 + $0x40] sm:$0xff]
      %v4555 = vld [vmem:[%s4545 + $0x48] sm:$0xff]
      %v4556 = vld [vmem:[%s4545 + $0x50] sm:$0xff]
      %v4557 = vld [vmem:[%s4545 + $0x58] sm:$0xff]
      %v4570 = vunpack.c.l.b16 %v4546
      %v4571 = vunpack.c.h.b16 %v4546
      %v4572 = vunpack.c.l.b16 %v4547
      %v4573 = vunpack.c.h.b16 %v4547
      %v4574 = vunpack.c.l.b16 %v4548
      %v4575 = vunpack.c.h.b16 %v4548
      %v4576 = vunpack.c.l.b16 %v4549
      %v4577 = vunpack.c.h.b16 %v4549
      %v4578 = vunpack.c.l.b16 %v4550
      %v4579 = vunpack.c.h.b16 %v4550
      %v4580 = vunpack.c.l.b16 %v4551
      %v4581 = vunpack.c.h.b16 %v4551
      %v4582 = vunpack.c.l.b16 %v4552
      %v4583 = vunpack.c.h.b16 %v4552
      %v4584 = vunpack.c.l.b16 %v4553
      %v4585 = vunpack.c.h.b16 %v4553
      %v4586 = vunpack.c.l.b16 %v4554
      %v4587 = vunpack.c.h.b16 %v4554
      %v4588 = vunpack.c.l.b16 %v4555
      %v4589 = vunpack.c.h.b16 %v4555
      %v4590 = vunpack.c.l.b16 %v4556
      %v4591 = vunpack.c.h.b16 %v4556
      %v4592 = vunpack.c.l.b16 %v4557
      %v4593 = vunpack.c.h.b16 %v4557
      %v4594 = vpack.c.b16 %v4572, %v4570
      %v4595 = vpack.c.b16 %v4573, %v4571
      %v4596 = vpack.c.b16 %v4576, %v4574
      %v4597 = vpack.c.b16 %v4577, %v4575
      %v4598 = vpack.c.b16 %v4580, %v4578
      %v4599 = vpack.c.b16 %v4581, %v4579
      %v4600 = vpack.c.b16 %v4584, %v4582
      %v4601 = vpack.c.b16 %v4585, %v4583
      %v4602 = vpack.c.b16 %v4588, %v4586
      %v4603 = vpack.c.b16 %v4589, %v4587
      %v4604 = vpack.c.b16 %v4592, %v4590
      %v4605 = vpack.c.b16 %v4593, %v4591
      %v4619 = vsel %vm553, %v4544, 0
      %4621 = vmatprep.subr.bf16.mxu0 %v4595
      %4622 = vmatpush1.bf16.msra.mxu0 %v4594
      %4623 = vmatprep.subr.bf16.mxu0 %v4597
      %4624 = vmatpush1.bf16.msra.mxu0 %v4596
      %4625 = vmatprep.subr.bf16.mxu0 %v4599
      %4626 = vmatpush1.bf16.msra.mxu0 %v4598
      %4627 = vmatprep.subr.bf16.mxu0 %v4601
      %4628 = vmatpush1.bf16.msra.mxu0 %v4600
      %4629 = vmatprep.subr.bf16.mxu0 %v4603
      %4630 = vmatpush1.bf16.msra.mxu0 %v4602
      %4631 = vmatprep.subr.bf16.mxu0 %v4605
      %4632 = vmatpush1.bf16.msra.mxu0 %v4604
      %4633 = vmatprep.subr.bf16.mxu0 0
      %4634 = vmatpush1.bf16.msra.mxu0 0
      %4635 = vmatprep.subr.bf16.mxu0 0
      %4636 = vmatpush1.bf16.msra.mxu0 0
      %4637 = vmatprep.subr.bf16.mxu0 0
      %4638 = vmatpush1.bf16.msra.mxu0 0
      %4639 = vmatprep.subr.bf16.mxu0 0
      %4640 = vmatpush1.bf16.msra.mxu0 0
      %4641 = vmatprep.subr.bf16.mxu0 0
      %4642 = vmatpush1.bf16.msra.mxu0 0
      %4643 = vmatprep.subr.bf16.mxu0 0
      %4644 = vmatpush1.bf16.msra.mxu0 0
      %4645 = vmatprep.subr.bf16.mxu0 0
      %4646 = vmatpush1.bf16.msra.mxu0 0
      %4647 = vmatprep.subr.bf16.mxu0 0
      %4648 = vmatpush1.bf16.msra.mxu0 0
      %4649 = vmatprep.subr.bf16.mxu0 0
      %4650 = vmatpush1.bf16.msra.mxu0 0
      %4651 = vmatprep.subr.bf16.mxu0 0
      %4652 = vmatpush1.bf16.msra.mxu0 0
      %4653 = vmatprep.mubr.bf16.mxu0 0
      %4654 = vmatmul.mubr.bf16.gmra.mrb[0].mxu0 %v4619
      %v4655 = vpop.f32.mrb[0].mxu0
      %v4656 = vadd.f32 0.0, %v4655
      %v4657 = vpop.f32.mrb[0].mxu0
      %v4658 = vadd.f32 0.0, %v4657
      %v4659 = vpop.f32.mrb[0].mxu0
      %v4660 = vpop.f32.mrb[0].mxu0
      %4661 = vdwg.mxu0
      %v4662 = vadd.f32 %v4542, %v4656
      %v4663 = vadd.f32 %v4543, %v4658
      %v4664 = vld [vmem:[#allocation4 + $0x1c] sm:$0xf]
      %s4665 = scalar_lea.vmem %s7, 672
      %v4666 = vld [vmem:[%s4665] sm:$0xff]
      %v4667 = vld [vmem:[%s4665 + $0x8] sm:$0xff]
      %v4668 = vld [vmem:[%s4665 + $0x10] sm:$0xff]
      %v4669 = vld [vmem:[%s4665 + $0x18] sm:$0xff]
      %v4670 = vld [vmem:[%s4665 + $0x20] sm:$0xff]
      %v4671 = vld [vmem:[%s4665 + $0x28] sm:$0xff]
      %v4672 = vld [vmem:[%s4665 + $0x30] sm:$0xff]
      %v4673 = vld [vmem:[%s4665 + $0x38] sm:$0xff]
      %v4674 = vld [vmem:[%s4665 + $0x40] sm:$0xff]
      %v4675 = vld [vmem:[%s4665 + $0x48] sm:$0xff]
      %v4676 = vld [vmem:[%s4665 + $0x50] sm:$0xff]
      %v4677 = vld [vmem:[%s4665 + $0x58] sm:$0xff]
      %v4690 = vunpack.c.l.b16 %v4666
      %v4691 = vunpack.c.h.b16 %v4666
      %v4692 = vunpack.c.l.b16 %v4667
      %v4693 = vunpack.c.h.b16 %v4667
      %v4694 = vunpack.c.l.b16 %v4668
      %v4695 = vunpack.c.h.b16 %v4668
      %v4696 = vunpack.c.l.b16 %v4669
      %v4697 = vunpack.c.h.b16 %v4669
      %v4698 = vunpack.c.l.b16 %v4670
      %v4699 = vunpack.c.h.b16 %v4670
      %v4700 = vunpack.c.l.b16 %v4671
      %v4701 = vunpack.c.h.b16 %v4671
      %v4702 = vunpack.c.l.b16 %v4672
      %v4703 = vunpack.c.h.b16 %v4672
      %v4704 = vunpack.c.l.b16 %v4673
      %v4705 = vunpack.c.h.b16 %v4673
      %v4706 = vunpack.c.l.b16 %v4674
      %v4707 = vunpack.c.h.b16 %v4674
      %v4708 = vunpack.c.l.b16 %v4675
      %v4709 = vunpack.c.h.b16 %v4675
      %v4710 = vunpack.c.l.b16 %v4676
      %v4711 = vunpack.c.h.b16 %v4676
      %v4712 = vunpack.c.l.b16 %v4677
      %v4713 = vunpack.c.h.b16 %v4677
      %v4714 = vpack.c.b16 %v4692, %v4690
      %v4715 = vpack.c.b16 %v4693, %v4691
      %v4716 = vpack.c.b16 %v4696, %v4694
      %v4717 = vpack.c.b16 %v4697, %v4695
      %v4718 = vpack.c.b16 %v4700, %v4698
      %v4719 = vpack.c.b16 %v4701, %v4699
      %v4720 = vpack.c.b16 %v4704, %v4702
      %v4721 = vpack.c.b16 %v4705, %v4703
      %v4722 = vpack.c.b16 %v4708, %v4706
      %v4723 = vpack.c.b16 %v4709, %v4707
      %v4724 = vpack.c.b16 %v4712, %v4710
      %v4725 = vpack.c.b16 %v4713, %v4711
      %v4739 = vsel %vm553, %v4664, 0
      %4741 = vmatprep.subr.bf16.mxu0 %v4715
      %4742 = vmatpush1.bf16.msra.mxu0 %v4714
      %4743 = vmatprep.subr.bf16.mxu0 %v4717
      %4744 = vmatpush1.bf16.msra.mxu0 %v4716
      %4745 = vmatprep.subr.bf16.mxu0 %v4719
      %4746 = vmatpush1.bf16.msra.mxu0 %v4718
      %4747 = vmatprep.subr.bf16.mxu0 %v4721
      %4748 = vmatpush1.bf16.msra.mxu0 %v4720
      %4749 = vmatprep.subr.bf16.mxu0 %v4723
      %4750 = vmatpush1.bf16.msra.mxu0 %v4722
      %4751 = vmatprep.subr.bf16.mxu0 %v4725
      %4752 = vmatpush1.bf16.msra.mxu0 %v4724
      %4753 = vmatprep.subr.bf16.mxu0 0
      %4754 = vmatpush1.bf16.msra.mxu0 0
      %4755 = vmatprep.subr.bf16.mxu0 0
      %4756 = vmatpush1.bf16.msra.mxu0 0
      %4757 = vmatprep.subr.bf16.mxu0 0
      %4758 = vmatpush1.bf16.msra.mxu0 0
      %4759 = vmatprep.subr.bf16.mxu0 0
      %4760 = vmatpush1.bf16.msra.mxu0 0
      %4761 = vmatprep.subr.bf16.mxu0 0
      %4762 = vmatpush1.bf16.msra.mxu0 0
      %4763 = vmatprep.subr.bf16.mxu0 0
      %4764 = vmatpush1.bf16.msra.mxu0 0
      %4765 = vmatprep.subr.bf16.mxu0 0
      %4766 = vmatpush1.bf16.msra.mxu0 0
      %4767 = vmatprep.subr.bf16.mxu0 0
      %4768 = vmatpush1.bf16.msra.mxu0 0
      %4769 = vmatprep.subr.bf16.mxu0 0
      %4770 = vmatpush1.bf16.msra.mxu0 0
      %4771 = vmatprep.subr.bf16.mxu0 0
      %4772 = vmatpush1.bf16.msra.mxu0 0
      %4773 = vmatprep.mubr.bf16.mxu0 0
      %4774 = vmatmul.mubr.bf16.gmra.mrb[0].mxu0 %v4739
      %v4775 = vpop.f32.mrb[0].mxu0
      %v4776 = vadd.f32 0.0, %v4775
      %v4777 = vpop.f32.mrb[0].mxu0
      %v4778 = vadd.f32 0.0, %v4777
      %v4779 = vpop.f32.mrb[0].mxu0
      %v4780 = vpop.f32.mrb[0].mxu0
      %4781 = vdwg.mxu0
      %v4782 = vadd.f32 %v4662, %v4776
      %v4783 = vadd.f32 %v4663, %v4778
      %v4784 = vld [vmem:[#allocation4 + $0x20] sm:$0xf]
      %s4785 = scalar_lea.vmem %s7, 768
      %v4786 = vld [vmem:[%s4785] sm:$0xff]
      %v4787 = vld [vmem:[%s4785 + $0x8] sm:$0xff]
      %v4788 = vld [vmem:[%s4785 + $0x10] sm:$0xff]
      %v4789 = vld [vmem:[%s4785 + $0x18] sm:$0xff]
      %v4790 = vld [vmem:[%s4785 + $0x20] sm:$0xff]
      %v4791 = vld [vmem:[%s4785 + $0x28] sm:$0xff]
      %v4792 = vld [vmem:[%s4785 + $0x30] sm:$0xff]
      %v4793 = vld [vmem:[%s4785 + $0x38] sm:$0xff]
      %v4794 = vld [vmem:[%s4785 + $0x40] sm:$0xff]
      %v4795 = vld [vmem:[%s4785 + $0x48] sm:$0xff]
      %v4796 = vld [vmem:[%s4785 + $0x50] sm:$0xff]
      %v4797 = vld [vmem:[%s4785 + $0x58] sm:$0xff]
      %v4810 = vunpack.c.l.b16 %v4786
      %v4811 = vunpack.c.h.b16 %v4786
      %v4812 = vunpack.c.l.b16 %v4787
      %v4813 = vunpack.c.h.b16 %v4787
      %v4814 = vunpack.c.l.b16 %v4788
      %v4815 = vunpack.c.h.b16 %v4788
      %v4816 = vunpack.c.l.b16 %v4789
      %v4817 = vunpack.c.h.b16 %v4789
      %v4818 = vunpack.c.l.b16 %v4790
      %v4819 = vunpack.c.h.b16 %v4790
      %v4820 = vunpack.c.l.b16 %v4791
      %v4821 = vunpack.c.h.b16 %v4791
      %v4822 = vunpack.c.l.b16 %v4792
      %v4823 = vunpack.c.h.b16 %v4792
      %v4824 = vunpack.c.l.b16 %v4793
      %v4825 = vunpack.c.h.b16 %v4793
      %v4826 = vunpack.c.l.b16 %v4794
      %v4827 = vunpack.c.h.b16 %v4794
      %v4828 = vunpack.c.l.b16 %v4795
      %v4829 = vunpack.c.h.b16 %v4795
      %v4830 = vunpack.c.l.b16 %v4796
      %v4831 = vunpack.c.h.b16 %v4796
      %v4832 = vunpack.c.l.b16 %v4797
      %v4833 = vunpack.c.h.b16 %v4797
      %v4834 = vpack.c.b16 %v4812, %v4810
      %v4835 = vpack.c.b16 %v4813, %v4811
      %v4836 = vpack.c.b16 %v4816, %v4814
      %v4837 = vpack.c.b16 %v4817, %v4815
      %v4838 = vpack.c.b16 %v4820, %v4818
      %v4839 = vpack.c.b16 %v4821, %v4819
      %v4840 = vpack.c.b16 %v4824, %v4822
      %v4841 = vpack.c.b16 %v4825, %v4823
      %v4842 = vpack.c.b16 %v4828, %v4826
      %v4843 = vpack.c.b16 %v4829, %v4827
      %v4844 = vpack.c.b16 %v4832, %v4830
      %v4845 = vpack.c.b16 %v4833, %v4831
      %v4859 = vsel %vm553, %v4784, 0
      %4861 = vmatprep.subr.bf16.mxu0 %v4835
      %4862 = vmatpush1.bf16.msra.mxu0 %v4834
      %4863 = vmatprep.subr.bf16.mxu0 %v4837
      %4864 = vmatpush1.bf16.msra.mxu0 %v4836
      %4865 = vmatprep.subr.bf16.mxu0 %v4839
      %4866 = vmatpush1.bf16.msra.mxu0 %v4838
      %4867 = vmatprep.subr.bf16.mxu0 %v4841
      %4868 = vmatpush1.bf16.msra.mxu0 %v4840
      %4869 = vmatprep.subr.bf16.mxu0 %v4843
      %4870 = vmatpush1.bf16.msra.mxu0 %v4842
      %4871 = vmatprep.subr.bf16.mxu0 %v4845
      %4872 = vmatpush1.bf16.msra.mxu0 %v4844
      %4873 = vmatprep.subr.bf16.mxu0 0
      %4874 = vmatpush1.bf16.msra.mxu0 0
      %4875 = vmatprep.subr.bf16.mxu0 0
      %4876 = vmatpush1.bf16.msra.mxu0 0
      %4877 = vmatprep.subr.bf16.mxu0 0
      %4878 = vmatpush1.bf16.msra.mxu0 0
      %4879 = vmatprep.subr.bf16.mxu0 0
      %4880 = vmatpush1.bf16.msra.mxu0 0
      %4881 = vmatprep.subr.bf16.mxu0 0
      %4882 = vmatpush1.bf16.msra.mxu0 0
      %4883 = vmatprep.subr.bf16.mxu0 0
      %4884 = vmatpush1.bf16.msra.mxu0 0
      %4885 = vmatprep.subr.bf16.mxu0 0
      %4886 = vmatpush1.bf16.msra.mxu0 0
      %4887 = vmatprep.subr.bf16.mxu0 0
      %4888 = vmatpush1.bf16.msra.mxu0 0
      %4889 = vmatprep.subr.bf16.mxu0 0
      %4890 = vmatpush1.bf16.msra.mxu0 0
      %4891 = vmatprep.subr.bf16.mxu0 0
      %4892 = vmatpush1.bf16.msra.mxu0 0
      %4893 = vmatprep.mubr.bf16.mxu0 0
      %4894 = vmatmul.mubr.bf16.gmra.mrb[0].mxu0 %v4859
      %v4895 = vpop.f32.mrb[0].mxu0
      %v4896 = vadd.f32 0.0, %v4895
      %v4897 = vpop.f32.mrb[0].mxu0
      %v4898 = vadd.f32 0.0, %v4897
      %v4899 = vpop.f32.mrb[0].mxu0
      %v4900 = vpop.f32.mrb[0].mxu0
      %4901 = vdwg.mxu0
      %v4902 = vadd.f32 %v4782, %v4896
      %v4903 = vadd.f32 %v4783, %v4898
      %v4904 = vld [vmem:[%s10] ss:$4 sm:$0x3]
      %v4906 = vlaneseq
      %v4907 = vshrl.u32 %v4906, 7
      %v4908 = vsub.s32 0, %v4907
      %v4909 = vrot.slane %v4904, %v4908
      %v4910 = vlaneseq
      %v4911 = vshrl.u32 %v4910, 7
      %v4912 = vsub.s32 1, %v4911
      %v4913 = vrot.slane %v4904, %v4912
      %v4916 = vadd.f32 %v4902, %v4909
      %v4917 = vadd.f32 %v4903, %v4913
      %v4918 = vmax.f32 %v4916, 0.0
      %v4919 = vmax.f32 %v4917, 0.0
      %s4920 = scalar_lea.vmem %s10, 1
      %v4921 = vld [vmem:[%s4920] ss:$4 sm:$0x3]
      %v4923 = vlaneseq
      %v4924 = vshrl.u32 %v4923, 7
      %v4925 = vsub.s32 0, %v4924
      %v4926 = vrot.slane %v4921, %v4925
      %v4927 = vlaneseq
      %v4928 = vshrl.u32 %v4927, 7
      %v4929 = vsub.s32 1, %v4928
      %v4930 = vrot.slane %v4921, %v4929
      %v4933 = vmul.f32 %v4918, %v4926
      %v4934 = vmul.f32 %v4919, %v4930
      %s4935 = scalar_lea.vmem %s10, 2
      %v4936 = vld [vmem:[%s4935] ss:$4 sm:$0x3]
      %v4938 = vlaneseq
      %v4939 = vshrl.u32 %v4938, 7
      %v4940 = vsub.s32 0, %v4939
      %v4941 = vrot.slane %v4936, %v4940
      %v4942 = vlaneseq
      %v4943 = vshrl.u32 %v4942, 7
      %v4944 = vsub.s32 1, %v4943
      %v4945 = vrot.slane %v4936, %v4944
      %v4948 = vadd.f32 %v4933, %v4941
      %v4949 = vadd.f32 %v4934, %v4945
      %v4950 = vsel %vm1755, %v4948, 0.0
      %v4951 = vrot.slane %v4950, 4
      %v4952 = vadd.f32 %v4950, %v4951
      %v4953 = vrot.slane %v4952, 2
      %v4954 = vadd.f32 %v4952, %v4953
      %v4955 = vrot.slane %v4954, 1
      %v4956 = vadd.f32 %v4954, %v4955
      %vm4957 = vcmask 519168
      %v4958 = vsel %vm4957, %v4949, 0.0
      %v4959 = vrot.slane %v4958, 4
      %v4960 = vadd.f32 %v4958, %v4959
      %v4961 = vrot.slane %v4960, 2
      %v4962 = vadd.f32 %v4960, %v4961
      %v4963 = vrot.slane %v4962, 1
      %v4964 = vadd.f32 %v4962, %v4963
      %v4965 = vmul.f32 %v4956, 0.25
      %v4966 = vmul.f32 %v4964, 0.25
      %v4967 = vpack.c.bf16 %v4965, %v4965
      %v4968 = vpack.c.bf16 %v4966, %v4966
      %v4969 = vld [vmem:[%s8] sm:$0xf]
      %v4970 = vld [vmem:[%s8 + $0x4] sm:$0xf]
      %v4971 = vld [vmem:[%s8 + $0x8] sm:$0xf]
      %v4972 = vld [vmem:[%s8 + $0xc] sm:$0xf]
      %v4973 = vld [vmem:[%s8 + $0x10] sm:$0xf]
      %v4974 = vld [vmem:[%s8 + $0x14] sm:$0xf]
      %v4975 = vld [vmem:[%s8 + $0x18] sm:$0xf]
      %v4976 = vld [vmem:[%s8 + $0x1c] sm:$0xf]
      %v4977 = vld [vmem:[%s8 + $0x20] sm:$0xf]
      %v4978 = vld [vmem:[%s8 + $0x24] sm:$0xf]
      %v4979 = vld [vmem:[%s8 + $0x28] sm:$0xf]
      %v4980 = vld [vmem:[%s8 + $0x2c] sm:$0xf]
      %v4981 = vld [vmem:[%s8 + $0x30] sm:$0xf]
      %v4982 = vld [vmem:[%s8 + $0x34] sm:$0xf]
      %v4983 = vld [vmem:[%s8 + $0x38] sm:$0xf]
      %v4984 = vld [vmem:[%s8 + $0x3c] sm:$0xf]
      %v4985 = vld [vmem:[%s8 + $0x40] sm:$0xf]
      %v4986 = vld [vmem:[%s8 + $0x44] sm:$0xf]
      %v4987 = vld [vmem:[%s8 + $0x48] sm:$0xf]
      %v4988 = vld [vmem:[%s8 + $0x4c] sm:$0xf]
      %v4989 = vld [vmem:[%s8 + $0x50] sm:$0xf]
      %v4990 = vld [vmem:[%s8 + $0x54] sm:$0xf]
      %v4991 = vld [vmem:[%s8 + $0x58] sm:$0xf]
      %v4992 = vld [vmem:[%s8 + $0x5c] sm:$0xf]
      %v4993 = vld [vmem:[%s10 + $0x3] sm:$0x1]
      %v5018 = vunpack.c.l.b16 %v4969
      %v5019 = vunpack.c.l.b16 %v4970
      %v5020 = vunpack.c.l.b16 %v4971
      %v5021 = vunpack.c.l.b16 %v4972
      %v5022 = vunpack.c.l.b16 %v4973
      %v5023 = vunpack.c.l.b16 %v4974
      %v5024 = vunpack.c.l.b16 %v4975
      %v5025 = vunpack.c.l.b16 %v4976
      %v5026 = vunpack.c.l.b16 %v4977
      %v5027 = vunpack.c.l.b16 %v4978
      %v5028 = vunpack.c.l.b16 %v4979
      %v5029 = vunpack.c.l.b16 %v4980
      %v5030 = vunpack.c.l.b16 %v4981
      %v5031 = vunpack.c.l.b16 %v4982
      %v5032 = vunpack.c.l.b16 %v4983
      %v5033 = vunpack.c.l.b16 %v4984
      %v5034 = vunpack.c.l.b16 %v4985
      %v5035 = vunpack.c.l.b16 %v4986
      %v5036 = vunpack.c.l.b16 %v4987
      %v5037 = vunpack.c.l.b16 %v4988
      %v5038 = vunpack.c.l.b16 %v4989
      %v5039 = vunpack.c.l.b16 %v4990
      %v5040 = vunpack.c.l.b16 %v4991
      %v5041 = vunpack.c.l.b16 %v4992
      %v5042 = vpack.c.b16 %v5019, %v5018
      %v5043 = vpack.c.b16 %v5021, %v5020
      %v5044 = vpack.c.b16 %v5023, %v5022
      %v5045 = vpack.c.b16 %v5025, %v5024
      %v5046 = vpack.c.b16 %v5027, %v5026
      %v5047 = vpack.c.b16 %v5029, %v5028
      %v5048 = vpack.c.b16 %v5031, %v5030
      %v5049 = vpack.c.b16 %v5033, %v5032
      %v5050 = vpack.c.b16 %v5035, %v5034
      %v5051 = vpack.c.b16 %v5037, %v5036
      %v5052 = vpack.c.b16 %v5039, %v5038
      %v5053 = vpack.c.b16 %v5041, %v5040
      %v5067 = vsel %vm2774, %v4968, 0
      %5069 = vmatprep.subr.bf16.mxu0 0
      %5070 = vmatpush1.bf16.msra.mxu0 %v5042
      %5071 = vmatprep.subr.bf16.mxu0 0
      %5072 = vmatpush1.bf16.msra.mxu0 %v5043
      %5073 = vmatprep.subr.bf16.mxu0 0
      %5074 = vmatpush1.bf16.msra.mxu0 %v5044
      %5075 = vmatprep.subr.bf16.mxu0 0
      %5076 = vmatpush1.bf16.msra.mxu0 %v5045
      %5077 = vmatprep.subr.bf16.mxu0 0
      %5078 = vmatpush1.bf16.msra.mxu0 %v5046
      %5079 = vmatprep.subr.bf16.mxu0 0
      %5080 = vmatpush1.bf16.msra.mxu0 %v5047
      %5081 = vmatprep.subr.bf16.mxu0 0
      %5082 = vmatpush1.bf16.msra.mxu0 %v5048
      %5083 = vmatprep.subr.bf16.mxu0 0
      %5084 = vmatpush1.bf16.msra.mxu0 %v5049
      %5085 = vmatprep.subr.bf16.mxu0 0
      %5086 = vmatpush1.bf16.msra.mxu0 %v5050
      %5087 = vmatprep.subr.bf16.mxu0 0
      %5088 = vmatpush1.bf16.msra.mxu0 %v5051
      %5089 = vmatprep.subr.bf16.mxu0 0
      %5090 = vmatpush1.bf16.msra.mxu0 %v5052
      %5091 = vmatprep.subr.bf16.mxu0 0
      %5092 = vmatpush1.bf16.msra.mxu0 %v5053
      %5093 = vmatprep.subr.bf16.mxu0 0
      %5094 = vmatpush1.bf16.msra.mxu0 0
      %5095 = vmatprep.subr.bf16.mxu0 0
      %5096 = vmatpush1.bf16.msra.mxu0 0
      %5097 = vmatprep.subr.bf16.mxu0 0
      %5098 = vmatpush1.bf16.msra.mxu0 0
      %5099 = vmatprep.subr.bf16.mxu0 0
      %5100 = vmatpush1.bf16.msra.mxu0 0
      %5101 = vmatprep.mubr.bf16.mxu0 %v5067
      %5102 = vmatmul.mubr.bf16.gmra.mrb[0].mxu0 %v4967
      %v5103 = vpop.f32.mrb[0].mxu0
      %v5104 = vadd.f32 %v4993, %v5103
      %v5105 = vpop.f32.mrb[0].mxu0
      %v5106 = vpop.f32.mrb[0].mxu0
      %v5107 = vpop.f32.mrb[0].mxu0
      %5108 = vdwg.mxu0
      %v5109 = vmax.f32 %v5104, 0.0
      %v5110 = vpack.c.bf16 %v5109, %v5109
      %v5111 = vld [vmem:[%s9] sm:$0xf]
      %v5112 = vld [vmem:[%s9 + $0x4] sm:$0xf]
      %v5113 = vld [vmem:[%s9 + $0x8] sm:$0xf]
      %v5114 = vld [vmem:[%s9 + $0xc] sm:$0xf]
      %v5115 = vld [vmem:[%s9 + $0x10] sm:$0xf]
      %v5116 = vld [vmem:[%s9 + $0x14] sm:$0xf]
      %v5117 = vld [vmem:[%s9 + $0x18] sm:$0xf]
      %v5118 = vld [vmem:[%s9 + $0x1c] sm:$0xf]
      %v5119 = vld [vmem:[%s9 + $0x20] sm:$0xf]
      %v5120 = vld [vmem:[%s9 + $0x24] sm:$0xf]
      %v5121 = vld [vmem:[%s9 + $0x28] sm:$0xf]
      %v5122 = vld [vmem:[%s9 + $0x2c] sm:$0xf]
      %v5135 = vunpack.c.l.b16 %v5111
      %v5136 = vunpack.c.l.b16 %v5112
      %v5137 = vunpack.c.l.b16 %v5113
      %v5138 = vunpack.c.l.b16 %v5114
      %v5139 = vunpack.c.l.b16 %v5115
      %v5140 = vunpack.c.l.b16 %v5116
      %v5141 = vunpack.c.l.b16 %v5117
      %v5142 = vunpack.c.l.b16 %v5118
      %v5143 = vunpack.c.l.b16 %v5119
      %v5144 = vunpack.c.l.b16 %v5120
      %v5145 = vunpack.c.l.b16 %v5121
      %v5146 = vunpack.c.l.b16 %v5122
      %v5147 = vpack.c.b16 %v5136, %v5135
      %v5148 = vpack.c.b16 %v5138, %v5137
      %v5149 = vpack.c.b16 %v5140, %v5139
      %v5150 = vpack.c.b16 %v5142, %v5141
      %v5151 = vpack.c.b16 %v5144, %v5143
      %v5152 = vpack.c.b16 %v5146, %v5145
      %v5160 = vlaneseq
      %v5161 = vshrl.u32 %v5160, 7
      %v5162 = vsub.s32 0, %v5161
      %v5163 = vrot.slane %v4993, %v5162
      %5164 = vrot.lane.b32.xlu0 %v5163, 32
      %v5165 = vpop.permute.xlu0 %5164
      %v5168 = vsel %vm553, %v5110, 0
      %5170 = vmatprep.subr.bf16.mxu0 0
      %5171 = vmatpush1.bf16.msra.mxu0 %v5147
      %5172 = vmatprep.subr.bf16.mxu0 0
      %5173 = vmatpush1.bf16.msra.mxu0 %v5148
      %5174 = vmatprep.subr.bf16.mxu0 0
      %5175 = vmatpush1.bf16.msra.mxu0 %v5149
      %5176 = vmatprep.subr.bf16.mxu0 0
      %5177 = vmatpush1.bf16.msra.mxu0 %v5150
      %5178 = vmatprep.subr.bf16.mxu0 0
      %5179 = vmatpush1.bf16.msra.mxu0 %v5151
      %5180 = vmatprep.subr.bf16.mxu0 0
      %5181 = vmatpush1.bf16.msra.mxu0 %v5152
      %5182 = vmatprep.subr.bf16.mxu0 0
      %5183 = vmatpush1.bf16.msra.mxu0 0
      %5184 = vmatprep.subr.bf16.mxu0 0
      %5185 = vmatpush1.bf16.msra.mxu0 0
      %5186 = vmatprep.subr.bf16.mxu0 0
      %5187 = vmatpush1.bf16.msra.mxu0 0
      %5188 = vmatprep.subr.bf16.mxu0 0
      %5189 = vmatpush1.bf16.msra.mxu0 0
      %5190 = vmatprep.subr.bf16.mxu0 0
      %5191 = vmatpush1.bf16.msra.mxu0 0
      %5192 = vmatprep.subr.bf16.mxu0 0
      %5193 = vmatpush1.bf16.msra.mxu0 0
      %5194 = vmatprep.subr.bf16.mxu0 0
      %5195 = vmatpush1.bf16.msra.mxu0 0
      %5196 = vmatprep.subr.bf16.mxu0 0
      %5197 = vmatpush1.bf16.msra.mxu0 0
      %5198 = vmatprep.subr.bf16.mxu0 0
      %5199 = vmatpush1.bf16.msra.mxu0 0
      %5200 = vmatprep.subr.bf16.mxu0 0
      %5201 = vmatpush1.bf16.msra.mxu0 0
      %5202 = vmatprep.mubr.bf16.mxu0 0
      %5203 = vmatmul.mubr.bf16.gmra.mrb[0].mxu0 %v5168
      %v5204 = vpop.f32.mrb[0].mxu0
      %v5205 = vadd.f32 %v5165, %v5204
      %v5206 = vpop.f32.mrb[0].mxu0
      %v5207 = vpop.f32.mrb[0].mxu0
      %v5208 = vpop.f32.mrb[0].mxu0
      %5209 = vdwg.mxu0
      %vm5210 = vcmask 237568
      %5211 = vst.msk [vmem:[%s382] sm:$0x1] %vm5210, %v5205
      %p5212 = scmp.lt.s32.totalorder %s22, 1
      %s5213 = scalar_select %p5212, %s22, 1
      %s5214 = scalar_lea.vmem %s11, %s5213
      // Predicated region
      $region65: #{audio_classifier_forward.1} parent=63 // pred_check
        %p5215 = pneg %p276
      $region66: #{audio_classifier_forward.1} parent=63 // pred_check_branch
        %5217 = sbr.rel (%p5215) target = $region68
      $region67: #{audio_classifier_forward.1} parent=63 // pred_region
        _
      $region68: #{audio_classifier_forward.1} parent=63 // pred_fallthru
        _
    $region64: #{audio_classifier_forward.1} parent=5 // pred_fallthru
      _
    %p5218 = scmp.le.s32.totalorder 2, %s17
    // Predicated region
    $region69: #{audio_classifier_forward.1} parent=5 // pred_check
      %p5219 = pneg %p5218
    $region70: #{audio_classifier_forward.1} parent=5 // pred_check_branch
      %5221 = sbr.rel (%p5219) target = $region72
    $region71: #{audio_classifier_forward.1} parent=5 // pred_region
      %s5222 = ssub.s32 %s17, 2
      // Predicated region
      $region73: #{audio_classifier_forward.1} parent=71 // pred_check
        %p5223 = pneg %p282
      $region74: #{audio_classifier_forward.1} parent=71 // pred_check_branch
        %5225 = sbr.rel (%p5223) target = $region76
      $region75: #{audio_classifier_forward.1} parent=71 // pred_region
        %p5226 = scmp.lt.s32.totalorder %s23, 1
        %s5227 = scalar_select %p5226, %s23, 1
        %s5228 = scalar_lea.vmem %s11, %s5227
      $region76: #{audio_classifier_forward.1} parent=71 // pred_fallthru
        _
    $region72: #{audio_classifier_forward.1} parent=5 // pred_fallthru
      _
  $region6: #{audio_classifier_forward.1} parent=0 // loop_footer
    %s21 = sadd.s32 1, %s17
  $region7: #{audio_classifier_forward.1} parent=0 // loop_footer_branch
    %16 = sbr.rel target = $region3
  $region8: #{audio_classifier_forward.1} parent=0 // loop_exit
    _

</llo_original>
